<compile_context>
chip_gen: v7x
topology: tpu7x:2x2x1
jax: 0.10.0
libtpu: 0.0.40
codegen_flags: <defaults>
</compile_context>

<pallas_src>
import functools
import math

import jax
import jax.numpy as jnp
from jax.experimental import pallas as pl
from jax.experimental.pallas import tpu as pltpu

# ---- small-but-faithful DenseNet hyper-parameters (same structure as LungXnet) ----
GROWTH_RATE = 8
BLOCK_CONFIG = (2, 2)
NUM_INIT_FEATURES = 16
BN_SIZE = 2
DROP_RATE = 0.2          # eval mode -> identity
NUM_CLASSES = 14
BN_EPS = 1e-5

_VMEM_LIMIT = 32 * 1024 * 1024


# ----------------------------- Pallas matmul kernel -------------------------------

def _make_mm_kernel(has_pre, has_post, post_relu, has_alias, multi_k):
    """Fused conv-as-matmul kernel in CM layout.

    Computes o = epilogue(W @ prologue(X)) for one (Cout, tm) output tile, where
    prologue = optional eval-BN + ReLU over the K input channels and
    epilogue = optional eval-BN (+ ReLU) over the Cout output channels.
    Single-K path stores the dot result directly (no accumulator round trip)."""

    def kernel(*refs):
        i = 0
        w_ref = refs[i]; i += 1
        x_ref = refs[i]; i += 1
        if has_pre:
            pre_s, pre_t = refs[i], refs[i + 1]; i += 2
        if has_post:
            post_s, post_t = refs[i], refs[i + 1]; i += 2
        if has_alias:
            i += 1                                # aliased HBM view of the output; never read
        o_ref = refs[i]; i += 1
        acc_ref = refs[i] if multi_k else None

        x = x_ref[...]
        if has_pre:                               # fused pre-activation BN + ReLU, in VMEM
            x = jnp.maximum(x * pre_s[...] + pre_t[...], 0.0)
        part = jnp.dot(w_ref[...].astype(jnp.bfloat16), x.astype(jnp.bfloat16),
                       preferred_element_type=jnp.float32)

        def epilogue(y):
            if has_post:                          # post-BN folded into the store
                y = y * post_s[...] + post_t[...]
            if post_relu:
                y = jnp.maximum(y, 0.0)
            return y

        if not multi_k:                           # K fits one tile: store directly
            o_ref[...] = epilogue(part)
        else:                                     # robustness path for large K only
            k = pl.program_id(1)

            @pl.when(k == 0)
            def _():
                acc_ref[...] = jnp.zeros_like(acc_ref)

            acc_ref[...] += part

            @pl.when(k == pl.num_programs(1) - 1)
            def _():
                o_ref[...] = epilogue(acc_ref[...])

    return kernel


def _pick_tm(m, tmax=512):
    """Largest multiple-of-128 divisor of m (<= tmax); prefer >=2 grid blocks so
    both v7x TensorCores get work.  Small / ragged m falls back to one full block
    (still legal: block dim == array dim)."""
    tm = None
    t = (min(m, tmax) // 128) * 128
    while t >= 128:
        if m % t == 0:
            tm = t
            break
        t -= 128
    if tm is None:
        return m
    if m // tm == 1 and (m // 2) % 128 == 0:
        tm = m // 2
    return tm


def conv_matmul(w_t, x_cm, *, pre=None, post=None, post_relu=False,
                write_into=None, row_offset=0, tm_max=512, tk_max=512):
    """Conv (no bias) as one fused Pallas MXU matmul in CM layout.

    w_t   : (Cout, K) weights, columns ordered (kh, kw, cin) to match im2col_cm.
    x_cm  : (K_or_more, M) activations; only the first K rows are read.
    pre   : optional (scale, shift) eval-BN + ReLU over the K input channels.
    post  : optional (scale, shift) eval-BN over the Cout output channels.
    write_into: optional (C_total, M) buffer -- the result is written in place
      into rows [row_offset, row_offset+Cout) via input_output_aliases, which is
      how dense-block "concatenation" happens without re-copying the feature map.
    """
    Cout, K = w_t.shape
    M = x_cm.shape[1]
    assert x_cm.shape[0] >= K

    tm = _pick_tm(M, tm_max)
    if K <= tk_max:
        tk = K
    else:
        tk = next((t for t in range(tk_max, 7, -1) if K % t == 0 and t % 8 == 0), K)
    nk = K // tk
    multi_k = nk > 1
    has_pre = pre is not None
    has_post = post is not None
    has_alias = write_into is not None
    out_row_block = (row_offset // Cout) if has_alias else 0

    if multi_k:
        grid = (M // tm, nk)
        sem = ("parallel", "arbitrary")
        w_spec = pl.BlockSpec((Cout, tk), lambda i, k: (0, k))
        x_spec = pl.BlockSpec((tk, tm), lambda i, k: (k, i))
        veck = lambda: pl.BlockSpec((tk, 1), lambda i, k: (k, 0))
        vecc = lambda: pl.BlockSpec((Cout, 1), lambda i, k: (0, 0))
        out_spec = pl.BlockSpec((Cout, tm), lambda i, k: (out_row_block, i))
        scratch = [pltpu.VMEM((Cout, tm), jnp.float32)]
    else:
        grid = (M // tm,)
        sem = ("parallel",)
        w_spec = pl.BlockSpec((Cout, K), lambda i: (0, 0))     # resident weight tile
        x_spec = pl.BlockSpec((K, tm), lambda i: (0, i))
        veck = lambda: pl.BlockSpec((K, 1), lambda i: (0, 0))
        vecc = lambda: pl.BlockSpec((Cout, 1), lambda i: (0, 0))
        out_spec = pl.BlockSpec((Cout, tm), lambda i: (out_row_block, i))
        scratch = []

    inputs = [w_t, x_cm]
    in_specs = [w_spec, x_spec]
    if has_pre:                                   # only DMA BN vectors when fused
        inputs += [pre[0].reshape(K, 1), pre[1].reshape(K, 1)]
        in_specs += [veck(), veck()]
    if has_post:
        inputs += [post[0].reshape(Cout, 1), post[1].reshape(Cout, 1)]
        in_specs += [vecc(), vecc()]
    io_alias = {}
    if has_alias:
        assert row_offset % Cout == 0 and write_into.shape[1] == M
        inputs.append(write_into)
        in_specs.append(pl.BlockSpec(memory_space=pl.ANY))     # no DMA; alias only
        io_alias = {len(inputs) - 1: 0}
        out_shape = jax.ShapeDtypeStruct(write_into.shape, jnp.float32)
    else:
        out_shape = jax.ShapeDtypeStruct((Cout, M), jnp.float32)

    return pl.pallas_call(
        _make_mm_kernel(has_pre, has_post, post_relu, has_alias, multi_k),
        out_shape=out_shape,
        grid=grid,
        in_specs=in_specs,
        out_specs=out_spec,
        scratch_shapes=scratch,
        input_output_aliases=io_alias,
        compiler_params=pltpu.CompilerParams(
            dimension_semantics=sem, vmem_limit_bytes=_VMEM_LIMIT),
    )(*inputs)


# ----------------------------- pooling & head kernels -----------------------------

def _maxpool_kernel(ee_ref, eo_ref, oe_ref, oo_ref, o_ref):
    """3x3 stride-2 (pad 1) max pool from parity planes; each element read once.
    Taps are grouped so only a single lane-shifted operand pair is needed."""
    ee = ee_ref[...]
    eo = eo_ref[...]
    oe = oe_ref[...]
    oo = oo_ref[...]
    c0 = jnp.maximum(ee, eo)
    # column-j contributions: ee/eo at rows i,i+1 and oe/oo at row i
    a = jnp.maximum(jnp.maximum(c0[:, :, :-1, :], c0[:, :, 1:, :]),
                    jnp.maximum(oe[:, :, :-1, :], oo[:, :, :-1, :]))
    # column-(j+1) contributions: ee at rows i,i+1 and oe at row i
    d = jnp.maximum(jnp.maximum(ee[:, :, :-1, :], ee[:, :, 1:, :]),
                    oe[:, :, :-1, :])
    o_ref[...] = jnp.maximum(a[:, :, :, :-1], d[:, :, :, 1:])


def _avgpool_kernel(p00_ref, p01_ref, p10_ref, p11_ref, o_ref):
    o_ref[...] = 0.25 * (p00_ref[...] + p01_ref[...] + p10_ref[...] + p11_ref[...])


def _head_kernel(x_ref, s_ref, t_ref, w_ref, b_ref, o_ref):
    """norm5 + ReLU + global avg pool + Linear + bias + sigmoid, one kernel."""
    x = jnp.maximum(x_ref[...] * s_ref[...] + t_ref[...], 0.0)        # (C, N, HW)
    pooled = jnp.mean(x, axis=2)                                      # (C, N)
    z = jnp.dot(w_ref[...], pooled, preferred_element_type=jnp.float32) + b_ref[...]
    o_ref[...] = jax.nn.sigmoid(z)                                    # (classes, N)


# ------------------------------ layer helpers (glue) ------------------------------

def im2col_cm(x4, kh, kw, stride, pad):
    """CM-layout im2col: (C, N, H, W) -> (kh*kw*C, N*OH*OW); rows ordered
    (kh, kw, cin) to match the weight layout produced by init_params.
    TODO(synk): for large spatial sizes, fold this into the matmul kernel via a
    (kh, kw) tap grid axis instead of materializing the patches in HBM."""
    C, N, H, W = x4.shape
    OH = (H + 2 * pad - kh) // stride + 1
    OW = (W + 2 * pad - kw) // stride + 1
    if kh == 1 and kw == 1 and stride == 1 and pad == 0:
        return x4.reshape(C, N * H * W), OH, OW                       # free reshape
    xp = jnp.pad(x4, ((0, 0), (0, 0), (pad, pad), (pad, pad)))
    taps = [xp[:, :, i:i + stride * OH:stride, j:j + stride * OW:stride]
            for i in range(kh) for j in range(kw)]
    A = jnp.concatenate(taps, axis=0).reshape(kh * kw * C, N * OH * OW)
    return A, OH, OW


def maxpool_3x3_s2_p1(x):
    """3x3/2 max pool (pad 1) on a CM (C, N, H, W) tensor, whole batch in one call."""
    C, N, H, W = x.shape
    assert H % 2 == 0 and W % 2 == 0
    OH, OW = H // 2, W // 2
    xp = jnp.pad(x, ((0, 0), (0, 0), (1, 1), (1, 1)), constant_values=-jnp.inf)
    ee = xp[:, :, 0::2, 0::2]
    eo = xp[:, :, 0::2, 1::2]
    oe = xp[:, :, 1::2, 0::2]
    oo = xp[:, :, 1::2, 1::2]
    return pl.pallas_call(
        _maxpool_kernel,
        out_shape=jax.ShapeDtypeStruct((C, N, OH, OW), jnp.float32),
    )(ee, eo, oe, oo)


def avgpool_2x2_s2(x):
    C, N, H, W = x.shape
    assert H % 2 == 0 and W % 2 == 0
    p00 = x[:, :, 0::2, 0::2]
    p01 = x[:, :, 0::2, 1::2]
    p10 = x[:, :, 1::2, 0::2]
    p11 = x[:, :, 1::2, 1::2]
    return pl.pallas_call(
        _avgpool_kernel,
        out_shape=jax.ShapeDtypeStruct((C, N, H // 2, W // 2), jnp.float32),
    )(p00, p01, p10, p11)


def head(x_cm, n, hw, norm, fc_wt, fc_b):
    c = x_cm.shape[0]
    scale, shift = norm
    out_t = pl.pallas_call(
        _head_kernel,
        out_shape=jax.ShapeDtypeStruct((fc_wt.shape[0], n), jnp.float32),
    )(x_cm.reshape(c, n, hw), scale.reshape(c, 1, 1), shift.reshape(c, 1, 1),
      fc_wt, fc_b)
    return out_t.T                                                    # (N, classes)


# --------------------------- parameter initialization -----------------------------

def bn_scale_shift(key, c):
    """Eval-mode BatchNorm folded to y = x*scale + shift."""
    k1, k2, k3, k4 = jax.random.split(key, 4)
    gamma = 1.0 + 0.1 * jax.random.normal(k1, (c,), jnp.float32)
    beta = 0.1 * jax.random.normal(k2, (c,), jnp.float32)
    running_mean = 0.1 * jax.random.normal(k3, (c,), jnp.float32)
    running_var = jax.random.uniform(k4, (c,), jnp.float32, 0.5, 1.5)
    scale = gamma / jnp.sqrt(running_var + BN_EPS)
    shift = beta - running_mean * scale
    return scale, shift


def init_params(key):
    it = iter(jax.random.split(key, 64))
    nk = lambda: next(it)

    def conv_wt(kh, kw, cin, cout):
        w = jax.random.normal(nk(), (kh, kw, cin, cout),
                              jnp.float32) / math.sqrt(kh * kw * cin)
        # matmul-ready transposed form (Cout, kh*kw*cin), columns ordered (kh, kw, cin)
        return w.reshape(kh * kw * cin, cout).T

    params = {"conv0_wt": conv_wt(7, 7, 3, NUM_INIT_FEATURES),
              "norm0": bn_scale_shift(nk(), NUM_INIT_FEATURES)}
    nf = NUM_INIT_FEATURES
    for bi, nlayers in enumerate(BLOCK_CONFIG):
        for li in range(nlayers):
            cin = nf + li * GROWTH_RATE
            params[f"b{bi}_l{li}"] = {
                "norm1": bn_scale_shift(nk(), cin),
                "conv1_wt": conv_wt(1, 1, cin, BN_SIZE * GROWTH_RATE),
                "norm2": bn_scale_shift(nk(), BN_SIZE * GROWTH_RATE),
                "conv2_wt": conv_wt(3, 3, BN_SIZE * GROWTH_RATE, GROWTH_RATE),
            }
        nf += nlayers * GROWTH_RATE
        if bi != len(BLOCK_CONFIG) - 1:
            params[f"t{bi}"] = {
                "norm": bn_scale_shift(nk(), nf),
                "conv_wt": conv_wt(1, 1, nf, nf // 2),
            }
            nf //= 2
    params["norm5"] = bn_scale_shift(nk(), nf)
    params["fc_wt"] = jax.random.normal(nk(), (NUM_CLASSES, nf),
                                        jnp.float32) / math.sqrt(nf)
    params["fc_b"] = 0.01 * jax.random.normal(nk(), (NUM_CLASSES, 1), jnp.float32)
    return params


# --------------------------------- forward pass ------------------------------------

def lungxnet_forward(x_nchw, params):
    N = x_nchw.shape[0]
    # CM layout: channels lead (sublanes), flattened N*H*W trails (lanes).
    x = jnp.transpose(x_nchw, (1, 0, 2, 3)).astype(jnp.float32)       # (3, N, H, W)

    # stem: 7x7/2 conv with fused norm0+relu0 epilogue, then 3x3/2 max pool
    a0, oh, ow = im2col_cm(x, 7, 7, stride=2, pad=3)
    nf = NUM_INIT_FEATURES
    h = conv_matmul(params["conv0_wt"], a0,
                    post=params["norm0"], post_relu=True)             # (nf, N*oh*ow)
    feat = maxpool_3x3_s2_p1(h.reshape(nf, N, oh, ow))
    oh, ow = oh // 2, ow // 2

    # dense blocks + transitions
    buf = None
    for bi, nlayers in enumerate(BLOCK_CONFIG):
        m = N * oh * ow
        c_final = nf + nlayers * GROWTH_RATE
        # preallocate the block's full feature map; each layer writes its
        # GROWTH_RATE channels in place -> no O(L^2) concat re-copies.
        buf = jnp.pad(feat.reshape(nf, m), ((0, c_final - nf), (0, 0)))
        for li in range(nlayers):
            p = params[f"b{bi}_l{li}"]
            cin = nf + li * GROWTH_RATE
            # bottleneck 1x1: norm1+relu1 prologue and norm2+relu2 epilogue fused;
            # reads only the first `cin` channel rows of the block buffer.
            y = conv_matmul(p["conv1_wt"], buf, pre=p["norm1"],
                            post=p["norm2"], post_relu=True)          # (bn_size*g, m)
            # 3x3 conv (pre-activation already applied by conv1's epilogue);
            # writes its channels straight into `buf` via input_output_aliases.
            a2, _, _ = im2col_cm(y.reshape(BN_SIZE * GROWTH_RATE, N, oh, ow),
                                 3, 3, 1, 1)
            buf = conv_matmul(p["conv2_wt"], a2, write_into=buf, row_offset=cin)
            # TODO(synk): drop_rate dropout is identity in eval mode; training-mode dropout not implemented.
        nf = c_final
        if bi != len(BLOCK_CONFIG) - 1:
            p = params[f"t{bi}"]
            # transition: norm+relu fused as the 1x1 conv's prologue, then 2x2/2 avg pool
            z = conv_matmul(p["conv_wt"], buf, pre=p["norm"])          # (nf/2, m)
            nf //= 2
            feat = avgpool_2x2_s2(z.reshape(nf, N, oh, ow))
            oh, ow = oh // 2, ow // 2

    # head: norm5 + relu + adaptive avg pool (1,1) + Linear + Sigmoid, one kernel
    return head(buf, N, oh * ow, params["norm5"], params["fc_wt"], params["fc_b"])


# ------------------------------------- main -----------------------------------------

if __name__ == "__main__":
    key = jax.random.PRNGKey(0)
    pkey, xkey = jax.random.split(key)
    params = init_params(pkey)
    x = jax.random.normal(xkey, (2, 3, 32, 32), jnp.float32)          # small NCHW input

    fwd = jax.jit(lambda inp: lungxnet_forward(inp, params))
    out = jax.block_until_ready(fwd(x))

    assert out.shape == (2, NUM_CLASSES)
    assert bool(jnp.all(jnp.isfinite(out)))
    assert bool(jnp.all((out >= 0.0) & (out <= 1.0)))                 # sigmoid range
    print("KERNEL_OK")
</pallas_src>

<mosaic_0001>
module attributes {stable_mosaic.version = 11 : i64} {
  func.func @kernel(%arg0: i32, %arg1: memref<16x147xf32, #tpu.memory_space<vmem>>, %arg2: memref<147x256xf32, #tpu.memory_space<vmem>>, %arg3: memref<16x1xf32, #tpu.memory_space<vmem>>, %arg4: memref<16x1xf32, #tpu.memory_space<vmem>>, %arg5: memref<16x256xf32, #tpu.memory_space<vmem>>) attributes {dimension_semantics = [#tpu.dimension_semantics<parallel>], iteration_bounds = array<i64: 2>, scalar_prefetch = 0 : i64, scratch_operands = 0 : i64, tpu.core_type = #tpu.core_type<tc>, window_params = [{pipeline_mode = #tpu.pipeline_mode<synchronous>, transform_indices = @transform_0, window_bounds = array<i64: 16, 147>}, {transform_indices = @transform_1, window_bounds = array<i64: 147, 256>}, {pipeline_mode = #tpu.pipeline_mode<synchronous>, transform_indices = @transform_2, window_bounds = array<i64: 16, 1>}, {pipeline_mode = #tpu.pipeline_mode<synchronous>, transform_indices = @transform_3, window_bounds = array<i64: 16, 1>}, {transform_indices = @transform_4, window_bounds = array<i64: 16, 256>}]} {
    %c0 = arith.constant 0 : index
    %c0_0 = arith.constant 0 : index
    %0 = vector.load %arg2[%c0, %c0_0] : memref<147x256xf32, #tpu.memory_space<vmem>>, vector<147x256xf32>
    %c0_1 = arith.constant 0 : index
    %c0_2 = arith.constant 0 : index
    %1 = vector.load %arg1[%c0_1, %c0_2] : memref<16x147xf32, #tpu.memory_space<vmem>>, vector<16x147xf32>
    %2 = arith.truncf %1 : vector<16x147xf32> to vector<16x147xbf16>
    %3 = arith.truncf %0 : vector<147x256xf32> to vector<147x256xbf16>
    %cst = arith.constant dense<0.000000e+00> : vector<16x256xf32>
    %4 = tpu.matmul %2, %3, %cst {dimension_numbers = #tpu.dot_dimension_numbers<[1], [0], [0], [1], [0, 0, 1, 1], [], []>} : vector<16x147xbf16>, vector<147x256xbf16>, vector<16x256xf32> -> vector<16x256xf32>
    %c0_3 = arith.constant 0 : index
    %c0_4 = arith.constant 0 : index
    %5 = vector.load %arg3[%c0_3, %c0_4] : memref<16x1xf32, #tpu.memory_space<vmem>>, vector<16x1xf32>
    %6 = vector.broadcast %5 : vector<16x1xf32> to vector<16x256xf32>
    %7 = arith.mulf %4, %6 : vector<16x256xf32>
    %c0_5 = arith.constant 0 : index
    %c0_6 = arith.constant 0 : index
    %8 = vector.load %arg4[%c0_5, %c0_6] : memref<16x1xf32, #tpu.memory_space<vmem>>, vector<16x1xf32>
    %9 = vector.broadcast %8 : vector<16x1xf32> to vector<16x256xf32>
    %10 = arith.addf %7, %9 : vector<16x256xf32>
    %cst_7 = arith.constant 0.000000e+00 : f32
    %11 = vector.broadcast %cst_7 : f32 to vector<16x256xf32>
    %12 = arith.maximumf %10, %11 : vector<16x256xf32>
    %c0_8 = arith.constant 0 : index
    %c0_9 = arith.constant 0 : index
    %13 = vector.load %arg5[%c0_8, %c0_9] : memref<16x256xf32, #tpu.memory_space<vmem>>, vector<16x256xf32>
    tpu.vector_store %arg5[%c0_8, %c0_9], %12 {strides = array<i32>} : memref<16x256xf32, #tpu.memory_space<vmem>>, vector<16x256xf32>,
    return
  }
  func.func @transform_0(%arg0: i32) -> (i32, i32) {
    %c0_i32 = arith.constant 0 : i32
    %c0_i32_0 = arith.constant 0 : i32
    %c0_i32_1 = arith.constant 0 : i32
    return %c0_i32, %c0_i32_0 : i32, i32
  }
  func.func @transform_1(%arg0: i32) -> (i32, i32) {
    %c0_i32 = arith.constant 0 : i32
    %c0_i32_0 = arith.constant 0 : i32
    return %c0_i32, %arg0 : i32, i32
  }
  func.func @transform_2(%arg0: i32) -> (i32, i32) {
    %c0_i32 = arith.constant 0 : i32
    %c0_i32_0 = arith.constant 0 : i32
    %c0_i32_1 = arith.constant 0 : i32
    return %c0_i32, %c0_i32_0 : i32, i32
  }
  func.func @transform_3(%arg0: i32) -> (i32, i32) {
    %c0_i32 = arith.constant 0 : i32
    %c0_i32_0 = arith.constant 0 : i32
    %c0_i32_1 = arith.constant 0 : i32
    return %c0_i32, %c0_i32_0 : i32, i32
  }
  func.func @transform_4(%arg0: i32) -> (i32, i32) {
    %c0_i32 = arith.constant 0 : i32
    %c0_i32_0 = arith.constant 0 : i32
    return %c0_i32, %arg0 : i32, i32
  }
}

module attributes {stable_mosaic.version = 11 : i64} {
  func.func @_maxpool_kernel(%arg0: memref<16x2x9x9xf32, #tpu.memory_space<vmem>>, %arg1: memref<16x2x9x9xf32, #tpu.memory_space<vmem>>, %arg2: memref<16x2x9x9xf32, #tpu.memory_space<vmem>>, %arg3: memref<16x2x9x9xf32, #tpu.memory_space<vmem>>, %arg4: memref<16x2x8x8xf32, #tpu.memory_space<vmem>>) attributes {dimension_semantics = [], scalar_prefetch = 0 : i64, scratch_operands = 0 : i64, tpu.core_type = #tpu.core_type<tc>} {
    %c0 = arith.constant 0 : index
    %c0_0 = arith.constant 0 : index
    %c0_1 = arith.constant 0 : index
    %c0_2 = arith.constant 0 : index
    %0 = vector.load %arg0[%c0, %c0_0, %c0_1, %c0_2] : memref<16x2x9x9xf32, #tpu.memory_space<vmem>>, vector<16x2x9x9xf32>
    %c0_3 = arith.constant 0 : index
    %c0_4 = arith.constant 0 : index
    %c0_5 = arith.constant 0 : index
    %c0_6 = arith.constant 0 : index
    %1 = vector.load %arg1[%c0_3, %c0_4, %c0_5, %c0_6] : memref<16x2x9x9xf32, #tpu.memory_space<vmem>>, vector<16x2x9x9xf32>
    %c0_7 = arith.constant 0 : index
    %c0_8 = arith.constant 0 : index
    %c0_9 = arith.constant 0 : index
    %c0_10 = arith.constant 0 : index
    %2 = vector.load %arg2[%c0_7, %c0_8, %c0_9, %c0_10] : memref<16x2x9x9xf32, #tpu.memory_space<vmem>>, vector<16x2x9x9xf32>
    %c0_11 = arith.constant 0 : index
    %c0_12 = arith.constant 0 : index
    %c0_13 = arith.constant 0 : index
    %c0_14 = arith.constant 0 : index
    %3 = vector.load %arg3[%c0_11, %c0_12, %c0_13, %c0_14] : memref<16x2x9x9xf32, #tpu.memory_space<vmem>>, vector<16x2x9x9xf32>
    %4 = arith.maximumf %0, %1 : vector<16x2x9x9xf32>
    %5 = vector.extract_strided_slice %4 {offsets = [0, 0, 0, 0], sizes = [16, 2, 8, 9], strides = [1, 1, 1, 1]} : vector<16x2x9x9xf32> to vector<16x2x8x9xf32>
    %6 = vector.extract_strided_slice %4 {offsets = [0, 0, 1, 0], sizes = [16, 2, 8, 9], strides = [1, 1, 1, 1]} : vector<16x2x9x9xf32> to vector<16x2x8x9xf32>
    %7 = arith.maximumf %5, %6 : vector<16x2x8x9xf32>
    %8 = vector.extract_strided_slice %2 {offsets = [0, 0, 0, 0], sizes = [16, 2, 8, 9], strides = [1, 1, 1, 1]} : vector<16x2x9x9xf32> to vector<16x2x8x9xf32>
    %9 = vector.extract_strided_slice %3 {offsets = [0, 0, 0, 0], sizes = [16, 2, 8, 9], strides = [1, 1, 1, 1]} : vector<16x2x9x9xf32> to vector<16x2x8x9xf32>
    %10 = arith.maximumf %8, %9 : vector<16x2x8x9xf32>
    %11 = arith.maximumf %7, %10 : vector<16x2x8x9xf32>
    %12 = vector.extract_strided_slice %0 {offsets = [0, 0, 0, 0], sizes = [16, 2, 8, 9], strides = [1, 1, 1, 1]} : vector<16x2x9x9xf32> to vector<16x2x8x9xf32>
    %13 = vector.extract_strided_slice %0 {offsets = [0, 0, 1, 0], sizes = [16, 2, 8, 9], strides = [1, 1, 1, 1]} : vector<16x2x9x9xf32> to vector<16x2x8x9xf32>
    %14 = arith.maximumf %12, %13 : vector<16x2x8x9xf32>
    %15 = vector.extract_strided_slice %2 {offsets = [0, 0, 0, 0], sizes = [16, 2, 8, 9], strides = [1, 1, 1, 1]} : vector<16x2x9x9xf32> to vector<16x2x8x9xf32>
    %16 = arith.maximumf %14, %15 : vector<16x2x8x9xf32>
    %17 = vector.extract_strided_slice %11 {offsets = [0, 0, 0, 0], sizes = [16, 2, 8, 8], strides = [1, 1, 1, 1]} : vector<16x2x8x9xf32> to vector<16x2x8x8xf32>
    %18 = vector.extract_strided_slice %16 {offsets = [0, 0, 0, 1], sizes = [16, 2, 8, 8], strides = [1, 1, 1, 1]} : vector<16x2x8x9xf32> to vector<16x2x8x8xf32>
    %19 = arith.maximumf %17, %18 : vector<16x2x8x8xf32>
    %c0_15 = arith.constant 0 : index
    %c0_16 = arith.constant 0 : index
    %c0_17 = arith.constant 0 : index
    %c0_18 = arith.constant 0 : index
    %20 = vector.load %arg4[%c0_15, %c0_16, %c0_17, %c0_18] : memref<16x2x8x8xf32, #tpu.memory_space<vmem>>, vector<16x2x8x8xf32>
    tpu.vector_store %arg4[%c0_15, %c0_16, %c0_17, %c0_18], %19 {strides = array<i32>} : memref<16x2x8x8xf32, #tpu.memory_space<vmem>>, vector<16x2x8x8xf32>,
    return
  }
}

module attributes {stable_mosaic.version = 11 : i64} {
  func.func @kernel(%arg0: i32, %arg1: memref<16x16xf32, #tpu.memory_space<vmem>>, %arg2: memref<16x128xf32, #tpu.memory_space<vmem>>, %arg3: memref<16x1xf32, #tpu.memory_space<vmem>>, %arg4: memref<16x1xf32, #tpu.memory_space<vmem>>, %arg5: memref<16x1xf32, #tpu.memory_space<vmem>>, %arg6: memref<16x1xf32, #tpu.memory_space<vmem>>, %arg7: memref<16x128xf32, #tpu.memory_space<vmem>>) attributes {dimension_semantics = [#tpu.dimension_semantics<parallel>], iteration_bounds = array<i64: 1>, scalar_prefetch = 0 : i64, scratch_operands = 0 : i64, tpu.core_type = #tpu.core_type<tc>, window_params = [{pipeline_mode = #tpu.pipeline_mode<synchronous>, transform_indices = @transform_0, window_bounds = array<i64: 16, 16>}, {transform_indices = @transform_1, window_bounds = array<i64: 16, 128>}, {pipeline_mode = #tpu.pipeline_mode<synchronous>, transform_indices = @transform_2, window_bounds = array<i64: 16, 1>}, {pipeline_mode = #tpu.pipeline_mode<synchronous>, transform_indices = @transform_3, window_bounds = array<i64: 16, 1>}, {pipeline_mode = #tpu.pipeline_mode<synchronous>, transform_indices = @transform_4, window_bounds = array<i64: 16, 1>}, {pipeline_mode = #tpu.pipeline_mode<synchronous>, transform_indices = @transform_5, window_bounds = array<i64: 16, 1>}, {transform_indices = @transform_6, window_bounds = array<i64: 16, 128>}]} {
    %c0 = arith.constant 0 : index
    %c0_0 = arith.constant 0 : index
    %0 = vector.load %arg2[%c0, %c0_0] : memref<16x128xf32, #tpu.memory_space<vmem>>, vector<16x128xf32>
    %c0_1 = arith.constant 0 : index
    %c0_2 = arith.constant 0 : index
    %1 = vector.load %arg3[%c0_1, %c0_2] : memref<16x1xf32, #tpu.memory_space<vmem>>, vector<16x1xf32>
    %2 = vector.broadcast %1 : vector<16x1xf32> to vector<16x128xf32>
    %3 = arith.mulf %0, %2 : vector<16x128xf32>
    %c0_3 = arith.constant 0 : index
    %c0_4 = arith.constant 0 : index
    %4 = vector.load %arg4[%c0_3, %c0_4] : memref<16x1xf32, #tpu.memory_space<vmem>>, vector<16x1xf32>
    %5 = vector.broadcast %4 : vector<16x1xf32> to vector<16x128xf32>
    %6 = arith.addf %3, %5 : vector<16x128xf32>
    %cst = arith.constant 0.000000e+00 : f32
    %7 = vector.broadcast %cst : f32 to vector<16x128xf32>
    %8 = arith.maximumf %6, %7 : vector<16x128xf32>
    %c0_5 = arith.constant 0 : index
    %c0_6 = arith.constant 0 : index
    %9 = vector.load %arg1[%c0_5, %c0_6] : memref<16x16xf32, #tpu.memory_space<vmem>>, vector<16x16xf32>
    %10 = arith.truncf %9 : vector<16x16xf32> to vector<16x16xbf16>
    %11 = arith.truncf %8 : vector<16x128xf32> to vector<16x128xbf16>
    %cst_7 = arith.constant dense<0.000000e+00> : vector<16x128xf32>
    %12 = tpu.matmul %10, %11, %cst_7 {dimension_numbers = #tpu.dot_dimension_numbers<[1], [0], [0], [1], [0, 0, 1, 1], [], []>} : vector<16x16xbf16>, vector<16x128xbf16>, vector<16x128xf32> -> vector<16x128xf32>
    %c0_8 = arith.constant 0 : index
    %c0_9 = arith.constant 0 : index
    %13 = vector.load %arg5[%c0_8, %c0_9] : memref<16x1xf32, #tpu.memory_space<vmem>>, vector<16x1xf32>
    %14 = vector.broadcast %13 : vector<16x1xf32> to vector<16x128xf32>
    %15 = arith.mulf %12, %14 : vector<16x128xf32>
    %c0_10 = arith.constant 0 : index
    %c0_11 = arith.constant 0 : index
    %16 = vector.load %arg6[%c0_10, %c0_11] : memref<16x1xf32, #tpu.memory_space<vmem>>, vector<16x1xf32>
    %17 = vector.broadcast %16 : vector<16x1xf32> to vector<16x128xf32>
    %18 = arith.addf %15, %17 : vector<16x128xf32>
    %cst_12 = arith.constant 0.000000e+00 : f32
    %19 = vector.broadcast %cst_12 : f32 to vector<16x128xf32>
    %20 = arith.maximumf %18, %19 : vector<16x128xf32>
    %c0_13 = arith.constant 0 : index
    %c0_14 = arith.constant 0 : index
    %21 = vector.load %arg7[%c0_13, %c0_14] : memref<16x128xf32, #tpu.memory_space<vmem>>, vector<16x128xf32>
    tpu.vector_store %arg7[%c0_13, %c0_14], %20 {strides = array<i32>} : memref<16x128xf32, #tpu.memory_space<vmem>>, vector<16x128xf32>,
    return
  }
  func.func @transform_0(%arg0: i32) -> (i32, i32) {
    %c0_i32 = arith.constant 0 : i32
    %c0_i32_0 = arith.constant 0 : i32
    %c0_i32_1 = arith.constant 0 : i32
    return %c0_i32, %c0_i32_0 : i32, i32
  }
  func.func @transform_1(%arg0: i32) -> (i32, i32) {
    %c0_i32 = arith.constant 0 : i32
    %c0_i32_0 = arith.constant 0 : i32
    return %c0_i32, %arg0 : i32, i32
  }
  func.func @transform_2(%arg0: i32) -> (i32, i32) {
    %c0_i32 = arith.constant 0 : i32
    %c0_i32_0 = arith.constant 0 : i32
    %c0_i32_1 = arith.constant 0 : i32
    return %c0_i32, %c0_i32_0 : i32, i32
  }
  func.func @transform_3(%arg0: i32) -> (i32, i32) {
    %c0_i32 = arith.constant 0 : i32
    %c0_i32_0 = arith.constant 0 : i32
    %c0_i32_1 = arith.constant 0 : i32
    return %c0_i32, %c0_i32_0 : i32, i32
  }
  func.func @transform_4(%arg0: i32) -> (i32, i32) {
    %c0_i32 = arith.constant 0 : i32
    %c0_i32_0 = arith.constant 0 : i32
    %c0_i32_1 = arith.constant 0 : i32
    return %c0_i32, %c0_i32_0 : i32, i32
  }
  func.func @transform_5(%arg0: i32) -> (i32, i32) {
    %c0_i32 = arith.constant 0 : i32
    %c0_i32_0 = arith.constant 0 : i32
    %c0_i32_1 = arith.constant 0 : i32
    return %c0_i32, %c0_i32_0 : i32, i32
  }
  func.func @transform_6(%arg0: i32) -> (i32, i32) {
    %c0_i32 = arith.constant 0 : i32
    %c0_i32_0 = arith.constant 0 : i32
    return %c0_i32, %arg0 : i32, i32
  }
}

module attributes {stable_mosaic.version = 11 : i64} {
  func.func @kernel(%arg0: i32, %arg1: memref<8x144xf32, #tpu.memory_space<vmem>>, %arg2: memref<144x128xf32, #tpu.memory_space<vmem>>, %arg3: memref<32x128xf32, #tpu.memory_space<any>>, %arg4: memref<8x128xf32, #tpu.memory_space<vmem>>) attributes {dimension_semantics = [#tpu.dimension_semantics<parallel>], iteration_bounds = array<i64: 1>, scalar_prefetch = 0 : i64, scratch_operands = 0 : i64, tpu.core_type = #tpu.core_type<tc>, window_params = [{pipeline_mode = #tpu.pipeline_mode<synchronous>, transform_indices = @transform_0, window_bounds = array<i64: 8, 144>}, {transform_indices = @transform_1, window_bounds = array<i64: 144, 128>}, {}, {transform_indices = @transform_3, window_bounds = array<i64: 8, 128>}]} {
    %c0 = arith.constant 0 : index
    %c0_0 = arith.constant 0 : index
    %0 = vector.load %arg2[%c0, %c0_0] : memref<144x128xf32, #tpu.memory_space<vmem>>, vector<144x128xf32>
    %c0_1 = arith.constant 0 : index
    %c0_2 = arith.constant 0 : index
    %1 = vector.load %arg1[%c0_1, %c0_2] : memref<8x144xf32, #tpu.memory_space<vmem>>, vector<8x144xf32>
    %2 = arith.truncf %1 : vector<8x144xf32> to vector<8x144xbf16>
    %3 = arith.truncf %0 : vector<144x128xf32> to vector<144x128xbf16>
    %cst = arith.constant dense<0.000000e+00> : vector<8x128xf32>
    %4 = tpu.matmul %2, %3, %cst {dimension_numbers = #tpu.dot_dimension_numbers<[1], [0], [0], [1], [0, 0, 1, 1], [], []>} : vector<8x144xbf16>, vector<144x128xbf16>, vector<8x128xf32> -> vector<8x128xf32>
    %c0_3 = arith.constant 0 : index
    %c0_4 = arith.constant 0 : index
    %5 = vector.load %arg4[%c0_3, %c0_4] : memref<8x128xf32, #tpu.memory_space<vmem>>, vector<8x128xf32>
    tpu.vector_store %arg4[%c0_3, %c0_4], %4 {strides = array<i32>} : memref<8x128xf32, #tpu.memory_space<vmem>>, vector<8x128xf32>,
    return
  }
  func.func @transform_0(%arg0: i32) -> (i32, i32) {
    %c0_i32 = arith.constant 0 : i32
    %c0_i32_0 = arith.constant 0 : i32
    %c0_i32_1 = arith.constant 0 : i32
    return %c0_i32, %c0_i32_0 : i32, i32
  }
  func.func @transform_1(%arg0: i32) -> (i32, i32) {
    %c0_i32 = arith.constant 0 : i32
    %c0_i32_0 = arith.constant 0 : i32
    return %c0_i32, %arg0 : i32, i32
  }
  func.func @transform_3(%arg0: i32) -> (i32, i32) {
    %c2_i32 = arith.constant 2 : i32
    %c0_i32 = arith.constant 0 : i32
    return %c2_i32, %arg0 : i32, i32
  }
}

module attributes {stable_mosaic.version = 11 : i64} {
  func.func @kernel(%arg0: i32, %arg1: memref<8x144xf32, #tpu.memory_space<vmem>>, %arg2: memref<144x128xf32, #tpu.memory_space<vmem>>, %arg3: memref<32x128xf32, #tpu.memory_space<any>>, %arg4: memref<8x128xf32, #tpu.memory_space<vmem>>) attributes {dimension_semantics = [#tpu.dimension_semantics<parallel>], iteration_bounds = array<i64: 1>, scalar_prefetch = 0 : i64, scratch_operands = 0 : i64, tpu.core_type = #tpu.core_type<tc>, window_params = [{pipeline_mode = #tpu.pipeline_mode<synchronous>, transform_indices = @transform_0, window_bounds = array<i64: 8, 144>}, {transform_indices = @transform_1, window_bounds = array<i64: 144, 128>}, {}, {transform_indices = @transform_3, window_bounds = array<i64: 8, 128>}]} {
    %c0 = arith.constant 0 : index
    %c0_0 = arith.constant 0 : index
    %0 = vector.load %arg2[%c0, %c0_0] : memref<144x128xf32, #tpu.memory_space<vmem>>, vector<144x128xf32>
    %c0_1 = arith.constant 0 : index
    %c0_2 = arith.constant 0 : index
    %1 = vector.load %arg1[%c0_1, %c0_2] : memref<8x144xf32, #tpu.memory_space<vmem>>, vector<8x144xf32>
    %2 = arith.truncf %1 : vector<8x144xf32> to vector<8x144xbf16>
    %3 = arith.truncf %0 : vector<144x128xf32> to vector<144x128xbf16>
    %cst = arith.constant dense<0.000000e+00> : vector<8x128xf32>
    %4 = tpu.matmul %2, %3, %cst {dimension_numbers = #tpu.dot_dimension_numbers<[1], [0], [0], [1], [0, 0, 1, 1], [], []>} : vector<8x144xbf16>, vector<144x128xbf16>, vector<8x128xf32> -> vector<8x128xf32>
    %c0_3 = arith.constant 0 : index
    %c0_4 = arith.constant 0 : index
    %5 = vector.load %arg4[%c0_3, %c0_4] : memref<8x128xf32, #tpu.memory_space<vmem>>, vector<8x128xf32>
    tpu.vector_store %arg4[%c0_3, %c0_4], %4 {strides = array<i32>} : memref<8x128xf32, #tpu.memory_space<vmem>>, vector<8x128xf32>,
    return
  }
  func.func @transform_0(%arg0: i32) -> (i32, i32) {
    %c0_i32 = arith.constant 0 : i32
    %c0_i32_0 = arith.constant 0 : i32
    %c0_i32_1 = arith.constant 0 : i32
    return %c0_i32, %c0_i32_0 : i32, i32
  }
  func.func @transform_1(%arg0: i32) -> (i32, i32) {
    %c0_i32 = arith.constant 0 : i32
    %c0_i32_0 = arith.constant 0 : i32
    return %c0_i32, %arg0 : i32, i32
  }
  func.func @transform_3(%arg0: i32) -> (i32, i32) {
    %c3_i32 = arith.constant 3 : i32
    %c0_i32 = arith.constant 0 : i32
    return %c3_i32, %arg0 : i32, i32
  }
}

module attributes {stable_mosaic.version = 11 : i64} {
  func.func @kernel(%arg0: i32, %arg1: memref<16x24xf32, #tpu.memory_space<vmem>>, %arg2: memref<24x128xf32, #tpu.memory_space<vmem>>, %arg3: memref<24x1xf32, #tpu.memory_space<vmem>>, %arg4: memref<24x1xf32, #tpu.memory_space<vmem>>, %arg5: memref<16x1xf32, #tpu.memory_space<vmem>>, %arg6: memref<16x1xf32, #tpu.memory_space<vmem>>, %arg7: memref<16x128xf32, #tpu.memory_space<vmem>>) attributes {dimension_semantics = [#tpu.dimension_semantics<parallel>], iteration_bounds = array<i64: 1>, scalar_prefetch = 0 : i64, scratch_operands = 0 : i64, tpu.core_type = #tpu.core_type<tc>, window_params = [{pipeline_mode = #tpu.pipeline_mode<synchronous>, transform_indices = @transform_0, window_bounds = array<i64: 16, 24>}, {transform_indices = @transform_1, window_bounds = array<i64: 24, 128>}, {pipeline_mode = #tpu.pipeline_mode<synchronous>, transform_indices = @transform_2, window_bounds = array<i64: 24, 1>}, {pipeline_mode = #tpu.pipeline_mode<synchronous>, transform_indices = @transform_3, window_bounds = array<i64: 24, 1>}, {pipeline_mode = #tpu.pipeline_mode<synchronous>, transform_indices = @transform_4, window_bounds = array<i64: 16, 1>}, {pipeline_mode = #tpu.pipeline_mode<synchronous>, transform_indices = @transform_5, window_bounds = array<i64: 16, 1>}, {transform_indices = @transform_6, window_bounds = array<i64: 16, 128>}]} {
    %c0 = arith.constant 0 : index
    %c0_0 = arith.constant 0 : index
    %0 = vector.load %arg2[%c0, %c0_0] : memref<24x128xf32, #tpu.memory_space<vmem>>, vector<24x128xf32>
    %c0_1 = arith.constant 0 : index
    %c0_2 = arith.constant 0 : index
    %1 = vector.load %arg3[%c0_1, %c0_2] : memref<24x1xf32, #tpu.memory_space<vmem>>, vector<24x1xf32>
    %2 = vector.broadcast %1 : vector<24x1xf32> to vector<24x128xf32>
    %3 = arith.mulf %0, %2 : vector<24x128xf32>
    %c0_3 = arith.constant 0 : index
    %c0_4 = arith.constant 0 : index
    %4 = vector.load %arg4[%c0_3, %c0_4] : memref<24x1xf32, #tpu.memory_space<vmem>>, vector<24x1xf32>
    %5 = vector.broadcast %4 : vector<24x1xf32> to vector<24x128xf32>
    %6 = arith.addf %3, %5 : vector<24x128xf32>
    %cst = arith.constant 0.000000e+00 : f32
    %7 = vector.broadcast %cst : f32 to vector<24x128xf32>
    %8 = arith.maximumf %6, %7 : vector<24x128xf32>
    %c0_5 = arith.constant 0 : index
    %c0_6 = arith.constant 0 : index
    %9 = vector.load %arg1[%c0_5, %c0_6] : memref<16x24xf32, #tpu.memory_space<vmem>>, vector<16x24xf32>
    %10 = arith.truncf %9 : vector<16x24xf32> to vector<16x24xbf16>
    %11 = arith.truncf %8 : vector<24x128xf32> to vector<24x128xbf16>
    %cst_7 = arith.constant dense<0.000000e+00> : vector<16x128xf32>
    %12 = tpu.matmul %10, %11, %cst_7 {dimension_numbers = #tpu.dot_dimension_numbers<[1], [0], [0], [1], [0, 0, 1, 1], [], []>} : vector<16x24xbf16>, vector<24x128xbf16>, vector<16x128xf32> -> vector<16x128xf32>
    %c0_8 = arith.constant 0 : index
    %c0_9 = arith.constant 0 : index
    %13 = vector.load %arg5[%c0_8, %c0_9] : memref<16x1xf32, #tpu.memory_space<vmem>>, vector<16x1xf32>
    %14 = vector.broadcast %13 : vector<16x1xf32> to vector<16x128xf32>
    %15 = arith.mulf %12, %14 : vector<16x128xf32>
    %c0_10 = arith.constant 0 : index
    %c0_11 = arith.constant 0 : index
    %16 = vector.load %arg6[%c0_10, %c0_11] : memref<16x1xf32, #tpu.memory_space<vmem>>, vector<16x1xf32>
    %17 = vector.broadcast %16 : vector<16x1xf32> to vector<16x128xf32>
    %18 = arith.addf %15, %17 : vector<16x128xf32>
    %cst_12 = arith.constant 0.000000e+00 : f32
    %19 = vector.broadcast %cst_12 : f32 to vector<16x128xf32>
    %20 = arith.maximumf %18, %19 : vector<16x128xf32>
    %c0_13 = arith.constant 0 : index
    %c0_14 = arith.constant 0 : index
    %21 = vector.load %arg7[%c0_13, %c0_14] : memref<16x128xf32, #tpu.memory_space<vmem>>, vector<16x128xf32>
    tpu.vector_store %arg7[%c0_13, %c0_14], %20 {strides = array<i32>} : memref<16x128xf32, #tpu.memory_space<vmem>>, vector<16x128xf32>,
    return
  }
  func.func @transform_0(%arg0: i32) -> (i32, i32) {
    %c0_i32 = arith.constant 0 : i32
    %c0_i32_0 = arith.constant 0 : i32
    %c0_i32_1 = arith.constant 0 : i32
    return %c0_i32, %c0_i32_0 : i32, i32
  }
  func.func @transform_1(%arg0: i32) -> (i32, i32) {
    %c0_i32 = arith.constant 0 : i32
    %c0_i32_0 = arith.constant 0 : i32
    return %c0_i32, %arg0 : i32, i32
  }
  func.func @transform_2(%arg0: i32) -> (i32, i32) {
    %c0_i32 = arith.constant 0 : i32
    %c0_i32_0 = arith.constant 0 : i32
    %c0_i32_1 = arith.constant 0 : i32
    return %c0_i32, %c0_i32_0 : i32, i32
  }
  func.func @transform_3(%arg0: i32) -> (i32, i32) {
    %c0_i32 = arith.constant 0 : i32
    %c0_i32_0 = arith.constant 0 : i32
    %c0_i32_1 = arith.constant 0 : i32
    return %c0_i32, %c0_i32_0 : i32, i32
  }
  func.func @transform_4(%arg0: i32) -> (i32, i32) {
    %c0_i32 = arith.constant 0 : i32
    %c0_i32_0 = arith.constant 0 : i32
    %c0_i32_1 = arith.constant 0 : i32
    return %c0_i32, %c0_i32_0 : i32, i32
  }
  func.func @transform_5(%arg0: i32) -> (i32, i32) {
    %c0_i32 = arith.constant 0 : i32
    %c0_i32_0 = arith.constant 0 : i32
    %c0_i32_1 = arith.constant 0 : i32
    return %c0_i32, %c0_i32_0 : i32, i32
  }
  func.func @transform_6(%arg0: i32) -> (i32, i32) {
    %c0_i32 = arith.constant 0 : i32
    %c0_i32_0 = arith.constant 0 : i32
    return %c0_i32, %arg0 : i32, i32
  }
}

module attributes {stable_mosaic.version = 11 : i64} {
  func.func @kernel(%arg0: i32, %arg1: memref<16x32xf32, #tpu.memory_space<vmem>>, %arg2: memref<32x128xf32, #tpu.memory_space<vmem>>, %arg3: memref<32x1xf32, #tpu.memory_space<vmem>>, %arg4: memref<32x1xf32, #tpu.memory_space<vmem>>, %arg5: memref<16x128xf32, #tpu.memory_space<vmem>>) attributes {dimension_semantics = [#tpu.dimension_semantics<parallel>], iteration_bounds = array<i64: 1>, scalar_prefetch = 0 : i64, scratch_operands = 0 : i64, tpu.core_type = #tpu.core_type<tc>, window_params = [{pipeline_mode = #tpu.pipeline_mode<synchronous>, transform_indices = @transform_0, window_bounds = array<i64: 16, 32>}, {transform_indices = @transform_1, window_bounds = array<i64: 32, 128>}, {pipeline_mode = #tpu.pipeline_mode<synchronous>, transform_indices = @transform_2, window_bounds = array<i64: 32, 1>}, {pipeline_mode = #tpu.pipeline_mode<synchronous>, transform_indices = @transform_3, window_bounds = array<i64: 32, 1>}, {transform_indices = @transform_4, window_bounds = array<i64: 16, 128>}]} {
    %c0 = arith.constant 0 : index
    %c0_0 = arith.constant 0 : index
    %0 = vector.load %arg2[%c0, %c0_0] : memref<32x128xf32, #tpu.memory_space<vmem>>, vector<32x128xf32>
    %c0_1 = arith.constant 0 : index
    %c0_2 = arith.constant 0 : index
    %1 = vector.load %arg3[%c0_1, %c0_2] : memref<32x1xf32, #tpu.memory_space<vmem>>, vector<32x1xf32>
    %2 = vector.broadcast %1 : vector<32x1xf32> to vector<32x128xf32>
    %3 = arith.mulf %0, %2 : vector<32x128xf32>
    %c0_3 = arith.constant 0 : index
    %c0_4 = arith.constant 0 : index
    %4 = vector.load %arg4[%c0_3, %c0_4] : memref<32x1xf32, #tpu.memory_space<vmem>>, vector<32x1xf32>
    %5 = vector.broadcast %4 : vector<32x1xf32> to vector<32x128xf32>
    %6 = arith.addf %3, %5 : vector<32x128xf32>
    %cst = arith.constant 0.000000e+00 : f32
    %7 = vector.broadcast %cst : f32 to vector<32x128xf32>
    %8 = arith.maximumf %6, %7 : vector<32x128xf32>
    %c0_5 = arith.constant 0 : index
    %c0_6 = arith.constant 0 : index
    %9 = vector.load %arg1[%c0_5, %c0_6] : memref<16x32xf32, #tpu.memory_space<vmem>>, vector<16x32xf32>
    %10 = arith.truncf %9 : vector<16x32xf32> to vector<16x32xbf16>
    %11 = arith.truncf %8 : vector<32x128xf32> to vector<32x128xbf16>
    %cst_7 = arith.constant dense<0.000000e+00> : vector<16x128xf32>
    %12 = tpu.matmul %10, %11, %cst_7 {dimension_numbers = #tpu.dot_dimension_numbers<[1], [0], [0], [1], [0, 0, 1, 1], [], []>} : vector<16x32xbf16>, vector<32x128xbf16>, vector<16x128xf32> -> vector<16x128xf32>
    %c0_8 = arith.constant 0 : index
    %c0_9 = arith.constant 0 : index
    %13 = vector.load %arg5[%c0_8, %c0_9] : memref<16x128xf32, #tpu.memory_space<vmem>>, vector<16x128xf32>
    tpu.vector_store %arg5[%c0_8, %c0_9], %12 {strides = array<i32>} : memref<16x128xf32, #tpu.memory_space<vmem>>, vector<16x128xf32>,
    return
  }
  func.func @transform_0(%arg0: i32) -> (i32, i32) {
    %c0_i32 = arith.constant 0 : i32
    %c0_i32_0 = arith.constant 0 : i32
    %c0_i32_1 = arith.constant 0 : i32
    return %c0_i32, %c0_i32_0 : i32, i32
  }
  func.func @transform_1(%arg0: i32) -> (i32, i32) {
    %c0_i32 = arith.constant 0 : i32
    %c0_i32_0 = arith.constant 0 : i32
    return %c0_i32, %arg0 : i32, i32
  }
  func.func @transform_2(%arg0: i32) -> (i32, i32) {
    %c0_i32 = arith.constant 0 : i32
    %c0_i32_0 = arith.constant 0 : i32
    %c0_i32_1 = arith.constant 0 : i32
    return %c0_i32, %c0_i32_0 : i32, i32
  }
  func.func @transform_3(%arg0: i32) -> (i32, i32) {
    %c0_i32 = arith.constant 0 : i32
    %c0_i32_0 = arith.constant 0 : i32
    %c0_i32_1 = arith.constant 0 : i32
    return %c0_i32, %c0_i32_0 : i32, i32
  }
  func.func @transform_4(%arg0: i32) -> (i32, i32) {
    %c0_i32 = arith.constant 0 : i32
    %c0_i32_0 = arith.constant 0 : i32
    return %c0_i32, %arg0 : i32, i32
  }
}

module attributes {stable_mosaic.version = 11 : i64} {
  func.func @_avgpool_kernel(%arg0: memref<16x2x4x4xf32, #tpu.memory_space<vmem>>, %arg1: memref<16x2x4x4xf32, #tpu.memory_space<vmem>>, %arg2: memref<16x2x4x4xf32, #tpu.memory_space<vmem>>, %arg3: memref<16x2x4x4xf32, #tpu.memory_space<vmem>>, %arg4: memref<16x2x4x4xf32, #tpu.memory_space<vmem>>) attributes {dimension_semantics = [], scalar_prefetch = 0 : i64, scratch_operands = 0 : i64, tpu.core_type = #tpu.core_type<tc>} {
    %c0 = arith.constant 0 : index
    %c0_0 = arith.constant 0 : index
    %c0_1 = arith.constant 0 : index
    %c0_2 = arith.constant 0 : index
    %0 = vector.load %arg0[%c0, %c0_0, %c0_1, %c0_2] : memref<16x2x4x4xf32, #tpu.memory_space<vmem>>, vector<16x2x4x4xf32>
    %c0_3 = arith.constant 0 : index
    %c0_4 = arith.constant 0 : index
    %c0_5 = arith.constant 0 : index
    %c0_6 = arith.constant 0 : index
    %1 = vector.load %arg1[%c0_3, %c0_4, %c0_5, %c0_6] : memref<16x2x4x4xf32, #tpu.memory_space<vmem>>, vector<16x2x4x4xf32>
    %2 = arith.addf %0, %1 : vector<16x2x4x4xf32>
    %c0_7 = arith.constant 0 : index
    %c0_8 = arith.constant 0 : index
    %c0_9 = arith.constant 0 : index
    %c0_10 = arith.constant 0 : index
    %3 = vector.load %arg2[%c0_7, %c0_8, %c0_9, %c0_10] : memref<16x2x4x4xf32, #tpu.memory_space<vmem>>, vector<16x2x4x4xf32>
    %4 = arith.addf %2, %3 : vector<16x2x4x4xf32>
    %c0_11 = arith.constant 0 : index
    %c0_12 = arith.constant 0 : index
    %c0_13 = arith.constant 0 : index
    %c0_14 = arith.constant 0 : index
    %5 = vector.load %arg3[%c0_11, %c0_12, %c0_13, %c0_14] : memref<16x2x4x4xf32, #tpu.memory_space<vmem>>, vector<16x2x4x4xf32>
    %6 = arith.addf %4, %5 : vector<16x2x4x4xf32>
    %cst = arith.constant 2.500000e-01 : f32
    %7 = vector.broadcast %cst : f32 to vector<16x2x4x4xf32>
    %8 = arith.mulf %7, %6 : vector<16x2x4x4xf32>
    %c0_15 = arith.constant 0 : index
    %c0_16 = arith.constant 0 : index
    %c0_17 = arith.constant 0 : index
    %c0_18 = arith.constant 0 : index
    %9 = vector.load %arg4[%c0_15, %c0_16, %c0_17, %c0_18] : memref<16x2x4x4xf32, #tpu.memory_space<vmem>>, vector<16x2x4x4xf32>
    tpu.vector_store %arg4[%c0_15, %c0_16, %c0_17, %c0_18], %8 {strides = array<i32>} : memref<16x2x4x4xf32, #tpu.memory_space<vmem>>, vector<16x2x4x4xf32>,
    return
  }
}

module attributes {stable_mosaic.version = 11 : i64} {
  func.func @kernel(%arg0: i32, %arg1: memref<16x16xf32, #tpu.memory_space<vmem>>, %arg2: memref<16x32xf32, #tpu.memory_space<vmem>>, %arg3: memref<16x1xf32, #tpu.memory_space<vmem>>, %arg4: memref<16x1xf32, #tpu.memory_space<vmem>>, %arg5: memref<16x1xf32, #tpu.memory_space<vmem>>, %arg6: memref<16x1xf32, #tpu.memory_space<vmem>>, %arg7: memref<16x32xf32, #tpu.memory_space<vmem>>) attributes {dimension_semantics = [#tpu.dimension_semantics<parallel>], iteration_bounds = array<i64: 1>, scalar_prefetch = 0 : i64, scratch_operands = 0 : i64, tpu.core_type = #tpu.core_type<tc>, window_params = [{pipeline_mode = #tpu.pipeline_mode<synchronous>, transform_indices = @transform_0, window_bounds = array<i64: 16, 16>}, {transform_indices = @transform_1, window_bounds = array<i64: 16, 32>}, {pipeline_mode = #tpu.pipeline_mode<synchronous>, transform_indices = @transform_2, window_bounds = array<i64: 16, 1>}, {pipeline_mode = #tpu.pipeline_mode<synchronous>, transform_indices = @transform_3, window_bounds = array<i64: 16, 1>}, {pipeline_mode = #tpu.pipeline_mode<synchronous>, transform_indices = @transform_4, window_bounds = array<i64: 16, 1>}, {pipeline_mode = #tpu.pipeline_mode<synchronous>, transform_indices = @transform_5, window_bounds = array<i64: 16, 1>}, {transform_indices = @transform_6, window_bounds = array<i64: 16, 32>}]} {
    %c0 = arith.constant 0 : index
    %c0_0 = arith.constant 0 : index
    %0 = vector.load %arg2[%c0, %c0_0] : memref<16x32xf32, #tpu.memory_space<vmem>>, vector<16x32xf32>
    %c0_1 = arith.constant 0 : index
    %c0_2 = arith.constant 0 : index
    %1 = vector.load %arg3[%c0_1, %c0_2] : memref<16x1xf32, #tpu.memory_space<vmem>>, vector<16x1xf32>
    %2 = vector.broadcast %1 : vector<16x1xf32> to vector<16x32xf32>
    %3 = arith.mulf %0, %2 : vector<16x32xf32>
    %c0_3 = arith.constant 0 : index
    %c0_4 = arith.constant 0 : index
    %4 = vector.load %arg4[%c0_3, %c0_4] : memref<16x1xf32, #tpu.memory_space<vmem>>, vector<16x1xf32>
    %5 = vector.broadcast %4 : vector<16x1xf32> to vector<16x32xf32>
    %6 = arith.addf %3, %5 : vector<16x32xf32>
    %cst = arith.constant 0.000000e+00 : f32
    %7 = vector.broadcast %cst : f32 to vector<16x32xf32>
    %8 = arith.maximumf %6, %7 : vector<16x32xf32>
    %c0_5 = arith.constant 0 : index
    %c0_6 = arith.constant 0 : index
    %9 = vector.load %arg1[%c0_5, %c0_6] : memref<16x16xf32, #tpu.memory_space<vmem>>, vector<16x16xf32>
    %10 = arith.truncf %9 : vector<16x16xf32> to vector<16x16xbf16>
    %11 = arith.truncf %8 : vector<16x32xf32> to vector<16x32xbf16>
    %cst_7 = arith.constant dense<0.000000e+00> : vector<16x32xf32>
    %12 = tpu.matmul %10, %11, %cst_7 {dimension_numbers = #tpu.dot_dimension_numbers<[1], [0], [0], [1], [0, 0, 1, 1], [], []>} : vector<16x16xbf16>, vector<16x32xbf16>, vector<16x32xf32> -> vector<16x32xf32>
    %c0_8 = arith.constant 0 : index
    %c0_9 = arith.constant 0 : index
    %13 = vector.load %arg5[%c0_8, %c0_9] : memref<16x1xf32, #tpu.memory_space<vmem>>, vector<16x1xf32>
    %14 = vector.broadcast %13 : vector<16x1xf32> to vector<16x32xf32>
    %15 = arith.mulf %12, %14 : vector<16x32xf32>
    %c0_10 = arith.constant 0 : index
    %c0_11 = arith.constant 0 : index
    %16 = vector.load %arg6[%c0_10, %c0_11] : memref<16x1xf32, #tpu.memory_space<vmem>>, vector<16x1xf32>
    %17 = vector.broadcast %16 : vector<16x1xf32> to vector<16x32xf32>
    %18 = arith.addf %15, %17 : vector<16x32xf32>
    %cst_12 = arith.constant 0.000000e+00 : f32
    %19 = vector.broadcast %cst_12 : f32 to vector<16x32xf32>
    %20 = arith.maximumf %18, %19 : vector<16x32xf32>
    %c0_13 = arith.constant 0 : index
    %c0_14 = arith.constant 0 : index
    %21 = vector.load %arg7[%c0_13, %c0_14] : memref<16x32xf32, #tpu.memory_space<vmem>>, vector<16x32xf32>
    tpu.vector_store %arg7[%c0_13, %c0_14], %20 {strides = array<i32>} : memref<16x32xf32, #tpu.memory_space<vmem>>, vector<16x32xf32>,
    return
  }
  func.func @transform_0(%arg0: i32) -> (i32, i32) {
    %c0_i32 = arith.constant 0 : i32
    %c0_i32_0 = arith.constant 0 : i32
    %c0_i32_1 = arith.constant 0 : i32
    return %c0_i32, %c0_i32_0 : i32, i32
  }
  func.func @transform_1(%arg0: i32) -> (i32, i32) {
    %c0_i32 = arith.constant 0 : i32
    %c0_i32_0 = arith.constant 0 : i32
    return %c0_i32, %arg0 : i32, i32
  }
  func.func @transform_2(%arg0: i32) -> (i32, i32) {
    %c0_i32 = arith.constant 0 : i32
    %c0_i32_0 = arith.constant 0 : i32
    %c0_i32_1 = arith.constant 0 : i32
    return %c0_i32, %c0_i32_0 : i32, i32
  }
  func.func @transform_3(%arg0: i32) -> (i32, i32) {
    %c0_i32 = arith.constant 0 : i32
    %c0_i32_0 = arith.constant 0 : i32
    %c0_i32_1 = arith.constant 0 : i32
    return %c0_i32, %c0_i32_0 : i32, i32
  }
  func.func @transform_4(%arg0: i32) -> (i32, i32) {
    %c0_i32 = arith.constant 0 : i32
    %c0_i32_0 = arith.constant 0 : i32
    %c0_i32_1 = arith.constant 0 : i32
    return %c0_i32, %c0_i32_0 : i32, i32
  }
  func.func @transform_5(%arg0: i32) -> (i32, i32) {
    %c0_i32 = arith.constant 0 : i32
    %c0_i32_0 = arith.constant 0 : i32
    %c0_i32_1 = arith.constant 0 : i32
    return %c0_i32, %c0_i32_0 : i32, i32
  }
  func.func @transform_6(%arg0: i32) -> (i32, i32) {
    %c0_i32 = arith.constant 0 : i32
    %c0_i32_0 = arith.constant 0 : i32
    return %c0_i32, %arg0 : i32, i32
  }
}

module attributes {stable_mosaic.version = 11 : i64} {
  func.func @kernel(%arg0: i32, %arg1: memref<8x144xf32, #tpu.memory_space<vmem>>, %arg2: memref<144x32xf32, #tpu.memory_space<vmem>>, %arg3: memref<32x32xf32, #tpu.memory_space<any>>, %arg4: memref<8x32xf32, #tpu.memory_space<vmem>>) attributes {dimension_semantics = [#tpu.dimension_semantics<parallel>], iteration_bounds = array<i64: 1>, scalar_prefetch = 0 : i64, scratch_operands = 0 : i64, tpu.core_type = #tpu.core_type<tc>, window_params = [{pipeline_mode = #tpu.pipeline_mode<synchronous>, transform_indices = @transform_0, window_bounds = array<i64: 8, 144>}, {transform_indices = @transform_1, window_bounds = array<i64: 144, 32>}, {}, {transform_indices = @transform_3, window_bounds = array<i64: 8, 32>}]} {
    %c0 = arith.constant 0 : index
    %c0_0 = arith.constant 0 : index
    %0 = vector.load %arg2[%c0, %c0_0] : memref<144x32xf32, #tpu.memory_space<vmem>>, vector<144x32xf32>
    %c0_1 = arith.constant 0 : index
    %c0_2 = arith.constant 0 : index
    %1 = vector.load %arg1[%c0_1, %c0_2] : memref<8x144xf32, #tpu.memory_space<vmem>>, vector<8x144xf32>
    %2 = arith.truncf %1 : vector<8x144xf32> to vector<8x144xbf16>
    %3 = arith.truncf %0 : vector<144x32xf32> to vector<144x32xbf16>
    %cst = arith.constant dense<0.000000e+00> : vector<8x32xf32>
    %4 = tpu.matmul %2, %3, %cst {dimension_numbers = #tpu.dot_dimension_numbers<[1], [0], [0], [1], [0, 0, 1, 1], [], []>} : vector<8x144xbf16>, vector<144x32xbf16>, vector<8x32xf32> -> vector<8x32xf32>
    %c0_3 = arith.constant 0 : index
    %c0_4 = arith.constant 0 : index
    %5 = vector.load %arg4[%c0_3, %c0_4] : memref<8x32xf32, #tpu.memory_space<vmem>>, vector<8x32xf32>
    tpu.vector_store %arg4[%c0_3, %c0_4], %4 {strides = array<i32>} : memref<8x32xf32, #tpu.memory_space<vmem>>, vector<8x32xf32>,
    return
  }
  func.func @transform_0(%arg0: i32) -> (i32, i32) {
    %c0_i32 = arith.constant 0 : i32
    %c0_i32_0 = arith.constant 0 : i32
    %c0_i32_1 = arith.constant 0 : i32
    return %c0_i32, %c0_i32_0 : i32, i32
  }
  func.func @transform_1(%arg0: i32) -> (i32, i32) {
    %c0_i32 = arith.constant 0 : i32
    %c0_i32_0 = arith.constant 0 : i32
    return %c0_i32, %arg0 : i32, i32
  }
  func.func @transform_3(%arg0: i32) -> (i32, i32) {
    %c2_i32 = arith.constant 2 : i32
    %c0_i32 = arith.constant 0 : i32
    return %c2_i32, %arg0 : i32, i32
  }
}

module attributes {stable_mosaic.version = 11 : i64} {
  func.func @kernel(%arg0: i32, %arg1: memref<16x24xf32, #tpu.memory_space<vmem>>, %arg2: memref<24x32xf32, #tpu.memory_space<vmem>>, %arg3: memref<24x1xf32, #tpu.memory_space<vmem>>, %arg4: memref<24x1xf32, #tpu.memory_space<vmem>>, %arg5: memref<16x1xf32, #tpu.memory_space<vmem>>, %arg6: memref<16x1xf32, #tpu.memory_space<vmem>>, %arg7: memref<16x32xf32, #tpu.memory_space<vmem>>) attributes {dimension_semantics = [#tpu.dimension_semantics<parallel>], iteration_bounds = array<i64: 1>, scalar_prefetch = 0 : i64, scratch_operands = 0 : i64, tpu.core_type = #tpu.core_type<tc>, window_params = [{pipeline_mode = #tpu.pipeline_mode<synchronous>, transform_indices = @transform_0, window_bounds = array<i64: 16, 24>}, {transform_indices = @transform_1, window_bounds = array<i64: 24, 32>}, {pipeline_mode = #tpu.pipeline_mode<synchronous>, transform_indices = @transform_2, window_bounds = array<i64: 24, 1>}, {pipeline_mode = #tpu.pipeline_mode<synchronous>, transform_indices = @transform_3, window_bounds = array<i64: 24, 1>}, {pipeline_mode = #tpu.pipeline_mode<synchronous>, transform_indices = @transform_4, window_bounds = array<i64: 16, 1>}, {pipeline_mode = #tpu.pipeline_mode<synchronous>, transform_indices = @transform_5, window_bounds = array<i64: 16, 1>}, {transform_indices = @transform_6, window_bounds = array<i64: 16, 32>}]} {
    %c0 = arith.constant 0 : index
    %c0_0 = arith.constant 0 : index
    %0 = vector.load %arg2[%c0, %c0_0] : memref<24x32xf32, #tpu.memory_space<vmem>>, vector<24x32xf32>
    %c0_1 = arith.constant 0 : index
    %c0_2 = arith.constant 0 : index
    %1 = vector.load %arg3[%c0_1, %c0_2] : memref<24x1xf32, #tpu.memory_space<vmem>>, vector<24x1xf32>
    %2 = vector.broadcast %1 : vector<24x1xf32> to vector<24x32xf32>
    %3 = arith.mulf %0, %2 : vector<24x32xf32>
    %c0_3 = arith.constant 0 : index
    %c0_4 = arith.constant 0 : index
    %4 = vector.load %arg4[%c0_3, %c0_4] : memref<24x1xf32, #tpu.memory_space<vmem>>, vector<24x1xf32>
    %5 = vector.broadcast %4 : vector<24x1xf32> to vector<24x32xf32>
    %6 = arith.addf %3, %5 : vector<24x32xf32>
    %cst = arith.constant 0.000000e+00 : f32
    %7 = vector.broadcast %cst : f32 to vector<24x32xf32>
    %8 = arith.maximumf %6, %7 : vector<24x32xf32>
    %c0_5 = arith.constant 0 : index
    %c0_6 = arith.constant 0 : index
    %9 = vector.load %arg1[%c0_5, %c0_6] : memref<16x24xf32, #tpu.memory_space<vmem>>, vector<16x24xf32>
    %10 = arith.truncf %9 : vector<16x24xf32> to vector<16x24xbf16>
    %11 = arith.truncf %8 : vector<24x32xf32> to vector<24x32xbf16>
    %cst_7 = arith.constant dense<0.000000e+00> : vector<16x32xf32>
    %12 = tpu.matmul %10, %11, %cst_7 {dimension_numbers = #tpu.dot_dimension_numbers<[1], [0], [0], [1], [0, 0, 1, 1], [], []>} : vector<16x24xbf16>, vector<24x32xbf16>, vector<16x32xf32> -> vector<16x32xf32>
    %c0_8 = arith.constant 0 : index
    %c0_9 = arith.constant 0 : index
    %13 = vector.load %arg5[%c0_8, %c0_9] : memref<16x1xf32, #tpu.memory_space<vmem>>, vector<16x1xf32>
    %14 = vector.broadcast %13 : vector<16x1xf32> to vector<16x32xf32>
    %15 = arith.mulf %12, %14 : vector<16x32xf32>
    %c0_10 = arith.constant 0 : index
    %c0_11 = arith.constant 0 : index
    %16 = vector.load %arg6[%c0_10, %c0_11] : memref<16x1xf32, #tpu.memory_space<vmem>>, vector<16x1xf32>
    %17 = vector.broadcast %16 : vector<16x1xf32> to vector<16x32xf32>
    %18 = arith.addf %15, %17 : vector<16x32xf32>
    %cst_12 = arith.constant 0.000000e+00 : f32
    %19 = vector.broadcast %cst_12 : f32 to vector<16x32xf32>
    %20 = arith.maximumf %18, %19 : vector<16x32xf32>
    %c0_13 = arith.constant 0 : index
    %c0_14 = arith.constant 0 : index
    %21 = vector.load %arg7[%c0_13, %c0_14] : memref<16x32xf32, #tpu.memory_space<vmem>>, vector<16x32xf32>
    tpu.vector_store %arg7[%c0_13, %c0_14], %20 {strides = array<i32>} : memref<16x32xf32, #tpu.memory_space<vmem>>, vector<16x32xf32>,
    return
  }
  func.func @transform_0(%arg0: i32) -> (i32, i32) {
    %c0_i32 = arith.constant 0 : i32
    %c0_i32_0 = arith.constant 0 : i32
    %c0_i32_1 = arith.constant 0 : i32
    return %c0_i32, %c0_i32_0 : i32, i32
  }
  func.func @transform_1(%arg0: i32) -> (i32, i32) {
    %c0_i32 = arith.constant 0 : i32
    %c0_i32_0 = arith.constant 0 : i32
    return %c0_i32, %arg0 : i32, i32
  }
  func.func @transform_2(%arg0: i32) -> (i32, i32) {
    %c0_i32 = arith.constant 0 : i32
    %c0_i32_0 = arith.constant 0 : i32
    %c0_i32_1 = arith.constant 0 : i32
    return %c0_i32, %c0_i32_0 : i32, i32
  }
  func.func @transform_3(%arg0: i32) -> (i32, i32) {
    %c0_i32 = arith.constant 0 : i32
    %c0_i32_0 = arith.constant 0 : i32
    %c0_i32_1 = arith.constant 0 : i32
    return %c0_i32, %c0_i32_0 : i32, i32
  }
  func.func @transform_4(%arg0: i32) -> (i32, i32) {
    %c0_i32 = arith.constant 0 : i32
    %c0_i32_0 = arith.constant 0 : i32
    %c0_i32_1 = arith.constant 0 : i32
    return %c0_i32, %c0_i32_0 : i32, i32
  }
  func.func @transform_5(%arg0: i32) -> (i32, i32) {
    %c0_i32 = arith.constant 0 : i32
    %c0_i32_0 = arith.constant 0 : i32
    %c0_i32_1 = arith.constant 0 : i32
    return %c0_i32, %c0_i32_0 : i32, i32
  }
  func.func @transform_6(%arg0: i32) -> (i32, i32) {
    %c0_i32 = arith.constant 0 : i32
    %c0_i32_0 = arith.constant 0 : i32
    return %c0_i32, %arg0 : i32, i32
  }
}

module attributes {stable_mosaic.version = 11 : i64} {
  func.func @kernel(%arg0: i32, %arg1: memref<8x144xf32, #tpu.memory_space<vmem>>, %arg2: memref<144x32xf32, #tpu.memory_space<vmem>>, %arg3: memref<32x32xf32, #tpu.memory_space<any>>, %arg4: memref<8x32xf32, #tpu.memory_space<vmem>>) attributes {dimension_semantics = [#tpu.dimension_semantics<parallel>], iteration_bounds = array<i64: 1>, scalar_prefetch = 0 : i64, scratch_operands = 0 : i64, tpu.core_type = #tpu.core_type<tc>, window_params = [{pipeline_mode = #tpu.pipeline_mode<synchronous>, transform_indices = @transform_0, window_bounds = array<i64: 8, 144>}, {transform_indices = @transform_1, window_bounds = array<i64: 144, 32>}, {}, {transform_indices = @transform_3, window_bounds = array<i64: 8, 32>}]} {
    %c0 = arith.constant 0 : index
    %c0_0 = arith.constant 0 : index
    %0 = vector.load %arg2[%c0, %c0_0] : memref<144x32xf32, #tpu.memory_space<vmem>>, vector<144x32xf32>
    %c0_1 = arith.constant 0 : index
    %c0_2 = arith.constant 0 : index
    %1 = vector.load %arg1[%c0_1, %c0_2] : memref<8x144xf32, #tpu.memory_space<vmem>>, vector<8x144xf32>
    %2 = arith.truncf %1 : vector<8x144xf32> to vector<8x144xbf16>
    %3 = arith.truncf %0 : vector<144x32xf32> to vector<144x32xbf16>
    %cst = arith.constant dense<0.000000e+00> : vector<8x32xf32>
    %4 = tpu.matmul %2, %3, %cst {dimension_numbers = #tpu.dot_dimension_numbers<[1], [0], [0], [1], [0, 0, 1, 1], [], []>} : vector<8x144xbf16>, vector<144x32xbf16>, vector<8x32xf32> -> vector<8x32xf32>
    %c0_3 = arith.constant 0 : index
    %c0_4 = arith.constant 0 : index
    %5 = vector.load %arg4[%c0_3, %c0_4] : memref<8x32xf32, #tpu.memory_space<vmem>>, vector<8x32xf32>
    tpu.vector_store %arg4[%c0_3, %c0_4], %4 {strides = array<i32>} : memref<8x32xf32, #tpu.memory_space<vmem>>, vector<8x32xf32>,
    return
  }
  func.func @transform_0(%arg0: i32) -> (i32, i32) {
    %c0_i32 = arith.constant 0 : i32
    %c0_i32_0 = arith.constant 0 : i32
    %c0_i32_1 = arith.constant 0 : i32
    return %c0_i32, %c0_i32_0 : i32, i32
  }
  func.func @transform_1(%arg0: i32) -> (i32, i32) {
    %c0_i32 = arith.constant 0 : i32
    %c0_i32_0 = arith.constant 0 : i32
    return %c0_i32, %arg0 : i32, i32
  }
  func.func @transform_3(%arg0: i32) -> (i32, i32) {
    %c3_i32 = arith.constant 3 : i32
    %c0_i32 = arith.constant 0 : i32
    return %c3_i32, %arg0 : i32, i32
  }
}

module attributes {stable_mosaic.version = 11 : i64} {
  func.func @_head_kernel(%arg0: memref<32x2x16xf32, #tpu.memory_space<vmem>>, %arg1: memref<32x1x1xf32, #tpu.memory_space<vmem>>, %arg2: memref<32x1x1xf32, #tpu.memory_space<vmem>>, %arg3: memref<14x32xf32, #tpu.memory_space<vmem>>, %arg4: memref<14x1xf32, #tpu.memory_space<vmem>>, %arg5: memref<14x2xf32, #tpu.memory_space<vmem>>) attributes {dimension_semantics = [], scalar_prefetch = 0 : i64, scratch_operands = 0 : i64, tpu.core_type = #tpu.core_type<tc>} {
    %c0 = arith.constant 0 : index
    %c0_0 = arith.constant 0 : index
    %c0_1 = arith.constant 0 : index
    %0 = vector.load %arg0[%c0, %c0_0, %c0_1] : memref<32x2x16xf32, #tpu.memory_space<vmem>>, vector<32x2x16xf32>
    %c0_2 = arith.constant 0 : index
    %c0_3 = arith.constant 0 : index
    %c0_4 = arith.constant 0 : index
    %1 = vector.load %arg1[%c0_2, %c0_3, %c0_4] : memref<32x1x1xf32, #tpu.memory_space<vmem>>, vector<32x1x1xf32>
    %2 = vector.broadcast %1 : vector<32x1x1xf32> to vector<32x2x16xf32>
    %3 = arith.mulf %0, %2 : vector<32x2x16xf32>
    %c0_5 = arith.constant 0 : index
    %c0_6 = arith.constant 0 : index
    %c0_7 = arith.constant 0 : index
    %4 = vector.load %arg2[%c0_5, %c0_6, %c0_7] : memref<32x1x1xf32, #tpu.memory_space<vmem>>, vector<32x1x1xf32>
    %5 = vector.broadcast %4 : vector<32x1x1xf32> to vector<32x2x16xf32>
    %6 = arith.addf %3, %5 : vector<32x2x16xf32>
    %cst = arith.constant 0.000000e+00 : f32
    %7 = vector.broadcast %cst : f32 to vector<32x2x16xf32>
    %8 = arith.maximumf %6, %7 : vector<32x2x16xf32>
    %cst_8 = arith.constant dense<0.000000e+00> : vector<32x2xf32>
    %9 = vector.multi_reduction <add>, %8, %cst_8 [2] : vector<32x2x16xf32> to vector<32x2xf32>
    %cst_9 = arith.constant 1.600000e+01 : f32
    %10 = vector.broadcast %cst_9 : f32 to vector<32x2xf32>
    %11 = arith.divf %9, %10 : vector<32x2xf32>
    %c0_10 = arith.constant 0 : index
    %c0_11 = arith.constant 0 : index
    %12 = vector.load %arg3[%c0_10, %c0_11] : memref<14x32xf32, #tpu.memory_space<vmem>>, vector<14x32xf32>
    %cst_12 = arith.constant dense<0.000000e+00> : vector<14x2xf32>
    %13 = tpu.matmul %12, %11, %cst_12 {dimension_numbers = #tpu.dot_dimension_numbers<[1], [0], [0], [1], [0, 0, 1, 1], [], []>} : vector<14x32xf32>, vector<32x2xf32>, vector<14x2xf32> -> vector<14x2xf32>
    %c0_13 = arith.constant 0 : index
    %c0_14 = arith.constant 0 : index
    %14 = vector.load %arg4[%c0_13, %c0_14] : memref<14x1xf32, #tpu.memory_space<vmem>>, vector<14x1xf32>
    %15 = vector.broadcast %14 : vector<14x1xf32> to vector<14x2xf32>
    %16 = arith.addf %13, %15 : vector<14x2xf32>
    %17 = arith.negf %16 : vector<14x2xf32>
    %18 = math.exp %17 : vector<14x2xf32>
    %cst_15 = arith.constant 1.000000e+00 : f32
    %19 = vector.broadcast %cst_15 : f32 to vector<14x2xf32>
    %20 = arith.addf %19, %18 : vector<14x2xf32>
    %21 = arith.divf %19, %20 : vector<14x2xf32>
    %c0_16 = arith.constant 0 : index
    %c0_17 = arith.constant 0 : index
    %22 = vector.load %arg5[%c0_16, %c0_17] : memref<14x2xf32, #tpu.memory_space<vmem>>, vector<14x2xf32>
    tpu.vector_store %arg5[%c0_16, %c0_17], %21 {strides = array<i32>} : memref<14x2xf32, #tpu.memory_space<vmem>>, vector<14x2xf32>,
    return
  }
}

</mosaic_0001>

<llo_original>
// kernel: _lambda_.13
$region0: #{_lambda_.13}
  #allocation0 [shape = 'u32[]', space=smem, size = 0x4, offset = 0x4, fixed_abs, tag = 'smem constant byte address 0x4 - core index']
  #allocation1 [shape = 'u32[144,128]{1,0:T(1,128)}', space=vmem, size = 0x12000, scoped, tag = 'internal scratch']
  %s0 = inlined_call_operand.vmem [shape: f32[16,147], index: 0, kind: input, shape index: {}]
  %s1 = inlined_call_operand.vmem [shape: f32[147,512], index: 1, kind: input, shape index: {}]
  %s2 = inlined_call_operand.vmem [shape: f32[16,1], index: 2, kind: input, shape index: {}]
  %s3 = inlined_call_operand.vmem [shape: f32[16,1], index: 3, kind: input, shape index: {}]
  %s4 = inlined_call_operand.vmem [shape: f32[16,512], index: 4, kind: output, shape index: {}]
  %s5 = sld [smem:[#allocation0]]
  $region91: #{_lambda_.13} parent=0
    _
  %s7 = ssub.s32 1, %s5
  %s8 = scalar_select 0, %s7, %s5
  $region1: #{_lambda_.13} parent=0
    #allocation2 [shape = 'u8[311296]{0}', space=vmem, size = 0x4c000, scoped, tag = 'input window, operand 1']
    #allocation3 [shape = 'u8[32768]{0}', space=vmem, size = 0x8000, scoped, tag = 'output window, operand 0']
    loop: start=0, step=1, limit=4
    $region2: #{_lambda_.13} parent=1 // loop_pre_header
      _
    $region3: #{_lambda_.13} parent=1 // loop_header
      %s10 = sphi 0, %s14
      %p11 = scmp.ge.s32.totalorder %s10, 4
      %s18 = sphi 0, %s18
      %s20 = sphi 0, %s18
      %s21 = sphi 0, %s20
      %s35 = sphi 0, %s21
      %s41 = sphi 0, %s43
      %s44 = sphi 0, %s41
      %s45 = sphi 0, %s44
      %s61 = sphi 0, %s45
      %s65 = sphi 0, %s65
      %s67 = sphi 0, %s65
      %s68 = sphi 0, %s67
      %s82 = sphi 0, %s68
      %s86 = sphi 0, %s86
      %s88 = sphi 0, %s86
      %s89 = sphi 0, %s88
      %s103 = sphi 0, %s89
      %s109 = sphi 0, %s111
      %s112 = sphi 0, %s109
      %s113 = sphi 0, %s112
      %s129 = sphi 0, %s113
    $region4: #{_lambda_.13} parent=1 // loop_header_branch
      %13 = sbr.rel (%p11) target = $region8
    $region5: #{_lambda_.13} parent=1 // loop_body
      %s15 = ssub.s32 %s10, 1
      %s16 = ssub.s32 %s10, 2
      %s17 = sadd.s32 %s10, 1
      %s19 = sadd.s32 %s18, 1
      %p22 = scmp.eq.s32.totalorder %s10, 1
      %p23 = scmp.ne.s32.totalorder %s18, %s20
      %p24 = scmp.eq.s32.totalorder %s10, 0
      %p25 = por %p23, %p24
      %p26 = scmp.ne.s32.totalorder %s18, %s20
      %p27 = scmp.eq.s32.totalorder %s15, 1
      %p28 = por %p26, %p27
      %p29 = scmp.ne.s32.totalorder %s20, %s21
      %p30 = scmp.eq.s32.totalorder %s15, 0
      %p31 = por %p29, %p30
      %p32 = scmp.ne.s32.totalorder %s20, %s21
      %p33 = scmp.eq.s32.totalorder %s16, 1
      %p34 = por %p32, %p33
      %p36 = scmp.ne.s32.totalorder %s21, %s35
      %p37 = scmp.eq.s32.totalorder %s16, 0
      %p38 = por %p36, %p37
      %s39 = ssub.s32 %s10, %s17
      %p40 = scmp.eq.s32.totalorder %s39, 0
      %s42 = sadd.s32 %s41, 1
      %s43 = scalar_select %p40, %s41, %s42
      %p46 = pneg %p40
      %p47 = scmp.eq.s32.totalorder %s10, 1
      %p48 = por %p46, %p47
      %p49 = scmp.ne.s32.totalorder %s41, %s44
      %p50 = scmp.eq.s32.totalorder %s10, 0
      %p51 = por %p49, %p50
      %p52 = scmp.ne.s32.totalorder %s41, %s44
      %p53 = scmp.eq.s32.totalorder %s15, 1
      %p54 = por %p52, %p53
      %p55 = scmp.ne.s32.totalorder %s44, %s45
      %p56 = scmp.eq.s32.totalorder %s15, 0
      %p57 = por %p55, %p56
      %p58 = scmp.ne.s32.totalorder %s44, %s45
      %p59 = scmp.eq.s32.totalorder %s16, 1
      %p60 = por %p58, %p59
      %p62 = scmp.ne.s32.totalorder %s45, %s61
      %p63 = scmp.eq.s32.totalorder %s16, 0
      %p64 = por %p62, %p63
      %s66 = sadd.s32 %s65, 1
      %p69 = scmp.eq.s32.totalorder %s10, 1
      %p70 = scmp.ne.s32.totalorder %s65, %s67
      %p71 = scmp.eq.s32.totalorder %s10, 0
      %p72 = por %p70, %p71
      %p73 = scmp.ne.s32.totalorder %s65, %s67
      %p74 = scmp.eq.s32.totalorder %s15, 1
      %p75 = por %p73, %p74
      %p76 = scmp.ne.s32.totalorder %s67, %s68
      %p77 = scmp.eq.s32.totalorder %s15, 0
      %p78 = por %p76, %p77
      %p79 = scmp.ne.s32.totalorder %s67, %s68
      %p80 = scmp.eq.s32.totalorder %s16, 1
      %p81 = por %p79, %p80
      %p83 = scmp.ne.s32.totalorder %s68, %s82
      %p84 = scmp.eq.s32.totalorder %s16, 0
      %p85 = por %p83, %p84
      %s87 = sadd.s32 %s86, 1
      %p90 = scmp.eq.s32.totalorder %s10, 1
      %p91 = scmp.ne.s32.totalorder %s86, %s88
      %p92 = scmp.eq.s32.totalorder %s10, 0
      %p93 = por %p91, %p92
      %p94 = scmp.ne.s32.totalorder %s86, %s88
      %p95 = scmp.eq.s32.totalorder %s15, 1
      %p96 = por %p94, %p95
      %p97 = scmp.ne.s32.totalorder %s88, %s89
      %p98 = scmp.eq.s32.totalorder %s15, 0
      %p99 = por %p97, %p98
      %p100 = scmp.ne.s32.totalorder %s88, %s89
      %p101 = scmp.eq.s32.totalorder %s16, 1
      %p102 = por %p100, %p101
      %p104 = scmp.ne.s32.totalorder %s89, %s103
      %p105 = scmp.eq.s32.totalorder %s16, 0
      %p106 = por %p104, %p105
      %s107 = ssub.s32 %s10, %s17
      %p108 = scmp.eq.s32.totalorder %s107, 0
      %s110 = sadd.s32 %s109, 1
      %s111 = scalar_select %p108, %s109, %s110
      %p114 = pneg %p108
      %p115 = scmp.eq.s32.totalorder %s10, 1
      %p116 = por %p114, %p115
      %p117 = scmp.ne.s32.totalorder %s109, %s112
      %p118 = scmp.eq.s32.totalorder %s10, 0
      %p119 = por %p117, %p118
      %p120 = scmp.ne.s32.totalorder %s109, %s112
      %p121 = scmp.eq.s32.totalorder %s15, 1
      %p122 = por %p120, %p121
      %p123 = scmp.ne.s32.totalorder %s112, %s113
      %p124 = scmp.eq.s32.totalorder %s15, 0
      %p125 = por %p123, %p124
      %p126 = scmp.ne.s32.totalorder %s112, %s113
      %p127 = scmp.eq.s32.totalorder %s16, 1
      %p128 = por %p126, %p127
      %p130 = scmp.ne.s32.totalorder %s113, %s129
      %p131 = scmp.eq.s32.totalorder %s16, 0
      %p132 = por %p130, %p131
      %p133 = scmp.le.s32.totalorder 1, %s10
      %p134 = scmp.lt.s32.totalorder %s10, 3
      %p135 = pnand %p133, %p134
      %p136 = pneg %p135
      // Predicated region
      $region9: #{_lambda_.13} parent=5 // pred_check
        _
      $region10: #{_lambda_.13} parent=5 // pred_check_branch
        %138 = sbr.rel (%p135) target = $region12
      $region11: #{_lambda_.13} parent=5 // pred_region
        %s139 = ssub.s32 %s10, 1
        // Predicated region
        $region13: #{_lambda_.13} parent=11 // pred_check
          %p140 = pneg %p31
        $region14: #{_lambda_.13} parent=11 // pred_check_branch
          %142 = sbr.rel (%p140) target = $region16
        $region15: #{_lambda_.13} parent=11 // pred_region
          _
        $region16: #{_lambda_.13} parent=11 // pred_fallthru
          _
        // Predicated region
        $region17: #{_lambda_.13} parent=11 // pred_check
          %p143 = pneg %p78
        $region18: #{_lambda_.13} parent=11 // pred_check_branch
          %145 = sbr.rel (%p143) target = $region20
        $region19: #{_lambda_.13} parent=11 // pred_region
          _
        $region20: #{_lambda_.13} parent=11 // pred_fallthru
          _
        // Predicated region
        $region21: #{_lambda_.13} parent=11 // pred_check
          %p146 = pneg %p99
        $region22: #{_lambda_.13} parent=11 // pred_check_branch
          %148 = sbr.rel (%p146) target = $region24
        $region23: #{_lambda_.13} parent=11 // pred_region
          _
        $region24: #{_lambda_.13} parent=11 // pred_fallthru
          _
      $region12: #{_lambda_.13} parent=5 // pred_fallthru
        _
      %p149 = scmp.lt.s32.totalorder %s10, 2
      // Predicated region
      $region25: #{_lambda_.13} parent=5 // pred_check
        %p150 = pneg %p149
      $region26: #{_lambda_.13} parent=5 // pred_check_branch
        %152 = sbr.rel (%p150) target = $region28
      $region27: #{_lambda_.13} parent=5 // pred_region
        // Predicated region
        $region29: #{_lambda_.13} parent=27 // pred_check
          %p153 = pneg %p51
        $region30: #{_lambda_.13} parent=27 // pred_check_branch
          %155 = sbr.rel (%p153) target = $region32
        $region31: #{_lambda_.13} parent=27 // pred_region
          %s156 = sand.u32 %s41, 1
          %s157 = sand.u32 %s41, 1
          %s158 = smul.addr %s157, 304
          %s159 = scalar_lea.vmem [#allocation2], %s158
          %s160 = smul.u32 2, %s10
          %s161 = smul.addr %s160, 8
          %s162 = scalar_lea.vmem %s1, %s161
          // Predicated region
          $region33: #{_lambda_.13} parent=31 // pred_check
            _
          $region34: #{_lambda_.13} parent=31 // pred_check_branch
            %164 = sbr.rel (0) target = $region36
          $region35: #{_lambda_.13} parent=31 // pred_region
            // Predicated region
            $region37: #{_lambda_.13} parent=35 // pred_check
              _
            $region38: #{_lambda_.13} parent=35 // pred_check_branch
              %166 = sbr.rel (0) target = $region40
            $region39: #{_lambda_.13} parent=35 // pred_region
              loop: start=0, step=1, limit=1
              $region41: #{_lambda_.13} parent=39 // loop_pre_header
                _
              $region42: #{_lambda_.13} parent=39 // loop_header
                %s168 = sphi 0, %s172
                %p169 = scmp.ge.s32.totalorder %s168, 1
                %s173 = sphi %s162, %s162
                %s174 = sphi %s159, %s159
              $region43: #{_lambda_.13} parent=39 // loop_header_branch
                %171 = sbr.rel (%p169) target = $region47
              $region44: #{_lambda_.13} parent=39 // loop_body
                %v175 = vld [vmem:[%s173] sm:$0xff]
                %176 = vst [vmem:[%s174] sm:$0xff] %v175
                %v177 = vld [vmem:[%s173 + $0x8] sm:$0xff]
                %178 = vst [vmem:[%s174 + $0x8] sm:$0xff] %v177
                %v179 = vld [vmem:[%s173 + $0x20] sm:$0xff]
                %180 = vst [vmem:[%s174 + $0x10] sm:$0xff] %v179
                %v181 = vld [vmem:[%s173 + $0x28] sm:$0xff]
                %182 = vst [vmem:[%s174 + $0x18] sm:$0xff] %v181
                %v183 = vld [vmem:[%s173 + $0x40] sm:$0xff]
                %184 = vst [vmem:[%s174 + $0x20] sm:$0xff] %v183
                %v185 = vld [vmem:[%s173 + $0x48] sm:$0xff]
                %186 = vst [vmem:[%s174 + $0x28] sm:$0xff] %v185
                %v187 = vld [vmem:[%s173 + $0x60] sm:$0xff]
                %188 = vst [vmem:[%s174 + $0x30] sm:$0xff] %v187
                %v189 = vld [vmem:[%s173 + $0x68] sm:$0xff]
                %190 = vst [vmem:[%s174 + $0x38] sm:$0xff] %v189
                %v191 = vld [vmem:[%s173 + $0x80] sm:$0xff]
                %192 = vst [vmem:[%s174 + $0x40] sm:$0xff] %v191
                %v193 = vld [vmem:[%s173 + $0x88] sm:$0xff]
                %194 = vst [vmem:[%s174 + $0x48] sm:$0xff] %v193
                %v195 = vld [vmem:[%s173 + $0xa0] sm:$0xff]
                %196 = vst [vmem:[%s174 + $0x50] sm:$0xff] %v195
                %v197 = vld [vmem:[%s173 + $0xa8] sm:$0xff]
                %198 = vst [vmem:[%s174 + $0x58] sm:$0xff] %v197
                %v199 = vld [vmem:[%s173 + $0xc0] sm:$0xff]
                %200 = vst [vmem:[%s174 + $0x60] sm:$0xff] %v199
                %v201 = vld [vmem:[%s173 + $0xc8] sm:$0xff]
                %202 = vst [vmem:[%s174 + $0x68] sm:$0xff] %v201
                %v203 = vld [vmem:[%s173 + $0xe0] sm:$0xff]
                %204 = vst [vmem:[%s174 + $0x70] sm:$0xff] %v203
                %v205 = vld [vmem:[%s173 + $0xe8] sm:$0xff]
                %206 = vst [vmem:[%s174 + $0x78] sm:$0xff] %v205
                %v207 = vld [vmem:[%s173 + $0x100] sm:$0xff]
                %208 = vst [vmem:[%s174 + $0x80] sm:$0xff] %v207
                %v209 = vld [vmem:[%s173 + $0x108] sm:$0xff]
                %210 = vst [vmem:[%s174 + $0x88] sm:$0xff] %v209
                %v211 = vld [vmem:[%s173 + $0x120] sm:$0xff]
                %212 = vst [vmem:[%s174 + $0x90] sm:$0xff] %v211
                %v213 = vld [vmem:[%s173 + $0x128] sm:$0xff]
                %214 = vst [vmem:[%s174 + $0x98] sm:$0xff] %v213
                %v215 = vld [vmem:[%s173 + $0x140] sm:$0xff]
                %216 = vst [vmem:[%s174 + $0xa0] sm:$0xff] %v215
                %v217 = vld [vmem:[%s173 + $0x148] sm:$0xff]
                %218 = vst [vmem:[%s174 + $0xa8] sm:$0xff] %v217
                %v219 = vld [vmem:[%s173 + $0x160] sm:$0xff]
                %220 = vst [vmem:[%s174 + $0xb0] sm:$0xff] %v219
                %v221 = vld [vmem:[%s173 + $0x168] sm:$0xff]
                %222 = vst [vmem:[%s174 + $0xb8] sm:$0xff] %v221
                %v223 = vld [vmem:[%s173 + $0x180] sm:$0xff]
                %224 = vst [vmem:[%s174 + $0xc0] sm:$0xff] %v223
                %v225 = vld [vmem:[%s173 + $0x188] sm:$0xff]
                %226 = vst [vmem:[%s174 + $0xc8] sm:$0xff] %v225
                %v227 = vld [vmem:[%s173 + $0x1a0] sm:$0xff]
                %228 = vst [vmem:[%s174 + $0xd0] sm:$0xff] %v227
                %v229 = vld [vmem:[%s173 + $0x1a8] sm:$0xff]
                %230 = vst [vmem:[%s174 + $0xd8] sm:$0xff] %v229
                %v231 = vld [vmem:[%s173 + $0x1c0] sm:$0xff]
                %232 = vst [vmem:[%s174 + $0xe0] sm:$0xff] %v231
                %v233 = vld [vmem:[%s173 + $0x1c8] sm:$0xff]
                %234 = vst [vmem:[%s174 + $0xe8] sm:$0xff] %v233
                %v235 = vld [vmem:[%s173 + $0x1e0] sm:$0xff]
                %236 = vst [vmem:[%s174 + $0xf0] sm:$0xff] %v235
                %v237 = vld [vmem:[%s173 + $0x1e8] sm:$0xff]
                %238 = vst [vmem:[%s174 + $0xf8] sm:$0xff] %v237
                %v239 = vld [vmem:[%s173 + $0x200] sm:$0xff]
                %240 = vst [vmem:[%s174 + $0x100] sm:$0xff] %v239
                %v241 = vld [vmem:[%s173 + $0x208] sm:$0xff]
                %242 = vst [vmem:[%s174 + $0x108] sm:$0xff] %v241
                %v243 = vld [vmem:[%s173 + $0x220] sm:$0xff]
                %244 = vst [vmem:[%s174 + $0x110] sm:$0xff] %v243
                %v245 = vld [vmem:[%s173 + $0x228] sm:$0xff]
                %246 = vst [vmem:[%s174 + $0x118] sm:$0xff] %v245
                %v247 = vld [vmem:[%s173 + $0x240] sm:$0xff]
                %248 = vst [vmem:[%s174 + $0x120] sm:$0xff] %v247
                %v249 = vld [vmem:[%s173 + $0x248] sm:$0xff]
                %250 = vst [vmem:[%s174 + $0x128] sm:$0xff] %v249
              $region45: #{_lambda_.13} parent=39 // loop_footer
                %s172 = sadd.s32 1, %s168
              $region46: #{_lambda_.13} parent=39 // loop_footer_branch
                %167 = sbr.rel target = $region42
              $region47: #{_lambda_.13} parent=39 // loop_exit
                _
            $region40: #{_lambda_.13} parent=35 // pred_fallthru
              _
            // Predicated region
            $region48: #{_lambda_.13} parent=35 // pred_check
              _
            $region49: #{_lambda_.13} parent=35 // pred_check_branch
              %252 = sbr.rel target = $region51
            $region50: #{_lambda_.13} parent=35 // pred_region
              _
            $region51: #{_lambda_.13} parent=35 // pred_fallthru
              _
          $region36: #{_lambda_.13} parent=31 // pred_fallthru
            _
          %253 = vnop
        $region32: #{_lambda_.13} parent=27 // pred_fallthru
          _
      $region28: #{_lambda_.13} parent=5 // pred_fallthru
        _
      %p254 = scmp.le.s32.totalorder 1, %s10
      %p255 = scmp.lt.s32.totalorder %s10, 3
      %p256 = pnand %p254, %p255
      %p257 = pneg %p256
      // Predicated region
      $region52: #{_lambda_.13} parent=5 // pred_check
        _
      $region53: #{_lambda_.13} parent=5 // pred_check_branch
        %259 = sbr.rel (%p256) target = $region55
      $region54: #{_lambda_.13} parent=5 // pred_region
        %s260 = ssub.s32 %s10, 1
        %s261 = sand.u32 %s44, 1
        %s262 = sand.u32 %s44, 1
        %s263 = smul.addr %s262, 304
        %s264 = scalar_lea.vmem [#allocation2], %s263
        // Predicated region
        $region56: #{_lambda_.13} parent=54 // pred_check
          %p265 = pneg %p57
        $region57: #{_lambda_.13} parent=54 // pred_check_branch
          %267 = sbr.rel (%p265) target = $region59
        $region58: #{_lambda_.13} parent=54 // pred_region
          _
        $region59: #{_lambda_.13} parent=54 // pred_fallthru
          _
        %p268 = pneg %p31
        %p269 = pneg %p28
        %s270 = sand.u32 %s44, 1
        %s271 = sand.u32 %s44, 1
        %s272 = smul.addr %s271, 304
        %s273 = scalar_lea.vmem [#allocation2], %s272
        %p274 = pneg %p57
        %p275 = pneg %p54
        %p276 = pneg %p78
        %p277 = pneg %p75
        %p278 = pneg %p99
        %p279 = pneg %p96
        %p280 = pneg %p125
        %p281 = pneg %p122
        %s282 = sand.u32 %s112, 1
        %s283 = sand.u32 %s112, 1
        %s284 = smul.addr %s283, 32
        %s285 = scalar_lea.vmem [#allocation3], %s284
        %s286 = smul.u32 2, %s15
        %s287 = smul.u32 2, %s15
        %v289 = vld [vmem:[%s264] sm:$0xff]
        %v290 = vld [vmem:[%s264 + $0x8] sm:$0xff]
        %v291 = vld [vmem:[%s264 + $0x10] sm:$0xff]
        %v292 = vld [vmem:[%s264 + $0x18] sm:$0xff]
        %v293 = vld [vmem:[%s264 + $0x20] sm:$0xff]
        %v294 = vld [vmem:[%s264 + $0x28] sm:$0xff]
        %v295 = vld [vmem:[%s264 + $0x30] sm:$0xff]
        %v296 = vld [vmem:[%s264 + $0x38] sm:$0xff]
        %v297 = vld [vmem:[%s264 + $0x40] sm:$0xff]
        %v298 = vld [vmem:[%s264 + $0x48] sm:$0xff]
        %v299 = vld [vmem:[%s264 + $0x50] sm:$0xff]
        %v300 = vld [vmem:[%s264 + $0x58] sm:$0xff]
        %v301 = vld [vmem:[%s264 + $0x60] sm:$0xff]
        %v302 = vld [vmem:[%s264 + $0x68] sm:$0xff]
        %v303 = vld [vmem:[%s264 + $0x70] sm:$0xff]
        %v304 = vld [vmem:[%s264 + $0x78] sm:$0xff]
        %v305 = vld [vmem:[%s264 + $0x80] sm:$0xff]
        %v306 = vld [vmem:[%s264 + $0x88] sm:$0xff]
        %v307 = vld [vmem:[%s264 + $0x90] sm:$0xff]
        %v308 = vld [vmem:[%s264 + $0x98] sm:$0xff]
        %v309 = vld [vmem:[%s264 + $0xa0] sm:$0xff]
        %v310 = vld [vmem:[%s264 + $0xa8] sm:$0xff]
        %v311 = vld [vmem:[%s264 + $0xb0] sm:$0xff]
        %v312 = vld [vmem:[%s264 + $0xb8] sm:$0xff]
        %v313 = vld [vmem:[%s264 + $0xc0] sm:$0xff]
        %v314 = vld [vmem:[%s264 + $0xc8] sm:$0xff]
        %v315 = vld [vmem:[%s264 + $0xd0] sm:$0xff]
        %v316 = vld [vmem:[%s264 + $0xd8] sm:$0xff]
        %v317 = vld [vmem:[%s264 + $0xe0] sm:$0xff]
        %v318 = vld [vmem:[%s264 + $0xe8] sm:$0xff]
        %v319 = vld [vmem:[%s264 + $0xf0] sm:$0xff]
        %v320 = vld [vmem:[%s264 + $0xf8] sm:$0xff]
        %v321 = vld [vmem:[%s264 + $0x100] sm:$0xff]
        %v322 = vld [vmem:[%s264 + $0x108] sm:$0xff]
        %v323 = vld [vmem:[%s264 + $0x110] sm:$0xff]
        %v324 = vld [vmem:[%s264 + $0x118] sm:$0xff]
        %v325 = vld [vmem:[%s264 + $0x120] sm:$0x7]
        %v326 = vld [vmem:[%s264 + $0x128] sm:$0x7]
        %v327 = vld [vmem:[%s0] sm:$0xff]
        %v328 = vld [vmem:[%s0 + $0x8] sm:$0xff]
        %v329 = vld [vmem:[%s0 + $0x10] sm:$0xff]
        %v330 = vld [vmem:[%s0 + $0x18] sm:$0xff]
        %v331 = vpack.c.bf16 %v329, %v327
        %v332 = vpack.c.bf16 %v330, %v328
        %v333 = vpack.c.bf16 %v291, %v289
        %v334 = vpack.c.bf16 %v292, %v290
        %v335 = vpack.c.bf16 %v295, %v293
        %v336 = vpack.c.bf16 %v296, %v294
        %v337 = vpack.c.bf16 %v299, %v297
        %v338 = vpack.c.bf16 %v300, %v298
        %v339 = vpack.c.bf16 %v303, %v301
        %v340 = vpack.c.bf16 %v304, %v302
        %v341 = vpack.c.bf16 %v307, %v305
        %v342 = vpack.c.bf16 %v308, %v306
        %v343 = vpack.c.bf16 %v311, %v309
        %v344 = vpack.c.bf16 %v312, %v310
        %v345 = vpack.c.bf16 %v315, %v313
        %v346 = vpack.c.bf16 %v316, %v314
        %v347 = vpack.c.bf16 %v319, %v317
        %v348 = vpack.c.bf16 %v320, %v318
        %v349 = vpack.c.bf16 %v323, %v321
        %v350 = vpack.c.bf16 %v324, %v322
        %v351 = vpack.c.bf16 %v325, %v325
        %v352 = vpack.c.bf16 %v326, %v326
        %vm353 = vcmask 154624
        %v355 = vsel %vm353, %v332, 0
        %vm357 = vcmask 1040384
        %vm358 = vcmask 1041408
        %v359 = vsel %vm357, 4294967295, 65535
        %v360 = vsel %vm358, %v359, 0
        %v362 = vand.u32 %v351, %v360
        %v365 = vand.u32 %v352, %v360
        %367 = vmatprep.subr.bf16.mxu0 %v334
        %368 = vmatpush1.bf16.msra.mxu0 %v333
        %369 = vmatprep.subr.bf16.mxu0 %v336
        %370 = vmatpush1.bf16.msra.mxu0 %v335
        %371 = vmatprep.subr.bf16.mxu0 %v338
        %372 = vmatpush1.bf16.msra.mxu0 %v337
        %373 = vmatprep.subr.bf16.mxu0 %v340
        %374 = vmatpush1.bf16.msra.mxu0 %v339
        %375 = vmatprep.subr.bf16.mxu0 %v342
        %376 = vmatpush1.bf16.msra.mxu0 %v341
        %377 = vmatprep.subr.bf16.mxu0 %v344
        %378 = vmatpush1.bf16.msra.mxu0 %v343
        %379 = vmatprep.subr.bf16.mxu0 %v346
        %380 = vmatpush1.bf16.msra.mxu0 %v345
        %381 = vmatprep.subr.bf16.mxu0 %v348
        %382 = vmatpush1.bf16.msra.mxu0 %v347
        %383 = vmatprep.subr.bf16.mxu0 %v350
        %384 = vmatpush1.bf16.msra.mxu0 %v349
        %385 = vmatprep.subr.bf16.mxu0 %v365
        %386 = vmatpush1.bf16.msra.mxu0 %v362
        %387 = vmatprep.subr.bf16.mxu0 0
        %388 = vmatpush1.bf16.msra.mxu0 0
        %389 = vmatprep.subr.bf16.mxu0 0
        %390 = vmatpush1.bf16.msra.mxu0 0
        %391 = vmatprep.subr.bf16.mxu0 0
        %392 = vmatpush1.bf16.msra.mxu0 0
        %393 = vmatprep.subr.bf16.mxu0 0
        %394 = vmatpush1.bf16.msra.mxu0 0
        %395 = vmatprep.subr.bf16.mxu0 0
        %396 = vmatpush1.bf16.msra.mxu0 0
        %397 = vmatprep.subr.bf16.mxu0 0
        %398 = vmatpush1.bf16.msra.mxu0 0
        %399 = vmatprep.mubr.bf16.mxu0 %v355
        %400 = vmatmul.mubr.bf16.gmra.mrb[0].mxu0 %v331
        %v401 = vpop.f32.mrb[0].mxu0
        %v402 = vadd.f32 0.0, %v401
        %v403 = vpop.f32.mrb[0].mxu0
        %v404 = vadd.f32 0.0, %v403
        %v405 = vpop.f32.mrb[0].mxu0
        %v406 = vadd.f32 0.0, %v405
        %v407 = vpop.f32.mrb[0].mxu0
        %v408 = vadd.f32 0.0, %v407
        %409 = vdwg.mxu0
        %v410 = vld [vmem:[%s2] sm:$0xff]
        %v411 = vld [vmem:[%s2 + $0x8] sm:$0xff]
        %413 = vset.pattern.permute.xlu0 0
        %414 = vperm.xlu0 %413, %v410
        %v415 = vpop.permute.xlu0 %414
        %418 = vset.pattern.permute.xlu0 0
        %419 = vperm.xlu0 %418, %v411
        %v420 = vpop.permute.xlu0 %419
        %v422 = vmul.f32 %v402, %v415
        %v423 = vmul.f32 %v404, %v415
        %v424 = vmul.f32 %v406, %v420
        %v425 = vmul.f32 %v408, %v420
        %v426 = vld [vmem:[%s3] sm:$0xff]
        %v427 = vld [vmem:[%s3 + $0x8] sm:$0xff]
        %429 = vset.pattern.permute.xlu0 0
        %430 = vperm.xlu0 %429, %v426
        %v431 = vpop.permute.xlu0 %430
        %434 = vset.pattern.permute.xlu0 0
        %435 = vperm.xlu0 %434, %v427
        %v436 = vpop.permute.xlu0 %435
        %v438 = vadd.f32 %v422, %v431
        %v439 = vadd.f32 %v423, %v431
        %v440 = vadd.f32 %v424, %v436
        %v441 = vadd.f32 %v425, %v436
        %v442 = vmax.f32 %v438, 0.0
        %v443 = vmax.f32 %v439, 0.0
        %v444 = vmax.f32 %v440, 0.0
        %v445 = vmax.f32 %v441, 0.0
        %446 = vst [vmem:[%s285] sm:$0xff] %v442
        %447 = vst [vmem:[%s285 + $0x8] sm:$0xff] %v443
        %448 = vst [vmem:[%s285 + $0x10] sm:$0xff] %v444
        %449 = vst [vmem:[%s285 + $0x18] sm:$0xff] %v445
        %s450 = sand.u32 %s112, 1
        %s451 = sand.u32 %s112, 1
        %s452 = smul.addr %s451, 32
        %s453 = scalar_lea.vmem [#allocation3], %s452
        // Predicated region
        $region60: #{_lambda_.13} parent=54 // pred_check
          %p454 = pneg %p122
        $region61: #{_lambda_.13} parent=54 // pred_check_branch
          %456 = sbr.rel (%p454) target = $region63
        $region62: #{_lambda_.13} parent=54 // pred_region
          %s457 = smul.u32 2, %s15
          %s458 = smul.addr %s457, 8
          %s459 = scalar_lea.vmem %s4, %s458
          // Predicated region
          $region64: #{_lambda_.13} parent=62 // pred_check
            _
          $region65: #{_lambda_.13} parent=62 // pred_check_branch
            %461 = sbr.rel (0) target = $region67
          $region66: #{_lambda_.13} parent=62 // pred_region
            // Predicated region
            $region68: #{_lambda_.13} parent=66 // pred_check
              _
            $region69: #{_lambda_.13} parent=66 // pred_check_branch
              %463 = sbr.rel (0) target = $region71
            $region70: #{_lambda_.13} parent=66 // pred_region
              loop: start=0, step=1, limit=1
              $region72: #{_lambda_.13} parent=70 // loop_pre_header
                _
              $region73: #{_lambda_.13} parent=70 // loop_header
                %s465 = sphi 0, %s469
                %p466 = scmp.ge.s32.totalorder %s465, 1
                %s470 = sphi %s453, %s453
                %s471 = sphi %s459, %s459
              $region74: #{_lambda_.13} parent=70 // loop_header_branch
                %468 = sbr.rel (%p466) target = $region78
              $region75: #{_lambda_.13} parent=70 // loop_body
                %v472 = vld [vmem:[%s470] sm:$0xff]
                %473 = vst [vmem:[%s471] sm:$0xff] %v472
                %v474 = vld [vmem:[%s470 + $0x8] sm:$0xff]
                %475 = vst [vmem:[%s471 + $0x8] sm:$0xff] %v474
                %v476 = vld [vmem:[%s470 + $0x10] sm:$0xff]
                %477 = vst [vmem:[%s471 + $0x20] sm:$0xff] %v476
                %v478 = vld [vmem:[%s470 + $0x18] sm:$0xff]
                %479 = vst [vmem:[%s471 + $0x28] sm:$0xff] %v478
              $region76: #{_lambda_.13} parent=70 // loop_footer
                %s469 = sadd.s32 1, %s465
              $region77: #{_lambda_.13} parent=70 // loop_footer_branch
                %464 = sbr.rel target = $region73
              $region78: #{_lambda_.13} parent=70 // loop_exit
                _
            $region71: #{_lambda_.13} parent=66 // pred_fallthru
              _
            // Predicated region
            $region79: #{_lambda_.13} parent=66 // pred_check
              _
            $region80: #{_lambda_.13} parent=66 // pred_check_branch
              %481 = sbr.rel target = $region82
            $region81: #{_lambda_.13} parent=66 // pred_region
              _
            $region82: #{_lambda_.13} parent=66 // pred_fallthru
              _
          $region67: #{_lambda_.13} parent=62 // pred_fallthru
            _
          %482 = vnop
        $region63: #{_lambda_.13} parent=54 // pred_fallthru
          _
      $region55: #{_lambda_.13} parent=5 // pred_fallthru
        _
      %p483 = scmp.le.s32.totalorder 2, %s10
      // Predicated region
      $region83: #{_lambda_.13} parent=5 // pred_check
        %p484 = pneg %p483
      $region84: #{_lambda_.13} parent=5 // pred_check_branch
        %486 = sbr.rel (%p484) target = $region86
      $region85: #{_lambda_.13} parent=5 // pred_region
        %s487 = ssub.s32 %s10, 2
        // Predicated region
        $region87: #{_lambda_.13} parent=85 // pred_check
          %p488 = pneg %p128
        $region88: #{_lambda_.13} parent=85 // pred_check_branch
          %490 = sbr.rel (%p488) target = $region90
        $region89: #{_lambda_.13} parent=85 // pred_region
          %s491 = sand.u32 %s113, 1
          %s492 = sand.u32 %s113, 1
          %s493 = smul.addr %s492, 32
          %s494 = scalar_lea.vmem [#allocation3], %s493
        $region90: #{_lambda_.13} parent=85 // pred_fallthru
          _
      $region86: #{_lambda_.13} parent=5 // pred_fallthru
        _
    $region6: #{_lambda_.13} parent=1 // loop_footer
      %s14 = sadd.s32 1, %s10
    $region7: #{_lambda_.13} parent=1 // loop_footer_branch
      %9 = sbr.rel target = $region3
    $region8: #{_lambda_.13} parent=1 // loop_exit
      _

// kernel: _lambda_.15
$region0: #{_lambda_.15}
  #allocation0 [shape = 'u32[]', space=smem, size = 0x4, offset = 0x4, fixed_abs, tag = 'smem constant byte address 0x4 - core index']
  #allocation1 [shape = 'u32[144,128]{1,0:T(1,128)}', space=vmem, size = 0x12000, scoped, tag = 'internal scratch']
  %s0 = inlined_call_operand.vmem [shape: f32[16,16], index: 0, kind: input, shape index: {}]
  %s1 = inlined_call_operand.vmem [shape: f32[32,128], index: 1, kind: input, shape index: {}]
  %s2 = inlined_call_operand.vmem [shape: f32[16,1], index: 2, kind: input, shape index: {}]
  %s3 = inlined_call_operand.vmem [shape: f32[16,1], index: 3, kind: input, shape index: {}]
  %s4 = inlined_call_operand.vmem [shape: f32[16,1], index: 4, kind: input, shape index: {}]
  %s5 = inlined_call_operand.vmem [shape: f32[16,1], index: 5, kind: input, shape index: {}]
  %s6 = inlined_call_operand.vmem [shape: f32[16,128], index: 6, kind: output, shape index: {}]
  %s7 = sld [smem:[#allocation0]]
  $region34: #{_lambda_.15} parent=0
    _
  %s9 = ssub.s32 1, %s7
  %s10 = scalar_select 0, %s9, %s7
  // Predicated region
  $region2: #{_lambda_.15} parent=0 // pred_check
    _
  $region3: #{_lambda_.15} parent=0 // pred_check_branch
    %12 = sbr.rel (0) target = $region5
  $region4: #{_lambda_.15} parent=0 // pred_region
    _
  $region5: #{_lambda_.15} parent=0 // pred_fallthru
    _
  // Predicated region
  $region6: #{_lambda_.15} parent=0 // pred_check
    _
  $region7: #{_lambda_.15} parent=0 // pred_check_branch
    %14 = sbr.rel (0) target = $region9
  $region8: #{_lambda_.15} parent=0 // pred_region
    _
  $region9: #{_lambda_.15} parent=0 // pred_fallthru
    _
  // Predicated region
  $region10: #{_lambda_.15} parent=0 // pred_check
    _
  $region11: #{_lambda_.15} parent=0 // pred_check_branch
    %16 = sbr.rel (0) target = $region13
  $region12: #{_lambda_.15} parent=0 // pred_region
    _
  $region13: #{_lambda_.15} parent=0 // pred_fallthru
    _
  // Predicated region
  $region14: #{_lambda_.15} parent=0 // pred_check
    _
  $region15: #{_lambda_.15} parent=0 // pred_check_branch
    %18 = sbr.rel (0) target = $region17
  $region16: #{_lambda_.15} parent=0 // pred_region
    _
  $region17: #{_lambda_.15} parent=0 // pred_fallthru
    _
  // Predicated region
  $region18: #{_lambda_.15} parent=0 // pred_check
    _
  $region19: #{_lambda_.15} parent=0 // pred_check_branch
    %20 = sbr.rel (0) target = $region21
  $region20: #{_lambda_.15} parent=0 // pred_region
    _
  $region21: #{_lambda_.15} parent=0 // pred_fallthru
    _
  // Predicated region
  $region22: #{_lambda_.15} parent=0 // pred_check
    _
  $region23: #{_lambda_.15} parent=0 // pred_check_branch
    %22 = sbr.rel (0) target = $region25
  $region24: #{_lambda_.15} parent=0 // pred_region
    _
  $region25: #{_lambda_.15} parent=0 // pred_fallthru
    _
  %v24 = vld [vmem:[%s1] sm:$0xff]
  %v25 = vld [vmem:[%s1 + $0x8] sm:$0xff]
  %v26 = vld [vmem:[%s2] sm:$0xff]
  %v27 = vld [vmem:[%s2 + $0x8] sm:$0xff]
  %29 = vset.pattern.permute.xlu0 0
  %30 = vperm.xlu0 %29, %v26
  %v31 = vpop.permute.xlu0 %30
  %34 = vset.pattern.permute.xlu0 0
  %35 = vperm.xlu0 %34, %v27
  %v36 = vpop.permute.xlu0 %35
  %v38 = vmul.f32 %v24, %v31
  %v39 = vmul.f32 %v25, %v36
  %v40 = vld [vmem:[%s3] sm:$0xff]
  %v41 = vld [vmem:[%s3 + $0x8] sm:$0xff]
  %43 = vset.pattern.permute.xlu0 0
  %44 = vperm.xlu0 %43, %v40
  %v45 = vpop.permute.xlu0 %44
  %48 = vset.pattern.permute.xlu0 0
  %49 = vperm.xlu0 %48, %v41
  %v50 = vpop.permute.xlu0 %49
  %v52 = vadd.f32 %v38, %v45
  %v53 = vadd.f32 %v39, %v50
  %v54 = vmax.f32 %v52, 0.0
  %v55 = vmax.f32 %v53, 0.0
  %v56 = vld [vmem:[%s0] sm:$0xff]
  %v57 = vld [vmem:[%s0 + $0x8] sm:$0xff]
  %v58 = vpack.c.bf16 %v57, %v56
  %v59 = vpack.c.bf16 %v55, %v54
  %vm60 = vcmask 130048
  %v62 = vsel %vm60, %v58, 0
  %64 = vmatprep.subr.bf16.mxu0 0
  %65 = vmatpush1.bf16.msra.mxu0 %v59
  %66 = vmatprep.subr.bf16.mxu0 0
  %67 = vmatpush1.bf16.msra.mxu0 0
  %68 = vmatprep.subr.bf16.mxu0 0
  %69 = vmatpush1.bf16.msra.mxu0 0
  %70 = vmatprep.subr.bf16.mxu0 0
  %71 = vmatpush1.bf16.msra.mxu0 0
  %72 = vmatprep.subr.bf16.mxu0 0
  %73 = vmatpush1.bf16.msra.mxu0 0
  %74 = vmatprep.subr.bf16.mxu0 0
  %75 = vmatpush1.bf16.msra.mxu0 0
  %76 = vmatprep.subr.bf16.mxu0 0
  %77 = vmatpush1.bf16.msra.mxu0 0
  %78 = vmatprep.subr.bf16.mxu0 0
  %79 = vmatpush1.bf16.msra.mxu0 0
  %80 = vmatprep.subr.bf16.mxu0 0
  %81 = vmatpush1.bf16.msra.mxu0 0
  %82 = vmatprep.subr.bf16.mxu0 0
  %83 = vmatpush1.bf16.msra.mxu0 0
  %84 = vmatprep.subr.bf16.mxu0 0
  %85 = vmatpush1.bf16.msra.mxu0 0
  %86 = vmatprep.subr.bf16.mxu0 0
  %87 = vmatpush1.bf16.msra.mxu0 0
  %88 = vmatprep.subr.bf16.mxu0 0
  %89 = vmatpush1.bf16.msra.mxu0 0
  %90 = vmatprep.subr.bf16.mxu0 0
  %91 = vmatpush1.bf16.msra.mxu0 0
  %92 = vmatprep.subr.bf16.mxu0 0
  %93 = vmatpush1.bf16.msra.mxu0 0
  %94 = vmatprep.subr.bf16.mxu0 0
  %95 = vmatpush1.bf16.msra.mxu0 0
  %96 = vmatprep.mubr.bf16.mxu0 0
  %97 = vmatmul.mubr.bf16.gmra.mrb[0].mxu0 %v62
  %v98 = vpop.f32.mrb[0].mxu0
  %v99 = vadd.f32 0.0, %v98
  %v100 = vpop.f32.mrb[0].mxu0
  %v101 = vpop.f32.mrb[0].mxu0
  %v102 = vadd.f32 0.0, %v101
  %v103 = vpop.f32.mrb[0].mxu0
  %104 = vdwg.mxu0
  %v105 = vld [vmem:[%s4] sm:$0xff]
  %v106 = vld [vmem:[%s4 + $0x8] sm:$0xff]
  %108 = vset.pattern.permute.xlu0 0
  %109 = vperm.xlu0 %108, %v105
  %v110 = vpop.permute.xlu0 %109
  %113 = vset.pattern.permute.xlu0 0
  %114 = vperm.xlu0 %113, %v106
  %v115 = vpop.permute.xlu0 %114
  %v117 = vmul.f32 %v99, %v110
  %v118 = vmul.f32 %v102, %v115
  %v119 = vld [vmem:[%s5] sm:$0xff]
  %v120 = vld [vmem:[%s5 + $0x8] sm:$0xff]
  %122 = vset.pattern.permute.xlu0 0
  %123 = vperm.xlu0 %122, %v119
  %v124 = vpop.permute.xlu0 %123
  %127 = vset.pattern.permute.xlu0 0
  %128 = vperm.xlu0 %127, %v120
  %v129 = vpop.permute.xlu0 %128
  %v131 = vadd.f32 %v117, %v124
  %v132 = vadd.f32 %v118, %v129
  %v133 = vmax.f32 %v131, 0.0
  %v134 = vmax.f32 %v132, 0.0
  %135 = vst [vmem:[%s6] sm:$0xff] %v133
  %136 = vst [vmem:[%s6 + $0x8] sm:$0xff] %v134
  // Predicated region
  $region26: #{_lambda_.15} parent=0 // pred_check
    _
  $region27: #{_lambda_.15} parent=0 // pred_check_branch
    %138 = sbr.rel (0) target = $region29
  $region28: #{_lambda_.15} parent=0 // pred_region
    _
  $region29: #{_lambda_.15} parent=0 // pred_fallthru
    _
  // Predicated region
  $region30: #{_lambda_.15} parent=0 // pred_check
    _
  $region31: #{_lambda_.15} parent=0 // pred_check_branch
    %140 = sbr.rel (0) target = $region33
  $region32: #{_lambda_.15} parent=0 // pred_region
    _
  $region33: #{_lambda_.15} parent=0 // pred_fallthru
    _

// kernel: _lambda_.14
$region0: #{_lambda_.14}
  #allocation0 [shape = 'u32[]', space=smem, size = 0x4, offset = 0x4, fixed_abs, tag = 'smem constant byte address 0x4 - core index']
  #allocation1 [shape = 'u32[144,128]{1,0:T(1,128)}', space=vmem, size = 0x12000, scoped, tag = 'internal scratch']
  %s0 = inlined_call_operand.vmem [shape: f32[16,2,9,9], index: 0, kind: input, shape index: {}]
  %s1 = inlined_call_operand.vmem [shape: f32[16,2,9,9], index: 1, kind: input, shape index: {}]
  %s2 = inlined_call_operand.vmem [shape: f32[16,2,9,9], index: 2, kind: input, shape index: {}]
  %s3 = inlined_call_operand.vmem [shape: f32[16,2,9,9], index: 3, kind: input, shape index: {}]
  %s4 = inlined_call_operand.vmem [shape: f32[16,2,8,8], index: 4, kind: output, shape index: {}]
  %s5 = sld [smem:[#allocation0]]
  $region26: #{_lambda_.14} parent=0
    _
  %s7 = ssub.s32 1, %s5
  %s8 = scalar_select 0, %s7, %s5
  // Predicated region
  $region2: #{_lambda_.14} parent=0 // pred_check
    _
  $region3: #{_lambda_.14} parent=0 // pred_check_branch
    %10 = sbr.rel (0) target = $region5
  $region4: #{_lambda_.14} parent=0 // pred_region
    _
  $region5: #{_lambda_.14} parent=0 // pred_fallthru
    _
  // Predicated region
  $region6: #{_lambda_.14} parent=0 // pred_check
    _
  $region7: #{_lambda_.14} parent=0 // pred_check_branch
    %12 = sbr.rel (0) target = $region9
  $region8: #{_lambda_.14} parent=0 // pred_region
    _
  $region9: #{_lambda_.14} parent=0 // pred_fallthru
    _
  // Predicated region
  $region10: #{_lambda_.14} parent=0 // pred_check
    _
  $region11: #{_lambda_.14} parent=0 // pred_check_branch
    %14 = sbr.rel (0) target = $region13
  $region12: #{_lambda_.14} parent=0 // pred_region
    _
  $region13: #{_lambda_.14} parent=0 // pred_fallthru
    _
  // Predicated region
  $region14: #{_lambda_.14} parent=0 // pred_check
    _
  $region15: #{_lambda_.14} parent=0 // pred_check_branch
    %16 = sbr.rel (0) target = $region17
  $region16: #{_lambda_.14} parent=0 // pred_region
    _
  $region17: #{_lambda_.14} parent=0 // pred_fallthru
    _
  %v17 = vld [vmem:[%s0] sm:$0xff]
  %v18 = vld [vmem:[%s0 + $0x8] sm:$0x1]
  %v19 = vld [vmem:[%s0 + $0x10] sm:$0xff]
  %v20 = vld [vmem:[%s0 + $0x18] sm:$0x1]
  %v21 = vld [vmem:[%s0 + $0x20] sm:$0xff]
  %v22 = vld [vmem:[%s0 + $0x28] sm:$0x1]
  %v23 = vld [vmem:[%s0 + $0x30] sm:$0xff]
  %v24 = vld [vmem:[%s0 + $0x38] sm:$0x1]
  %v25 = vld [vmem:[%s0 + $0x40] sm:$0xff]
  %v26 = vld [vmem:[%s0 + $0x48] sm:$0x1]
  %v27 = vld [vmem:[%s0 + $0x50] sm:$0xff]
  %v28 = vld [vmem:[%s0 + $0x58] sm:$0x1]
  %v29 = vld [vmem:[%s0 + $0x60] sm:$0xff]
  %v30 = vld [vmem:[%s0 + $0x68] sm:$0x1]
  %v31 = vld [vmem:[%s0 + $0x70] sm:$0xff]
  %v32 = vld [vmem:[%s0 + $0x78] sm:$0x1]
  %v33 = vld [vmem:[%s0 + $0x80] sm:$0xff]
  %v34 = vld [vmem:[%s0 + $0x88] sm:$0x1]
  %v35 = vld [vmem:[%s0 + $0x90] sm:$0xff]
  %v36 = vld [vmem:[%s0 + $0x98] sm:$0x1]
  %v37 = vld [vmem:[%s0 + $0xa0] sm:$0xff]
  %v38 = vld [vmem:[%s0 + $0xa8] sm:$0x1]
  %v39 = vld [vmem:[%s0 + $0xb0] sm:$0xff]
  %v40 = vld [vmem:[%s0 + $0xb8] sm:$0x1]
  %v41 = vld [vmem:[%s0 + $0xc0] sm:$0xff]
  %v42 = vld [vmem:[%s0 + $0xc8] sm:$0x1]
  %v43 = vld [vmem:[%s0 + $0xd0] sm:$0xff]
  %v44 = vld [vmem:[%s0 + $0xd8] sm:$0x1]
  %v45 = vld [vmem:[%s0 + $0xe0] sm:$0xff]
  %v46 = vld [vmem:[%s0 + $0xe8] sm:$0x1]
  %v47 = vld [vmem:[%s0 + $0xf0] sm:$0xff]
  %v48 = vld [vmem:[%s0 + $0xf8] sm:$0x1]
  %v49 = vld [vmem:[%s0 + $0x100] sm:$0xff]
  %v50 = vld [vmem:[%s0 + $0x108] sm:$0x1]
  %v51 = vld [vmem:[%s0 + $0x110] sm:$0xff]
  %v52 = vld [vmem:[%s0 + $0x118] sm:$0x1]
  %v53 = vld [vmem:[%s0 + $0x120] sm:$0xff]
  %v54 = vld [vmem:[%s0 + $0x128] sm:$0x1]
  %v55 = vld [vmem:[%s0 + $0x130] sm:$0xff]
  %v56 = vld [vmem:[%s0 + $0x138] sm:$0x1]
  %v57 = vld [vmem:[%s0 + $0x140] sm:$0xff]
  %v58 = vld [vmem:[%s0 + $0x148] sm:$0x1]
  %v59 = vld [vmem:[%s0 + $0x150] sm:$0xff]
  %v60 = vld [vmem:[%s0 + $0x158] sm:$0x1]
  %v61 = vld [vmem:[%s0 + $0x160] sm:$0xff]
  %v62 = vld [vmem:[%s0 + $0x168] sm:$0x1]
  %v63 = vld [vmem:[%s0 + $0x170] sm:$0xff]
  %v64 = vld [vmem:[%s0 + $0x178] sm:$0x1]
  %v65 = vld [vmem:[%s0 + $0x180] sm:$0xff]
  %v66 = vld [vmem:[%s0 + $0x188] sm:$0x1]
  %v67 = vld [vmem:[%s0 + $0x190] sm:$0xff]
  %v68 = vld [vmem:[%s0 + $0x198] sm:$0x1]
  %v69 = vld [vmem:[%s0 + $0x1a0] sm:$0xff]
  %v70 = vld [vmem:[%s0 + $0x1a8] sm:$0x1]
  %v71 = vld [vmem:[%s0 + $0x1b0] sm:$0xff]
  %v72 = vld [vmem:[%s0 + $0x1b8] sm:$0x1]
  %v73 = vld [vmem:[%s0 + $0x1c0] sm:$0xff]
  %v74 = vld [vmem:[%s0 + $0x1c8] sm:$0x1]
  %v75 = vld [vmem:[%s0 + $0x1d0] sm:$0xff]
  %v76 = vld [vmem:[%s0 + $0x1d8] sm:$0x1]
  %v77 = vld [vmem:[%s0 + $0x1e0] sm:$0xff]
  %v78 = vld [vmem:[%s0 + $0x1e8] sm:$0x1]
  %v79 = vld [vmem:[%s0 + $0x1f0] sm:$0xff]
  %v80 = vld [vmem:[%s0 + $0x1f8] sm:$0x1]
  %v81 = vld [vmem:[%s1] sm:$0xff]
  %v82 = vld [vmem:[%s1 + $0x8] sm:$0x1]
  %v83 = vld [vmem:[%s1 + $0x10] sm:$0xff]
  %v84 = vld [vmem:[%s1 + $0x18] sm:$0x1]
  %v85 = vld [vmem:[%s1 + $0x20] sm:$0xff]
  %v86 = vld [vmem:[%s1 + $0x28] sm:$0x1]
  %v87 = vld [vmem:[%s1 + $0x30] sm:$0xff]
  %v88 = vld [vmem:[%s1 + $0x38] sm:$0x1]
  %v89 = vld [vmem:[%s1 + $0x40] sm:$0xff]
  %v90 = vld [vmem:[%s1 + $0x48] sm:$0x1]
  %v91 = vld [vmem:[%s1 + $0x50] sm:$0xff]
  %v92 = vld [vmem:[%s1 + $0x58] sm:$0x1]
  %v93 = vld [vmem:[%s1 + $0x60] sm:$0xff]
  %v94 = vld [vmem:[%s1 + $0x68] sm:$0x1]
  %v95 = vld [vmem:[%s1 + $0x70] sm:$0xff]
  %v96 = vld [vmem:[%s1 + $0x78] sm:$0x1]
  %v97 = vld [vmem:[%s1 + $0x80] sm:$0xff]
  %v98 = vld [vmem:[%s1 + $0x88] sm:$0x1]
  %v99 = vld [vmem:[%s1 + $0x90] sm:$0xff]
  %v100 = vld [vmem:[%s1 + $0x98] sm:$0x1]
  %v101 = vld [vmem:[%s1 + $0xa0] sm:$0xff]
  %v102 = vld [vmem:[%s1 + $0xa8] sm:$0x1]
  %v103 = vld [vmem:[%s1 + $0xb0] sm:$0xff]
  %v104 = vld [vmem:[%s1 + $0xb8] sm:$0x1]
  %v105 = vld [vmem:[%s1 + $0xc0] sm:$0xff]
  %v106 = vld [vmem:[%s1 + $0xc8] sm:$0x1]
  %v107 = vld [vmem:[%s1 + $0xd0] sm:$0xff]
  %v108 = vld [vmem:[%s1 + $0xd8] sm:$0x1]
  %v109 = vld [vmem:[%s1 + $0xe0] sm:$0xff]
  %v110 = vld [vmem:[%s1 + $0xe8] sm:$0x1]
  %v111 = vld [vmem:[%s1 + $0xf0] sm:$0xff]
  %v112 = vld [vmem:[%s1 + $0xf8] sm:$0x1]
  %v113 = vld [vmem:[%s1 + $0x100] sm:$0xff]
  %v114 = vld [vmem:[%s1 + $0x108] sm:$0x1]
  %v115 = vld [vmem:[%s1 + $0x110] sm:$0xff]
  %v116 = vld [vmem:[%s1 + $0x118] sm:$0x1]
  %v117 = vld [vmem:[%s1 + $0x120] sm:$0xff]
  %v118 = vld [vmem:[%s1 + $0x128] sm:$0x1]
  %v119 = vld [vmem:[%s1 + $0x130] sm:$0xff]
  %v120 = vld [vmem:[%s1 + $0x138] sm:$0x1]
  %v121 = vld [vmem:[%s1 + $0x140] sm:$0xff]
  %v122 = vld [vmem:[%s1 + $0x148] sm:$0x1]
  %v123 = vld [vmem:[%s1 + $0x150] sm:$0xff]
  %v124 = vld [vmem:[%s1 + $0x158] sm:$0x1]
  %v125 = vld [vmem:[%s1 + $0x160] sm:$0xff]
  %v126 = vld [vmem:[%s1 + $0x168] sm:$0x1]
  %v127 = vld [vmem:[%s1 + $0x170] sm:$0xff]
  %v128 = vld [vmem:[%s1 + $0x178] sm:$0x1]
  %v129 = vld [vmem:[%s1 + $0x180] sm:$0xff]
  %v130 = vld [vmem:[%s1 + $0x188] sm:$0x1]
  %v131 = vld [vmem:[%s1 + $0x190] sm:$0xff]
  %v132 = vld [vmem:[%s1 + $0x198] sm:$0x1]
  %v133 = vld [vmem:[%s1 + $0x1a0] sm:$0xff]
  %v134 = vld [vmem:[%s1 + $0x1a8] sm:$0x1]
  %v135 = vld [vmem:[%s1 + $0x1b0] sm:$0xff]
  %v136 = vld [vmem:[%s1 + $0x1b8] sm:$0x1]
  %v137 = vld [vmem:[%s1 + $0x1c0] sm:$0xff]
  %v138 = vld [vmem:[%s1 + $0x1c8] sm:$0x1]
  %v139 = vld [vmem:[%s1 + $0x1d0] sm:$0xff]
  %v140 = vld [vmem:[%s1 + $0x1d8] sm:$0x1]
  %v141 = vld [vmem:[%s1 + $0x1e0] sm:$0xff]
  %v142 = vld [vmem:[%s1 + $0x1e8] sm:$0x1]
  %v143 = vld [vmem:[%s1 + $0x1f0] sm:$0xff]
  %v144 = vld [vmem:[%s1 + $0x1f8] sm:$0x1]
  %v145 = vld [vmem:[%s2] sm:$0xff]
  %v146 = vld [vmem:[%s2 + $0x10] sm:$0xff]
  %v147 = vld [vmem:[%s2 + $0x20] sm:$0xff]
  %v148 = vld [vmem:[%s2 + $0x30] sm:$0xff]
  %v149 = vld [vmem:[%s2 + $0x40] sm:$0xff]
  %v150 = vld [vmem:[%s2 + $0x50] sm:$0xff]
  %v151 = vld [vmem:[%s2 + $0x60] sm:$0xff]
  %v152 = vld [vmem:[%s2 + $0x70] sm:$0xff]
  %v153 = vld [vmem:[%s2 + $0x80] sm:$0xff]
  %v154 = vld [vmem:[%s2 + $0x90] sm:$0xff]
  %v155 = vld [vmem:[%s2 + $0xa0] sm:$0xff]
  %v156 = vld [vmem:[%s2 + $0xb0] sm:$0xff]
  %v157 = vld [vmem:[%s2 + $0xc0] sm:$0xff]
  %v158 = vld [vmem:[%s2 + $0xd0] sm:$0xff]
  %v159 = vld [vmem:[%s2 + $0xe0] sm:$0xff]
  %v160 = vld [vmem:[%s2 + $0xf0] sm:$0xff]
  %v161 = vld [vmem:[%s2 + $0x100] sm:$0xff]
  %v162 = vld [vmem:[%s2 + $0x110] sm:$0xff]
  %v163 = vld [vmem:[%s2 + $0x120] sm:$0xff]
  %v164 = vld [vmem:[%s2 + $0x130] sm:$0xff]
  %v165 = vld [vmem:[%s2 + $0x140] sm:$0xff]
  %v166 = vld [vmem:[%s2 + $0x150] sm:$0xff]
  %v167 = vld [vmem:[%s2 + $0x160] sm:$0xff]
  %v168 = vld [vmem:[%s2 + $0x170] sm:$0xff]
  %v169 = vld [vmem:[%s2 + $0x180] sm:$0xff]
  %v170 = vld [vmem:[%s2 + $0x190] sm:$0xff]
  %v171 = vld [vmem:[%s2 + $0x1a0] sm:$0xff]
  %v172 = vld [vmem:[%s2 + $0x1b0] sm:$0xff]
  %v173 = vld [vmem:[%s2 + $0x1c0] sm:$0xff]
  %v174 = vld [vmem:[%s2 + $0x1d0] sm:$0xff]
  %v175 = vld [vmem:[%s2 + $0x1e0] sm:$0xff]
  %v176 = vld [vmem:[%s2 + $0x1f0] sm:$0xff]
  %v177 = vld [vmem:[%s3] sm:$0xff]
  %v178 = vld [vmem:[%s3 + $0x10] sm:$0xff]
  %v179 = vld [vmem:[%s3 + $0x20] sm:$0xff]
  %v180 = vld [vmem:[%s3 + $0x30] sm:$0xff]
  %v181 = vld [vmem:[%s3 + $0x40] sm:$0xff]
  %v182 = vld [vmem:[%s3 + $0x50] sm:$0xff]
  %v183 = vld [vmem:[%s3 + $0x60] sm:$0xff]
  %v184 = vld [vmem:[%s3 + $0x70] sm:$0xff]
  %v185 = vld [vmem:[%s3 + $0x80] sm:$0xff]
  %v186 = vld [vmem:[%s3 + $0x90] sm:$0xff]
  %v187 = vld [vmem:[%s3 + $0xa0] sm:$0xff]
  %v188 = vld [vmem:[%s3 + $0xb0] sm:$0xff]
  %v189 = vld [vmem:[%s3 + $0xc0] sm:$0xff]
  %v190 = vld [vmem:[%s3 + $0xd0] sm:$0xff]
  %v191 = vld [vmem:[%s3 + $0xe0] sm:$0xff]
  %v192 = vld [vmem:[%s3 + $0xf0] sm:$0xff]
  %v193 = vld [vmem:[%s3 + $0x100] sm:$0xff]
  %v194 = vld [vmem:[%s3 + $0x110] sm:$0xff]
  %v195 = vld [vmem:[%s3 + $0x120] sm:$0xff]
  %v196 = vld [vmem:[%s3 + $0x130] sm:$0xff]
  %v197 = vld [vmem:[%s3 + $0x140] sm:$0xff]
  %v198 = vld [vmem:[%s3 + $0x150] sm:$0xff]
  %v199 = vld [vmem:[%s3 + $0x160] sm:$0xff]
  %v200 = vld [vmem:[%s3 + $0x170] sm:$0xff]
  %v201 = vld [vmem:[%s3 + $0x180] sm:$0xff]
  %v202 = vld [vmem:[%s3 + $0x190] sm:$0xff]
  %v203 = vld [vmem:[%s3 + $0x1a0] sm:$0xff]
  %v204 = vld [vmem:[%s3 + $0x1b0] sm:$0xff]
  %v205 = vld [vmem:[%s3 + $0x1c0] sm:$0xff]
  %v206 = vld [vmem:[%s3 + $0x1d0] sm:$0xff]
  %v207 = vld [vmem:[%s3 + $0x1e0] sm:$0xff]
  %v208 = vld [vmem:[%s3 + $0x1f0] sm:$0xff]
  %v209 = vmax.f32 %v17, %v81
  %v210 = vmax.f32 %v18, %v82
  %v211 = vmax.f32 %v19, %v83
  %v212 = vmax.f32 %v20, %v84
  %v213 = vmax.f32 %v21, %v85
  %v214 = vmax.f32 %v22, %v86
  %v215 = vmax.f32 %v23, %v87
  %v216 = vmax.f32 %v24, %v88
  %v217 = vmax.f32 %v25, %v89
  %v218 = vmax.f32 %v26, %v90
  %v219 = vmax.f32 %v27, %v91
  %v220 = vmax.f32 %v28, %v92
  %v221 = vmax.f32 %v29, %v93
  %v222 = vmax.f32 %v30, %v94
  %v223 = vmax.f32 %v31, %v95
  %v224 = vmax.f32 %v32, %v96
  %v225 = vmax.f32 %v33, %v97
  %v226 = vmax.f32 %v34, %v98
  %v227 = vmax.f32 %v35, %v99
  %v228 = vmax.f32 %v36, %v100
  %v229 = vmax.f32 %v37, %v101
  %v230 = vmax.f32 %v38, %v102
  %v231 = vmax.f32 %v39, %v103
  %v232 = vmax.f32 %v40, %v104
  %v233 = vmax.f32 %v41, %v105
  %v234 = vmax.f32 %v42, %v106
  %v235 = vmax.f32 %v43, %v107
  %v236 = vmax.f32 %v44, %v108
  %v237 = vmax.f32 %v45, %v109
  %v238 = vmax.f32 %v46, %v110
  %v239 = vmax.f32 %v47, %v111
  %v240 = vmax.f32 %v48, %v112
  %v241 = vmax.f32 %v49, %v113
  %v242 = vmax.f32 %v50, %v114
  %v243 = vmax.f32 %v51, %v115
  %v244 = vmax.f32 %v52, %v116
  %v245 = vmax.f32 %v53, %v117
  %v246 = vmax.f32 %v54, %v118
  %v247 = vmax.f32 %v55, %v119
  %v248 = vmax.f32 %v56, %v120
  %v249 = vmax.f32 %v57, %v121
  %v250 = vmax.f32 %v58, %v122
  %v251 = vmax.f32 %v59, %v123
  %v252 = vmax.f32 %v60, %v124
  %v253 = vmax.f32 %v61, %v125
  %v254 = vmax.f32 %v62, %v126
  %v255 = vmax.f32 %v63, %v127
  %v256 = vmax.f32 %v64, %v128
  %v257 = vmax.f32 %v65, %v129
  %v258 = vmax.f32 %v66, %v130
  %v259 = vmax.f32 %v67, %v131
  %v260 = vmax.f32 %v68, %v132
  %v261 = vmax.f32 %v69, %v133
  %v262 = vmax.f32 %v70, %v134
  %v263 = vmax.f32 %v71, %v135
  %v264 = vmax.f32 %v72, %v136
  %v265 = vmax.f32 %v73, %v137
  %v266 = vmax.f32 %v74, %v138
  %v267 = vmax.f32 %v75, %v139
  %v268 = vmax.f32 %v76, %v140
  %v269 = vmax.f32 %v77, %v141
  %v270 = vmax.f32 %v78, %v142
  %v271 = vmax.f32 %v79, %v143
  %v272 = vmax.f32 %v80, %v144
  %vm337 = vcmask 1046528
  %v338 = vrot.slane %v209, 1
  %v339 = vrot.slane %v210, 1
  %v340 = vsel %vm337, %v338, %v339
  %v341 = vrot.slane %v211, 1
  %v342 = vrot.slane %v212, 1
  %v343 = vsel %vm337, %v341, %v342
  %v344 = vrot.slane %v213, 1
  %v345 = vrot.slane %v214, 1
  %v346 = vsel %vm337, %v344, %v345
  %v347 = vrot.slane %v215, 1
  %v348 = vrot.slane %v216, 1
  %v349 = vsel %vm337, %v347, %v348
  %v350 = vrot.slane %v217, 1
  %v351 = vrot.slane %v218, 1
  %v352 = vsel %vm337, %v350, %v351
  %v353 = vrot.slane %v219, 1
  %v354 = vrot.slane %v220, 1
  %v355 = vsel %vm337, %v353, %v354
  %v356 = vrot.slane %v221, 1
  %v357 = vrot.slane %v222, 1
  %v358 = vsel %vm337, %v356, %v357
  %v359 = vrot.slane %v223, 1
  %v360 = vrot.slane %v224, 1
  %v361 = vsel %vm337, %v359, %v360
  %v362 = vrot.slane %v225, 1
  %v363 = vrot.slane %v226, 1
  %v364 = vsel %vm337, %v362, %v363
  %v365 = vrot.slane %v227, 1
  %v366 = vrot.slane %v228, 1
  %v367 = vsel %vm337, %v365, %v366
  %v368 = vrot.slane %v229, 1
  %v369 = vrot.slane %v230, 1
  %v370 = vsel %vm337, %v368, %v369
  %v371 = vrot.slane %v231, 1
  %v372 = vrot.slane %v232, 1
  %v373 = vsel %vm337, %v371, %v372
  %v374 = vrot.slane %v233, 1
  %v375 = vrot.slane %v234, 1
  %v376 = vsel %vm337, %v374, %v375
  %v377 = vrot.slane %v235, 1
  %v378 = vrot.slane %v236, 1
  %v379 = vsel %vm337, %v377, %v378
  %v380 = vrot.slane %v237, 1
  %v381 = vrot.slane %v238, 1
  %v382 = vsel %vm337, %v380, %v381
  %v383 = vrot.slane %v239, 1
  %v384 = vrot.slane %v240, 1
  %v385 = vsel %vm337, %v383, %v384
  %v386 = vrot.slane %v241, 1
  %v387 = vrot.slane %v242, 1
  %v388 = vsel %vm337, %v386, %v387
  %v389 = vrot.slane %v243, 1
  %v390 = vrot.slane %v244, 1
  %v391 = vsel %vm337, %v389, %v390
  %v392 = vrot.slane %v245, 1
  %v393 = vrot.slane %v246, 1
  %v394 = vsel %vm337, %v392, %v393
  %v395 = vrot.slane %v247, 1
  %v396 = vrot.slane %v248, 1
  %v397 = vsel %vm337, %v395, %v396
  %v398 = vrot.slane %v249, 1
  %v399 = vrot.slane %v250, 1
  %v400 = vsel %vm337, %v398, %v399
  %v401 = vrot.slane %v251, 1
  %v402 = vrot.slane %v252, 1
  %v403 = vsel %vm337, %v401, %v402
  %v404 = vrot.slane %v253, 1
  %v405 = vrot.slane %v254, 1
  %v406 = vsel %vm337, %v404, %v405
  %v407 = vrot.slane %v255, 1
  %v408 = vrot.slane %v256, 1
  %v409 = vsel %vm337, %v407, %v408
  %v410 = vrot.slane %v257, 1
  %v411 = vrot.slane %v258, 1
  %v412 = vsel %vm337, %v410, %v411
  %v413 = vrot.slane %v259, 1
  %v414 = vrot.slane %v260, 1
  %v415 = vsel %vm337, %v413, %v414
  %v416 = vrot.slane %v261, 1
  %v417 = vrot.slane %v262, 1
  %v418 = vsel %vm337, %v416, %v417
  %v419 = vrot.slane %v263, 1
  %v420 = vrot.slane %v264, 1
  %v421 = vsel %vm337, %v419, %v420
  %v422 = vrot.slane %v265, 1
  %v423 = vrot.slane %v266, 1
  %v424 = vsel %vm337, %v422, %v423
  %v425 = vrot.slane %v267, 1
  %v426 = vrot.slane %v268, 1
  %v427 = vsel %vm337, %v425, %v426
  %v428 = vrot.slane %v269, 1
  %v429 = vrot.slane %v270, 1
  %v430 = vsel %vm337, %v428, %v429
  %v431 = vrot.slane %v271, 1
  %v432 = vrot.slane %v272, 1
  %v433 = vsel %vm337, %v431, %v432
  %v466 = vmax.f32 %v209, %v340
  %v467 = vmax.f32 %v211, %v343
  %v468 = vmax.f32 %v213, %v346
  %v469 = vmax.f32 %v215, %v349
  %v470 = vmax.f32 %v217, %v352
  %v471 = vmax.f32 %v219, %v355
  %v472 = vmax.f32 %v221, %v358
  %v473 = vmax.f32 %v223, %v361
  %v474 = vmax.f32 %v225, %v364
  %v475 = vmax.f32 %v227, %v367
  %v476 = vmax.f32 %v229, %v370
  %v477 = vmax.f32 %v231, %v373
  %v478 = vmax.f32 %v233, %v376
  %v479 = vmax.f32 %v235, %v379
  %v480 = vmax.f32 %v237, %v382
  %v481 = vmax.f32 %v239, %v385
  %v482 = vmax.f32 %v241, %v388
  %v483 = vmax.f32 %v243, %v391
  %v484 = vmax.f32 %v245, %v394
  %v485 = vmax.f32 %v247, %v397
  %v486 = vmax.f32 %v249, %v400
  %v487 = vmax.f32 %v251, %v403
  %v488 = vmax.f32 %v253, %v406
  %v489 = vmax.f32 %v255, %v409
  %v490 = vmax.f32 %v257, %v412
  %v491 = vmax.f32 %v259, %v415
  %v492 = vmax.f32 %v261, %v418
  %v493 = vmax.f32 %v263, %v421
  %v494 = vmax.f32 %v265, %v424
  %v495 = vmax.f32 %v267, %v427
  %v496 = vmax.f32 %v269, %v430
  %v497 = vmax.f32 %v271, %v433
  %v498 = vmax.f32 %v145, %v177
  %v499 = vmax.f32 %v146, %v178
  %v500 = vmax.f32 %v147, %v179
  %v501 = vmax.f32 %v148, %v180
  %v502 = vmax.f32 %v149, %v181
  %v503 = vmax.f32 %v150, %v182
  %v504 = vmax.f32 %v151, %v183
  %v505 = vmax.f32 %v152, %v184
  %v506 = vmax.f32 %v153, %v185
  %v507 = vmax.f32 %v154, %v186
  %v508 = vmax.f32 %v155, %v187
  %v509 = vmax.f32 %v156, %v188
  %v510 = vmax.f32 %v157, %v189
  %v511 = vmax.f32 %v158, %v190
  %v512 = vmax.f32 %v159, %v191
  %v513 = vmax.f32 %v160, %v192
  %v514 = vmax.f32 %v161, %v193
  %v515 = vmax.f32 %v162, %v194
  %v516 = vmax.f32 %v163, %v195
  %v517 = vmax.f32 %v164, %v196
  %v518 = vmax.f32 %v165, %v197
  %v519 = vmax.f32 %v166, %v198
  %v520 = vmax.f32 %v167, %v199
  %v521 = vmax.f32 %v168, %v200
  %v522 = vmax.f32 %v169, %v201
  %v523 = vmax.f32 %v170, %v202
  %v524 = vmax.f32 %v171, %v203
  %v525 = vmax.f32 %v172, %v204
  %v526 = vmax.f32 %v173, %v205
  %v527 = vmax.f32 %v174, %v206
  %v528 = vmax.f32 %v175, %v207
  %v529 = vmax.f32 %v176, %v208
  %v530 = vmax.f32 %v466, %v498
  %v531 = vmax.f32 %v467, %v499
  %v532 = vmax.f32 %v468, %v500
  %v533 = vmax.f32 %v469, %v501
  %v534 = vmax.f32 %v470, %v502
  %v535 = vmax.f32 %v471, %v503
  %v536 = vmax.f32 %v472, %v504
  %v537 = vmax.f32 %v473, %v505
  %v538 = vmax.f32 %v474, %v506
  %v539 = vmax.f32 %v475, %v507
  %v540 = vmax.f32 %v476, %v508
  %v541 = vmax.f32 %v477, %v509
  %v542 = vmax.f32 %v478, %v510
  %v543 = vmax.f32 %v479, %v511
  %v544 = vmax.f32 %v480, %v512
  %v545 = vmax.f32 %v481, %v513
  %v546 = vmax.f32 %v482, %v514
  %v547 = vmax.f32 %v483, %v515
  %v548 = vmax.f32 %v484, %v516
  %v549 = vmax.f32 %v485, %v517
  %v550 = vmax.f32 %v486, %v518
  %v551 = vmax.f32 %v487, %v519
  %v552 = vmax.f32 %v488, %v520
  %v553 = vmax.f32 %v489, %v521
  %v554 = vmax.f32 %v490, %v522
  %v555 = vmax.f32 %v491, %v523
  %v556 = vmax.f32 %v492, %v524
  %v557 = vmax.f32 %v493, %v525
  %v558 = vmax.f32 %v494, %v526
  %v559 = vmax.f32 %v495, %v527
  %v560 = vmax.f32 %v496, %v528
  %v561 = vmax.f32 %v497, %v529
  %v626 = vrot.slane %v17, 1
  %v627 = vrot.slane %v18, 1
  %v628 = vsel %vm337, %v626, %v627
  %v629 = vrot.slane %v19, 1
  %v630 = vrot.slane %v20, 1
  %v631 = vsel %vm337, %v629, %v630
  %v632 = vrot.slane %v21, 1
  %v633 = vrot.slane %v22, 1
  %v634 = vsel %vm337, %v632, %v633
  %v635 = vrot.slane %v23, 1
  %v636 = vrot.slane %v24, 1
  %v637 = vsel %vm337, %v635, %v636
  %v638 = vrot.slane %v25, 1
  %v639 = vrot.slane %v26, 1
  %v640 = vsel %vm337, %v638, %v639
  %v641 = vrot.slane %v27, 1
  %v642 = vrot.slane %v28, 1
  %v643 = vsel %vm337, %v641, %v642
  %v644 = vrot.slane %v29, 1
  %v645 = vrot.slane %v30, 1
  %v646 = vsel %vm337, %v644, %v645
  %v647 = vrot.slane %v31, 1
  %v648 = vrot.slane %v32, 1
  %v649 = vsel %vm337, %v647, %v648
  %v650 = vrot.slane %v33, 1
  %v651 = vrot.slane %v34, 1
  %v652 = vsel %vm337, %v650, %v651
  %v653 = vrot.slane %v35, 1
  %v654 = vrot.slane %v36, 1
  %v655 = vsel %vm337, %v653, %v654
  %v656 = vrot.slane %v37, 1
  %v657 = vrot.slane %v38, 1
  %v658 = vsel %vm337, %v656, %v657
  %v659 = vrot.slane %v39, 1
  %v660 = vrot.slane %v40, 1
  %v661 = vsel %vm337, %v659, %v660
  %v662 = vrot.slane %v41, 1
  %v663 = vrot.slane %v42, 1
  %v664 = vsel %vm337, %v662, %v663
  %v665 = vrot.slane %v43, 1
  %v666 = vrot.slane %v44, 1
  %v667 = vsel %vm337, %v665, %v666
  %v668 = vrot.slane %v45, 1
  %v669 = vrot.slane %v46, 1
  %v670 = vsel %vm337, %v668, %v669
  %v671 = vrot.slane %v47, 1
  %v672 = vrot.slane %v48, 1
  %v673 = vsel %vm337, %v671, %v672
  %v674 = vrot.slane %v49, 1
  %v675 = vrot.slane %v50, 1
  %v676 = vsel %vm337, %v674, %v675
  %v677 = vrot.slane %v51, 1
  %v678 = vrot.slane %v52, 1
  %v679 = vsel %vm337, %v677, %v678
  %v680 = vrot.slane %v53, 1
  %v681 = vrot.slane %v54, 1
  %v682 = vsel %vm337, %v680, %v681
  %v683 = vrot.slane %v55, 1
  %v684 = vrot.slane %v56, 1
  %v685 = vsel %vm337, %v683, %v684
  %v686 = vrot.slane %v57, 1
  %v687 = vrot.slane %v58, 1
  %v688 = vsel %vm337, %v686, %v687
  %v689 = vrot.slane %v59, 1
  %v690 = vrot.slane %v60, 1
  %v691 = vsel %vm337, %v689, %v690
  %v692 = vrot.slane %v61, 1
  %v693 = vrot.slane %v62, 1
  %v694 = vsel %vm337, %v692, %v693
  %v695 = vrot.slane %v63, 1
  %v696 = vrot.slane %v64, 1
  %v697 = vsel %vm337, %v695, %v696
  %v698 = vrot.slane %v65, 1
  %v699 = vrot.slane %v66, 1
  %v700 = vsel %vm337, %v698, %v699
  %v701 = vrot.slane %v67, 1
  %v702 = vrot.slane %v68, 1
  %v703 = vsel %vm337, %v701, %v702
  %v704 = vrot.slane %v69, 1
  %v705 = vrot.slane %v70, 1
  %v706 = vsel %vm337, %v704, %v705
  %v707 = vrot.slane %v71, 1
  %v708 = vrot.slane %v72, 1
  %v709 = vsel %vm337, %v707, %v708
  %v710 = vrot.slane %v73, 1
  %v711 = vrot.slane %v74, 1
  %v712 = vsel %vm337, %v710, %v711
  %v713 = vrot.slane %v75, 1
  %v714 = vrot.slane %v76, 1
  %v715 = vsel %vm337, %v713, %v714
  %v716 = vrot.slane %v77, 1
  %v717 = vrot.slane %v78, 1
  %v718 = vsel %vm337, %v716, %v717
  %v719 = vrot.slane %v79, 1
  %v720 = vrot.slane %v80, 1
  %v721 = vsel %vm337, %v719, %v720
  %v754 = vmax.f32 %v17, %v628
  %v755 = vmax.f32 %v19, %v631
  %v756 = vmax.f32 %v21, %v634
  %v757 = vmax.f32 %v23, %v637
  %v758 = vmax.f32 %v25, %v640
  %v759 = vmax.f32 %v27, %v643
  %v760 = vmax.f32 %v29, %v646
  %v761 = vmax.f32 %v31, %v649
  %v762 = vmax.f32 %v33, %v652
  %v763 = vmax.f32 %v35, %v655
  %v764 = vmax.f32 %v37, %v658
  %v765 = vmax.f32 %v39, %v661
  %v766 = vmax.f32 %v41, %v664
  %v767 = vmax.f32 %v43, %v667
  %v768 = vmax.f32 %v45, %v670
  %v769 = vmax.f32 %v47, %v673
  %v770 = vmax.f32 %v49, %v676
  %v771 = vmax.f32 %v51, %v679
  %v772 = vmax.f32 %v53, %v682
  %v773 = vmax.f32 %v55, %v685
  %v774 = vmax.f32 %v57, %v688
  %v775 = vmax.f32 %v59, %v691
  %v776 = vmax.f32 %v61, %v694
  %v777 = vmax.f32 %v63, %v697
  %v778 = vmax.f32 %v65, %v700
  %v779 = vmax.f32 %v67, %v703
  %v780 = vmax.f32 %v69, %v706
  %v781 = vmax.f32 %v71, %v709
  %v782 = vmax.f32 %v73, %v712
  %v783 = vmax.f32 %v75, %v715
  %v784 = vmax.f32 %v77, %v718
  %v785 = vmax.f32 %v79, %v721
  %v786 = vmax.f32 %v754, %v145
  %v787 = vmax.f32 %v755, %v146
  %v788 = vmax.f32 %v756, %v147
  %v789 = vmax.f32 %v757, %v148
  %v790 = vmax.f32 %v758, %v149
  %v791 = vmax.f32 %v759, %v150
  %v792 = vmax.f32 %v760, %v151
  %v793 = vmax.f32 %v761, %v152
  %v794 = vmax.f32 %v762, %v153
  %v795 = vmax.f32 %v763, %v154
  %v796 = vmax.f32 %v764, %v155
  %v797 = vmax.f32 %v765, %v156
  %v798 = vmax.f32 %v766, %v157
  %v799 = vmax.f32 %v767, %v158
  %v800 = vmax.f32 %v768, %v159
  %v801 = vmax.f32 %v769, %v160
  %v802 = vmax.f32 %v770, %v161
  %v803 = vmax.f32 %v771, %v162
  %v804 = vmax.f32 %v772, %v163
  %v805 = vmax.f32 %v773, %v164
  %v806 = vmax.f32 %v774, %v165
  %v807 = vmax.f32 %v775, %v166
  %v808 = vmax.f32 %v776, %v167
  %v809 = vmax.f32 %v777, %v168
  %v810 = vmax.f32 %v778, %v169
  %v811 = vmax.f32 %v779, %v170
  %v812 = vmax.f32 %v780, %v171
  %v813 = vmax.f32 %v781, %v172
  %v814 = vmax.f32 %v782, %v173
  %v815 = vmax.f32 %v783, %v174
  %v816 = vmax.f32 %v784, %v175
  %v817 = vmax.f32 %v785, %v176
  %850 = vrot.lane.b32.xlu0 %v786, 127
  %v851 = vpop.permute.xlu0 %850
  %852 = vrot.lane.b32.xlu0 %v787, 127
  %v853 = vpop.permute.xlu0 %852
  %854 = vrot.lane.b32.xlu0 %v788, 127
  %v855 = vpop.permute.xlu0 %854
  %856 = vrot.lane.b32.xlu0 %v789, 127
  %v857 = vpop.permute.xlu0 %856
  %858 = vrot.lane.b32.xlu0 %v790, 127
  %v859 = vpop.permute.xlu0 %858
  %860 = vrot.lane.b32.xlu0 %v791, 127
  %v861 = vpop.permute.xlu0 %860
  %862 = vrot.lane.b32.xlu0 %v792, 127
  %v863 = vpop.permute.xlu0 %862
  %864 = vrot.lane.b32.xlu0 %v793, 127
  %v865 = vpop.permute.xlu0 %864
  %866 = vrot.lane.b32.xlu0 %v794, 127
  %v867 = vpop.permute.xlu0 %866
  %868 = vrot.lane.b32.xlu0 %v795, 127
  %v869 = vpop.permute.xlu0 %868
  %870 = vrot.lane.b32.xlu0 %v796, 127
  %v871 = vpop.permute.xlu0 %870
  %872 = vrot.lane.b32.xlu0 %v797, 127
  %v873 = vpop.permute.xlu0 %872
  %874 = vrot.lane.b32.xlu0 %v798, 127
  %v875 = vpop.permute.xlu0 %874
  %876 = vrot.lane.b32.xlu0 %v799, 127
  %v877 = vpop.permute.xlu0 %876
  %878 = vrot.lane.b32.xlu0 %v800, 127
  %v879 = vpop.permute.xlu0 %878
  %880 = vrot.lane.b32.xlu0 %v801, 127
  %v881 = vpop.permute.xlu0 %880
  %882 = vrot.lane.b32.xlu0 %v802, 127
  %v883 = vpop.permute.xlu0 %882
  %884 = vrot.lane.b32.xlu0 %v803, 127
  %v885 = vpop.permute.xlu0 %884
  %886 = vrot.lane.b32.xlu0 %v804, 127
  %v887 = vpop.permute.xlu0 %886
  %888 = vrot.lane.b32.xlu0 %v805, 127
  %v889 = vpop.permute.xlu0 %888
  %890 = vrot.lane.b32.xlu0 %v806, 127
  %v891 = vpop.permute.xlu0 %890
  %892 = vrot.lane.b32.xlu0 %v807, 127
  %v893 = vpop.permute.xlu0 %892
  %894 = vrot.lane.b32.xlu0 %v808, 127
  %v895 = vpop.permute.xlu0 %894
  %896 = vrot.lane.b32.xlu0 %v809, 127
  %v897 = vpop.permute.xlu0 %896
  %898 = vrot.lane.b32.xlu0 %v810, 127
  %v899 = vpop.permute.xlu0 %898
  %900 = vrot.lane.b32.xlu0 %v811, 127
  %v901 = vpop.permute.xlu0 %900
  %902 = vrot.lane.b32.xlu0 %v812, 127
  %v903 = vpop.permute.xlu0 %902
  %904 = vrot.lane.b32.xlu0 %v813, 127
  %v905 = vpop.permute.xlu0 %904
  %906 = vrot.lane.b32.xlu0 %v814, 127
  %v907 = vpop.permute.xlu0 %906
  %908 = vrot.lane.b32.xlu0 %v815, 127
  %v909 = vpop.permute.xlu0 %908
  %910 = vrot.lane.b32.xlu0 %v816, 127
  %v911 = vpop.permute.xlu0 %910
  %912 = vrot.lane.b32.xlu0 %v817, 127
  %v913 = vpop.permute.xlu0 %912
  %v946 = vmax.f32 %v530, %v851
  %v947 = vmax.f32 %v531, %v853
  %v948 = vmax.f32 %v532, %v855
  %v949 = vmax.f32 %v533, %v857
  %v950 = vmax.f32 %v534, %v859
  %v951 = vmax.f32 %v535, %v861
  %v952 = vmax.f32 %v536, %v863
  %v953 = vmax.f32 %v537, %v865
  %v954 = vmax.f32 %v538, %v867
  %v955 = vmax.f32 %v539, %v869
  %v956 = vmax.f32 %v540, %v871
  %v957 = vmax.f32 %v541, %v873
  %v958 = vmax.f32 %v542, %v875
  %v959 = vmax.f32 %v543, %v877
  %v960 = vmax.f32 %v544, %v879
  %v961 = vmax.f32 %v545, %v881
  %v962 = vmax.f32 %v546, %v883
  %v963 = vmax.f32 %v547, %v885
  %v964 = vmax.f32 %v548, %v887
  %v965 = vmax.f32 %v549, %v889
  %v966 = vmax.f32 %v550, %v891
  %v967 = vmax.f32 %v551, %v893
  %v968 = vmax.f32 %v552, %v895
  %v969 = vmax.f32 %v553, %v897
  %v970 = vmax.f32 %v554, %v899
  %v971 = vmax.f32 %v555, %v901
  %v972 = vmax.f32 %v556, %v903
  %v973 = vmax.f32 %v557, %v905
  %v974 = vmax.f32 %v558, %v907
  %v975 = vmax.f32 %v559, %v909
  %v976 = vmax.f32 %v560, %v911
  %v977 = vmax.f32 %v561, %v913
  %vm978 = vcmask 64512
  %979 = vst.msk [vmem:[%s4] sm:$0xff] %vm978, %v946
  %980 = vst.msk [vmem:[%s4 + $0x8] sm:$0xff] %vm978, %v947
  %981 = vst.msk [vmem:[%s4 + $0x10] sm:$0xff] %vm978, %v948
  %982 = vst.msk [vmem:[%s4 + $0x18] sm:$0xff] %vm978, %v949
  %983 = vst.msk [vmem:[%s4 + $0x20] sm:$0xff] %vm978, %v950
  %984 = vst.msk [vmem:[%s4 + $0x28] sm:$0xff] %vm978, %v951
  %985 = vst.msk [vmem:[%s4 + $0x30] sm:$0xff] %vm978, %v952
  %986 = vst.msk [vmem:[%s4 + $0x38] sm:$0xff] %vm978, %v953
  %987 = vst.msk [vmem:[%s4 + $0x40] sm:$0xff] %vm978, %v954
  %988 = vst.msk [vmem:[%s4 + $0x48] sm:$0xff] %vm978, %v955
  %989 = vst.msk [vmem:[%s4 + $0x50] sm:$0xff] %vm978, %v956
  %990 = vst.msk [vmem:[%s4 + $0x58] sm:$0xff] %vm978, %v957
  %991 = vst.msk [vmem:[%s4 + $0x60] sm:$0xff] %vm978, %v958
  %992 = vst.msk [vmem:[%s4 + $0x68] sm:$0xff] %vm978, %v959
  %993 = vst.msk [vmem:[%s4 + $0x70] sm:$0xff] %vm978, %v960
  %994 = vst.msk [vmem:[%s4 + $0x78] sm:$0xff] %vm978, %v961
  %995 = vst.msk [vmem:[%s4 + $0x80] sm:$0xff] %vm978, %v962
  %996 = vst.msk [vmem:[%s4 + $0x88] sm:$0xff] %vm978, %v963
  %997 = vst.msk [vmem:[%s4 + $0x90] sm:$0xff] %vm978, %v964
  %998 = vst.msk [vmem:[%s4 + $0x98] sm:$0xff] %vm978, %v965
  %999 = vst.msk [vmem:[%s4 + $0xa0] sm:$0xff] %vm978, %v966
  %1000 = vst.msk [vmem:[%s4 + $0xa8] sm:$0xff] %vm978, %v967
  %1001 = vst.msk [vmem:[%s4 + $0xb0] sm:$0xff] %vm978, %v968
  %1002 = vst.msk [vmem:[%s4 + $0xb8] sm:$0xff] %vm978, %v969
  %1003 = vst.msk [vmem:[%s4 + $0xc0] sm:$0xff] %vm978, %v970
  %1004 = vst.msk [vmem:[%s4 + $0xc8] sm:$0xff] %vm978, %v971
  %1005 = vst.msk [vmem:[%s4 + $0xd0] sm:$0xff] %vm978, %v972
  %1006 = vst.msk [vmem:[%s4 + $0xd8] sm:$0xff] %vm978, %v973
  %1007 = vst.msk [vmem:[%s4 + $0xe0] sm:$0xff] %vm978, %v974
  %1008 = vst.msk [vmem:[%s4 + $0xe8] sm:$0xff] %vm978, %v975
  %1009 = vst.msk [vmem:[%s4 + $0xf0] sm:$0xff] %vm978, %v976
  %1010 = vst.msk [vmem:[%s4 + $0xf8] sm:$0xff] %vm978, %v977
  // Predicated region
  $region18: #{_lambda_.14} parent=0 // pred_check
    _
  $region19: #{_lambda_.14} parent=0 // pred_check_branch
    %1012 = sbr.rel (0) target = $region21
  $region20: #{_lambda_.14} parent=0 // pred_region
    _
  $region21: #{_lambda_.14} parent=0 // pred_fallthru
    _
  // Predicated region
  $region22: #{_lambda_.14} parent=0 // pred_check
    _
  $region23: #{_lambda_.14} parent=0 // pred_check_branch
    %1014 = sbr.rel (0) target = $region25
  $region24: #{_lambda_.14} parent=0 // pred_region
    _
  $region25: #{_lambda_.14} parent=0 // pred_fallthru
    _

// kernel: _lambda_.16
$region0: #{_lambda_.16}
  #allocation0 [shape = 'u32[]', space=smem, size = 0x4, offset = 0x4, fixed_abs, tag = 'smem constant byte address 0x4 - core index']
  #allocation1 [shape = 'u32[144,128]{1,0:T(1,128)}', space=vmem, size = 0x12000, scoped, tag = 'internal scratch']
  %s0 = inlined_call_operand.vmem [shape: f32[8,144], index: 0, kind: input, shape index: {}]
  %s1 = inlined_call_operand.vmem [shape: f32[144,128], index: 1, kind: input, shape index: {}]
  %s2 = inlined_call_operand.vmem [shape: f32[32,128], index: 2, kind: input, shape index: {}, may-alias: {2,3}]
  %s3 = inlined_call_operand.vmem [shape: f32[32,128], index: 3, kind: output, shape index: {}, may-alias: {2,3}]
  %s4 = sld [smem:[#allocation0]]
  $region18: #{_lambda_.16} parent=0
    _
  %s6 = ssub.s32 1, %s4
  %s7 = scalar_select 0, %s6, %s4
  // Predicated region
  $region2: #{_lambda_.16} parent=0 // pred_check
    _
  $region3: #{_lambda_.16} parent=0 // pred_check_branch
    %9 = sbr.rel (0) target = $region5
  $region4: #{_lambda_.16} parent=0 // pred_region
    _
  $region5: #{_lambda_.16} parent=0 // pred_fallthru
    _
  // Predicated region
  $region6: #{_lambda_.16} parent=0 // pred_check
    _
  $region7: #{_lambda_.16} parent=0 // pred_check_branch
    %11 = sbr.rel (0) target = $region9
  $region8: #{_lambda_.16} parent=0 // pred_region
    _
  $region9: #{_lambda_.16} parent=0 // pred_fallthru
    _
  %s12 = scalar_lea.vmem %s3, 16
  %s13 = scalar_lea.vmem %s3, 16
  %v15 = vld [vmem:[%s1] sm:$0xff]
  %v16 = vld [vmem:[%s1 + $0x8] sm:$0xff]
  %v17 = vld [vmem:[%s1 + $0x10] sm:$0xff]
  %v18 = vld [vmem:[%s1 + $0x18] sm:$0xff]
  %v19 = vld [vmem:[%s1 + $0x20] sm:$0xff]
  %v20 = vld [vmem:[%s1 + $0x28] sm:$0xff]
  %v21 = vld [vmem:[%s1 + $0x30] sm:$0xff]
  %v22 = vld [vmem:[%s1 + $0x38] sm:$0xff]
  %v23 = vld [vmem:[%s1 + $0x40] sm:$0xff]
  %v24 = vld [vmem:[%s1 + $0x48] sm:$0xff]
  %v25 = vld [vmem:[%s1 + $0x50] sm:$0xff]
  %v26 = vld [vmem:[%s1 + $0x58] sm:$0xff]
  %v27 = vld [vmem:[%s1 + $0x60] sm:$0xff]
  %v28 = vld [vmem:[%s1 + $0x68] sm:$0xff]
  %v29 = vld [vmem:[%s1 + $0x70] sm:$0xff]
  %v30 = vld [vmem:[%s1 + $0x78] sm:$0xff]
  %v31 = vld [vmem:[%s1 + $0x80] sm:$0xff]
  %v32 = vld [vmem:[%s1 + $0x88] sm:$0xff]
  %v33 = vld [vmem:[%s0] sm:$0xff]
  %v34 = vld [vmem:[%s0 + $0x8] sm:$0xff]
  %v35 = vpack.c.bf16 %v33, %v33
  %v36 = vpack.c.bf16 %v34, %v34
  %v37 = vpack.c.bf16 %v16, %v15
  %v38 = vpack.c.bf16 %v18, %v17
  %v39 = vpack.c.bf16 %v20, %v19
  %v40 = vpack.c.bf16 %v22, %v21
  %v41 = vpack.c.bf16 %v24, %v23
  %v42 = vpack.c.bf16 %v26, %v25
  %v43 = vpack.c.bf16 %v28, %v27
  %v44 = vpack.c.bf16 %v30, %v29
  %v45 = vpack.c.bf16 %v32, %v31
  %vm46 = vcmask 130048
  %v48 = vsel %vm46, %v36, 0
  %50 = vmatprep.subr.bf16.mxu0 0
  %51 = vmatpush1.bf16.msra.mxu0 %v37
  %52 = vmatprep.subr.bf16.mxu0 0
  %53 = vmatpush1.bf16.msra.mxu0 %v38
  %54 = vmatprep.subr.bf16.mxu0 0
  %55 = vmatpush1.bf16.msra.mxu0 %v39
  %56 = vmatprep.subr.bf16.mxu0 0
  %57 = vmatpush1.bf16.msra.mxu0 %v40
  %58 = vmatprep.subr.bf16.mxu0 0
  %59 = vmatpush1.bf16.msra.mxu0 %v41
  %60 = vmatprep.subr.bf16.mxu0 0
  %61 = vmatpush1.bf16.msra.mxu0 %v42
  %62 = vmatprep.subr.bf16.mxu0 0
  %63 = vmatpush1.bf16.msra.mxu0 %v43
  %64 = vmatprep.subr.bf16.mxu0 0
  %65 = vmatpush1.bf16.msra.mxu0 %v44
  %66 = vmatprep.subr.bf16.mxu0 0
  %67 = vmatpush1.bf16.msra.mxu0 %v45
  %68 = vmatprep.subr.bf16.mxu0 0
  %69 = vmatpush1.bf16.msra.mxu0 0
  %70 = vmatprep.subr.bf16.mxu0 0
  %71 = vmatpush1.bf16.msra.mxu0 0
  %72 = vmatprep.subr.bf16.mxu0 0
  %73 = vmatpush1.bf16.msra.mxu0 0
  %74 = vmatprep.subr.bf16.mxu0 0
  %75 = vmatpush1.bf16.msra.mxu0 0
  %76 = vmatprep.subr.bf16.mxu0 0
  %77 = vmatpush1.bf16.msra.mxu0 0
  %78 = vmatprep.subr.bf16.mxu0 0
  %79 = vmatpush1.bf16.msra.mxu0 0
  %80 = vmatprep.subr.bf16.mxu0 0
  %81 = vmatpush1.bf16.msra.mxu0 0
  %82 = vmatprep.mubr.bf16.mxu0 %v48
  %83 = vmatmul.mubr.bf16.gmra.mrb[0].mxu0 %v35
  %v84 = vpop.f32.mrb[0].mxu0
  %v85 = vadd.f32 0.0, %v84
  %v86 = vpop.f32.mrb[0].mxu0
  %v87 = vpop.f32.mrb[0].mxu0
  %v88 = vpop.f32.mrb[0].mxu0
  %89 = vdwg.mxu0
  %90 = vst [vmem:[%s13] sm:$0xff] %v85
  %s91 = scalar_lea.vmem %s3, 16
  // Predicated region
  $region10: #{_lambda_.16} parent=0 // pred_check
    _
  $region11: #{_lambda_.16} parent=0 // pred_check_branch
    %93 = sbr.rel (0) target = $region13
  $region12: #{_lambda_.16} parent=0 // pred_region
    _
  $region13: #{_lambda_.16} parent=0 // pred_fallthru
    _
  // Predicated region
  $region14: #{_lambda_.16} parent=0 // pred_check
    _
  $region15: #{_lambda_.16} parent=0 // pred_check_branch
    %95 = sbr.rel (0) target = $region17
  $region16: #{_lambda_.16} parent=0 // pred_region
    %s96 = scalar_lea.vmem %s3, 16
  $region17: #{_lambda_.16} parent=0 // pred_fallthru
    _

// kernel: _lambda_.18
$region0: #{_lambda_.18}
  #allocation0 [shape = 'u32[]', space=smem, size = 0x4, offset = 0x4, fixed_abs, tag = 'smem constant byte address 0x4 - core index']
  #allocation1 [shape = 'u32[144,128]{1,0:T(1,128)}', space=vmem, size = 0x12000, scoped, tag = 'internal scratch']
  %s0 = inlined_call_operand.vmem [shape: f32[8,144], index: 0, kind: input, shape index: {}]
  %s1 = inlined_call_operand.vmem [shape: f32[144,128], index: 1, kind: input, shape index: {}]
  %s2 = inlined_call_operand.vmem [shape: f32[32,128], index: 2, kind: input, shape index: {}, may-alias: {2,3}]
  %s3 = inlined_call_operand.vmem [shape: f32[32,128], index: 3, kind: output, shape index: {}, may-alias: {2,3}]
  %s4 = sld [smem:[#allocation0]]
  $region18: #{_lambda_.18} parent=0
    _
  %s6 = ssub.s32 1, %s4
  %s7 = scalar_select 0, %s6, %s4
  // Predicated region
  $region2: #{_lambda_.18} parent=0 // pred_check
    _
  $region3: #{_lambda_.18} parent=0 // pred_check_branch
    %9 = sbr.rel (0) target = $region5
  $region4: #{_lambda_.18} parent=0 // pred_region
    _
  $region5: #{_lambda_.18} parent=0 // pred_fallthru
    _
  // Predicated region
  $region6: #{_lambda_.18} parent=0 // pred_check
    _
  $region7: #{_lambda_.18} parent=0 // pred_check_branch
    %11 = sbr.rel (0) target = $region9
  $region8: #{_lambda_.18} parent=0 // pred_region
    _
  $region9: #{_lambda_.18} parent=0 // pred_fallthru
    _
  %s12 = scalar_lea.vmem %s3, 24
  %s13 = scalar_lea.vmem %s3, 24
  %v15 = vld [vmem:[%s1] sm:$0xff]
  %v16 = vld [vmem:[%s1 + $0x8] sm:$0xff]
  %v17 = vld [vmem:[%s1 + $0x10] sm:$0xff]
  %v18 = vld [vmem:[%s1 + $0x18] sm:$0xff]
  %v19 = vld [vmem:[%s1 + $0x20] sm:$0xff]
  %v20 = vld [vmem:[%s1 + $0x28] sm:$0xff]
  %v21 = vld [vmem:[%s1 + $0x30] sm:$0xff]
  %v22 = vld [vmem:[%s1 + $0x38] sm:$0xff]
  %v23 = vld [vmem:[%s1 + $0x40] sm:$0xff]
  %v24 = vld [vmem:[%s1 + $0x48] sm:$0xff]
  %v25 = vld [vmem:[%s1 + $0x50] sm:$0xff]
  %v26 = vld [vmem:[%s1 + $0x58] sm:$0xff]
  %v27 = vld [vmem:[%s1 + $0x60] sm:$0xff]
  %v28 = vld [vmem:[%s1 + $0x68] sm:$0xff]
  %v29 = vld [vmem:[%s1 + $0x70] sm:$0xff]
  %v30 = vld [vmem:[%s1 + $0x78] sm:$0xff]
  %v31 = vld [vmem:[%s1 + $0x80] sm:$0xff]
  %v32 = vld [vmem:[%s1 + $0x88] sm:$0xff]
  %v33 = vld [vmem:[%s0] sm:$0xff]
  %v34 = vld [vmem:[%s0 + $0x8] sm:$0xff]
  %v35 = vpack.c.bf16 %v33, %v33
  %v36 = vpack.c.bf16 %v34, %v34
  %v37 = vpack.c.bf16 %v16, %v15
  %v38 = vpack.c.bf16 %v18, %v17
  %v39 = vpack.c.bf16 %v20, %v19
  %v40 = vpack.c.bf16 %v22, %v21
  %v41 = vpack.c.bf16 %v24, %v23
  %v42 = vpack.c.bf16 %v26, %v25
  %v43 = vpack.c.bf16 %v28, %v27
  %v44 = vpack.c.bf16 %v30, %v29
  %v45 = vpack.c.bf16 %v32, %v31
  %vm46 = vcmask 130048
  %v48 = vsel %vm46, %v36, 0
  %50 = vmatprep.subr.bf16.mxu0 0
  %51 = vmatpush1.bf16.msra.mxu0 %v37
  %52 = vmatprep.subr.bf16.mxu0 0
  %53 = vmatpush1.bf16.msra.mxu0 %v38
  %54 = vmatprep.subr.bf16.mxu0 0
  %55 = vmatpush1.bf16.msra.mxu0 %v39
  %56 = vmatprep.subr.bf16.mxu0 0
  %57 = vmatpush1.bf16.msra.mxu0 %v40
  %58 = vmatprep.subr.bf16.mxu0 0
  %59 = vmatpush1.bf16.msra.mxu0 %v41
  %60 = vmatprep.subr.bf16.mxu0 0
  %61 = vmatpush1.bf16.msra.mxu0 %v42
  %62 = vmatprep.subr.bf16.mxu0 0
  %63 = vmatpush1.bf16.msra.mxu0 %v43
  %64 = vmatprep.subr.bf16.mxu0 0
  %65 = vmatpush1.bf16.msra.mxu0 %v44
  %66 = vmatprep.subr.bf16.mxu0 0
  %67 = vmatpush1.bf16.msra.mxu0 %v45
  %68 = vmatprep.subr.bf16.mxu0 0
  %69 = vmatpush1.bf16.msra.mxu0 0
  %70 = vmatprep.subr.bf16.mxu0 0
  %71 = vmatpush1.bf16.msra.mxu0 0
  %72 = vmatprep.subr.bf16.mxu0 0
  %73 = vmatpush1.bf16.msra.mxu0 0
  %74 = vmatprep.subr.bf16.mxu0 0
  %75 = vmatpush1.bf16.msra.mxu0 0
  %76 = vmatprep.subr.bf16.mxu0 0
  %77 = vmatpush1.bf16.msra.mxu0 0
  %78 = vmatprep.subr.bf16.mxu0 0
  %79 = vmatpush1.bf16.msra.mxu0 0
  %80 = vmatprep.subr.bf16.mxu0 0
  %81 = vmatpush1.bf16.msra.mxu0 0
  %82 = vmatprep.mubr.bf16.mxu0 %v48
  %83 = vmatmul.mubr.bf16.gmra.mrb[0].mxu0 %v35
  %v84 = vpop.f32.mrb[0].mxu0
  %v85 = vadd.f32 0.0, %v84
  %v86 = vpop.f32.mrb[0].mxu0
  %v87 = vpop.f32.mrb[0].mxu0
  %v88 = vpop.f32.mrb[0].mxu0
  %89 = vdwg.mxu0
  %90 = vst [vmem:[%s13] sm:$0xff] %v85
  %s91 = scalar_lea.vmem %s3, 24
  // Predicated region
  $region10: #{_lambda_.18} parent=0 // pred_check
    _
  $region11: #{_lambda_.18} parent=0 // pred_check_branch
    %93 = sbr.rel (0) target = $region13
  $region12: #{_lambda_.18} parent=0 // pred_region
    _
  $region13: #{_lambda_.18} parent=0 // pred_fallthru
    _
  // Predicated region
  $region14: #{_lambda_.18} parent=0 // pred_check
    _
  $region15: #{_lambda_.18} parent=0 // pred_check_branch
    %95 = sbr.rel (0) target = $region17
  $region16: #{_lambda_.18} parent=0 // pred_region
    %s96 = scalar_lea.vmem %s3, 24
  $region17: #{_lambda_.18} parent=0 // pred_fallthru
    _

// kernel: _lambda_.17
$region0: #{_lambda_.17}
  #allocation0 [shape = 'u32[]', space=smem, size = 0x4, offset = 0x4, fixed_abs, tag = 'smem constant byte address 0x4 - core index']
  #allocation1 [shape = 'u32[144,128]{1,0:T(1,128)}', space=vmem, size = 0x12000, scoped, tag = 'internal scratch']
  %s0 = inlined_call_operand.vmem [shape: f32[16,24], index: 0, kind: input, shape index: {}]
  %s1 = inlined_call_operand.vmem [shape: f32[32,128], index: 1, kind: input, shape index: {}]
  %s2 = inlined_call_operand.vmem [shape: f32[24,1], index: 2, kind: input, shape index: {}]
  %s3 = inlined_call_operand.vmem [shape: f32[24,1], index: 3, kind: input, shape index: {}]
  %s4 = inlined_call_operand.vmem [shape: f32[16,1], index: 4, kind: input, shape index: {}]
  %s5 = inlined_call_operand.vmem [shape: f32[16,1], index: 5, kind: input, shape index: {}]
  %s6 = inlined_call_operand.vmem [shape: f32[16,128], index: 6, kind: output, shape index: {}]
  %s7 = sld [smem:[#allocation0]]
  $region34: #{_lambda_.17} parent=0
    _
  %s9 = ssub.s32 1, %s7
  %s10 = scalar_select 0, %s9, %s7
  // Predicated region
  $region2: #{_lambda_.17} parent=0 // pred_check
    _
  $region3: #{_lambda_.17} parent=0 // pred_check_branch
    %12 = sbr.rel (0) target = $region5
  $region4: #{_lambda_.17} parent=0 // pred_region
    _
  $region5: #{_lambda_.17} parent=0 // pred_fallthru
    _
  // Predicated region
  $region6: #{_lambda_.17} parent=0 // pred_check
    _
  $region7: #{_lambda_.17} parent=0 // pred_check_branch
    %14 = sbr.rel (0) target = $region9
  $region8: #{_lambda_.17} parent=0 // pred_region
    _
  $region9: #{_lambda_.17} parent=0 // pred_fallthru
    _
  // Predicated region
  $region10: #{_lambda_.17} parent=0 // pred_check
    _
  $region11: #{_lambda_.17} parent=0 // pred_check_branch
    %16 = sbr.rel (0) target = $region13
  $region12: #{_lambda_.17} parent=0 // pred_region
    _
  $region13: #{_lambda_.17} parent=0 // pred_fallthru
    _
  // Predicated region
  $region14: #{_lambda_.17} parent=0 // pred_check
    _
  $region15: #{_lambda_.17} parent=0 // pred_check_branch
    %18 = sbr.rel (0) target = $region17
  $region16: #{_lambda_.17} parent=0 // pred_region
    _
  $region17: #{_lambda_.17} parent=0 // pred_fallthru
    _
  // Predicated region
  $region18: #{_lambda_.17} parent=0 // pred_check
    _
  $region19: #{_lambda_.17} parent=0 // pred_check_branch
    %20 = sbr.rel (0) target = $region21
  $region20: #{_lambda_.17} parent=0 // pred_region
    _
  $region21: #{_lambda_.17} parent=0 // pred_fallthru
    _
  // Predicated region
  $region22: #{_lambda_.17} parent=0 // pred_check
    _
  $region23: #{_lambda_.17} parent=0 // pred_check_branch
    %22 = sbr.rel (0) target = $region25
  $region24: #{_lambda_.17} parent=0 // pred_region
    _
  $region25: #{_lambda_.17} parent=0 // pred_fallthru
    _
  %v24 = vld [vmem:[%s1] sm:$0xff]
  %v25 = vld [vmem:[%s1 + $0x8] sm:$0xff]
  %v26 = vld [vmem:[%s1 + $0x10] sm:$0xff]
  %v27 = vld [vmem:[%s2] sm:$0xff]
  %v28 = vld [vmem:[%s2 + $0x8] sm:$0xff]
  %v29 = vld [vmem:[%s2 + $0x10] sm:$0xff]
  %31 = vset.pattern.permute.xlu0 0
  %32 = vperm.xlu0 %31, %v27
  %v33 = vpop.permute.xlu0 %32
  %36 = vset.pattern.permute.xlu0 0
  %37 = vperm.xlu0 %36, %v28
  %v38 = vpop.permute.xlu0 %37
  %41 = vset.pattern.permute.xlu0 0
  %42 = vperm.xlu0 %41, %v29
  %v43 = vpop.permute.xlu0 %42
  %v45 = vmul.f32 %v24, %v33
  %v46 = vmul.f32 %v25, %v38
  %v47 = vmul.f32 %v26, %v43
  %v48 = vld [vmem:[%s3] sm:$0xff]
  %v49 = vld [vmem:[%s3 + $0x8] sm:$0xff]
  %v50 = vld [vmem:[%s3 + $0x10] sm:$0xff]
  %52 = vset.pattern.permute.xlu0 0
  %53 = vperm.xlu0 %52, %v48
  %v54 = vpop.permute.xlu0 %53
  %57 = vset.pattern.permute.xlu0 0
  %58 = vperm.xlu0 %57, %v49
  %v59 = vpop.permute.xlu0 %58
  %62 = vset.pattern.permute.xlu0 0
  %63 = vperm.xlu0 %62, %v50
  %v64 = vpop.permute.xlu0 %63
  %v66 = vadd.f32 %v45, %v54
  %v67 = vadd.f32 %v46, %v59
  %v68 = vadd.f32 %v47, %v64
  %v69 = vmax.f32 %v66, 0.0
  %v70 = vmax.f32 %v67, 0.0
  %v71 = vmax.f32 %v68, 0.0
  %v72 = vld [vmem:[%s0] sm:$0xff]
  %v73 = vld [vmem:[%s0 + $0x8] sm:$0xff]
  %v74 = vpack.c.bf16 %v73, %v72
  %v75 = vpack.c.bf16 %v70, %v69
  %v76 = vpack.c.bf16 %v71, %v71
  %vm77 = vcmask 195584
  %v79 = vsel %vm77, %v74, 0
  %vm81 = vcmask 1043456
  %v83 = vsel %vm81, %v76, 0
  %85 = vmatprep.subr.bf16.mxu0 0
  %86 = vmatpush1.bf16.msra.mxu0 %v75
  %87 = vmatprep.subr.bf16.mxu0 0
  %88 = vmatpush1.bf16.msra.mxu0 %v83
  %89 = vmatprep.subr.bf16.mxu0 0
  %90 = vmatpush1.bf16.msra.mxu0 0
  %91 = vmatprep.subr.bf16.mxu0 0
  %92 = vmatpush1.bf16.msra.mxu0 0
  %93 = vmatprep.subr.bf16.mxu0 0
  %94 = vmatpush1.bf16.msra.mxu0 0
  %95 = vmatprep.subr.bf16.mxu0 0
  %96 = vmatpush1.bf16.msra.mxu0 0
  %97 = vmatprep.subr.bf16.mxu0 0
  %98 = vmatpush1.bf16.msra.mxu0 0
  %99 = vmatprep.subr.bf16.mxu0 0
  %100 = vmatpush1.bf16.msra.mxu0 0
  %101 = vmatprep.subr.bf16.mxu0 0
  %102 = vmatpush1.bf16.msra.mxu0 0
  %103 = vmatprep.subr.bf16.mxu0 0
  %104 = vmatpush1.bf16.msra.mxu0 0
  %105 = vmatprep.subr.bf16.mxu0 0
  %106 = vmatpush1.bf16.msra.mxu0 0
  %107 = vmatprep.subr.bf16.mxu0 0
  %108 = vmatpush1.bf16.msra.mxu0 0
  %109 = vmatprep.subr.bf16.mxu0 0
  %110 = vmatpush1.bf16.msra.mxu0 0
  %111 = vmatprep.subr.bf16.mxu0 0
  %112 = vmatpush1.bf16.msra.mxu0 0
  %113 = vmatprep.subr.bf16.mxu0 0
  %114 = vmatpush1.bf16.msra.mxu0 0
  %115 = vmatprep.subr.bf16.mxu0 0
  %116 = vmatpush1.bf16.msra.mxu0 0
  %117 = vmatprep.mubr.bf16.mxu0 0
  %118 = vmatmul.mubr.bf16.gmra.mrb[0].mxu0 %v79
  %v119 = vpop.f32.mrb[0].mxu0
  %v120 = vadd.f32 0.0, %v119
  %v121 = vpop.f32.mrb[0].mxu0
  %v122 = vpop.f32.mrb[0].mxu0
  %v123 = vadd.f32 0.0, %v122
  %v124 = vpop.f32.mrb[0].mxu0
  %125 = vdwg.mxu0
  %v126 = vld [vmem:[%s4] sm:$0xff]
  %v127 = vld [vmem:[%s4 + $0x8] sm:$0xff]
  %129 = vset.pattern.permute.xlu0 0
  %130 = vperm.xlu0 %129, %v126
  %v131 = vpop.permute.xlu0 %130
  %134 = vset.pattern.permute.xlu0 0
  %135 = vperm.xlu0 %134, %v127
  %v136 = vpop.permute.xlu0 %135
  %v138 = vmul.f32 %v120, %v131
  %v139 = vmul.f32 %v123, %v136
  %v140 = vld [vmem:[%s5] sm:$0xff]
  %v141 = vld [vmem:[%s5 + $0x8] sm:$0xff]
  %143 = vset.pattern.permute.xlu0 0
  %144 = vperm.xlu0 %143, %v140
  %v145 = vpop.permute.xlu0 %144
  %148 = vset.pattern.permute.xlu0 0
  %149 = vperm.xlu0 %148, %v141
  %v150 = vpop.permute.xlu0 %149
  %v152 = vadd.f32 %v138, %v145
  %v153 = vadd.f32 %v139, %v150
  %v154 = vmax.f32 %v152, 0.0
  %v155 = vmax.f32 %v153, 0.0
  %156 = vst [vmem:[%s6] sm:$0xff] %v154
  %157 = vst [vmem:[%s6 + $0x8] sm:$0xff] %v155
  // Predicated region
  $region26: #{_lambda_.17} parent=0 // pred_check
    _
  $region27: #{_lambda_.17} parent=0 // pred_check_branch
    %159 = sbr.rel (0) target = $region29
  $region28: #{_lambda_.17} parent=0 // pred_region
    _
  $region29: #{_lambda_.17} parent=0 // pred_fallthru
    _
  // Predicated region
  $region30: #{_lambda_.17} parent=0 // pred_check
    _
  $region31: #{_lambda_.17} parent=0 // pred_check_branch
    %161 = sbr.rel (0) target = $region33
  $region32: #{_lambda_.17} parent=0 // pred_region
    _
  $region33: #{_lambda_.17} parent=0 // pred_fallthru
    _

// kernel: _lambda_.19
$region0: #{_lambda_.19}
  #allocation0 [shape = 'u32[]', space=smem, size = 0x4, offset = 0x4, fixed_abs, tag = 'smem constant byte address 0x4 - core index']
  #allocation1 [shape = 'u32[144,128]{1,0:T(1,128)}', space=vmem, size = 0x12000, scoped, tag = 'internal scratch']
  %s0 = inlined_call_operand.vmem [shape: f32[16,32], index: 0, kind: input, shape index: {}]
  %s1 = inlined_call_operand.vmem [shape: f32[32,128], index: 1, kind: input, shape index: {}]
  %s2 = inlined_call_operand.vmem [shape: f32[32,1], index: 2, kind: input, shape index: {}]
  %s3 = inlined_call_operand.vmem [shape: f32[32,1], index: 3, kind: input, shape index: {}]
  %s4 = inlined_call_operand.vmem [shape: f32[16,128], index: 4, kind: output, shape index: {}]
  %s5 = sld [smem:[#allocation0]]
  $region26: #{_lambda_.19} parent=0
    _
  %s7 = ssub.s32 1, %s5
  %s8 = scalar_select 0, %s7, %s5
  // Predicated region
  $region2: #{_lambda_.19} parent=0 // pred_check
    _
  $region3: #{_lambda_.19} parent=0 // pred_check_branch
    %10 = sbr.rel (0) target = $region5
  $region4: #{_lambda_.19} parent=0 // pred_region
    _
  $region5: #{_lambda_.19} parent=0 // pred_fallthru
    _
  // Predicated region
  $region6: #{_lambda_.19} parent=0 // pred_check
    _
  $region7: #{_lambda_.19} parent=0 // pred_check_branch
    %12 = sbr.rel (0) target = $region9
  $region8: #{_lambda_.19} parent=0 // pred_region
    _
  $region9: #{_lambda_.19} parent=0 // pred_fallthru
    _
  // Predicated region
  $region10: #{_lambda_.19} parent=0 // pred_check
    _
  $region11: #{_lambda_.19} parent=0 // pred_check_branch
    %14 = sbr.rel (0) target = $region13
  $region12: #{_lambda_.19} parent=0 // pred_region
    _
  $region13: #{_lambda_.19} parent=0 // pred_fallthru
    _
  // Predicated region
  $region14: #{_lambda_.19} parent=0 // pred_check
    _
  $region15: #{_lambda_.19} parent=0 // pred_check_branch
    %16 = sbr.rel (0) target = $region17
  $region16: #{_lambda_.19} parent=0 // pred_region
    _
  $region17: #{_lambda_.19} parent=0 // pred_fallthru
    _
  %v18 = vld [vmem:[%s1] sm:$0xff]
  %v19 = vld [vmem:[%s1 + $0x8] sm:$0xff]
  %v20 = vld [vmem:[%s1 + $0x10] sm:$0xff]
  %v21 = vld [vmem:[%s1 + $0x18] sm:$0xff]
  %v22 = vld [vmem:[%s2] sm:$0xff]
  %v23 = vld [vmem:[%s2 + $0x8] sm:$0xff]
  %v24 = vld [vmem:[%s2 + $0x10] sm:$0xff]
  %v25 = vld [vmem:[%s2 + $0x18] sm:$0xff]
  %27 = vset.pattern.permute.xlu0 0
  %28 = vperm.xlu0 %27, %v22
  %v29 = vpop.permute.xlu0 %28
  %32 = vset.pattern.permute.xlu0 0
  %33 = vperm.xlu0 %32, %v23
  %v34 = vpop.permute.xlu0 %33
  %37 = vset.pattern.permute.xlu0 0
  %38 = vperm.xlu0 %37, %v24
  %v39 = vpop.permute.xlu0 %38
  %42 = vset.pattern.permute.xlu0 0
  %43 = vperm.xlu0 %42, %v25
  %v44 = vpop.permute.xlu0 %43
  %v46 = vmul.f32 %v18, %v29
  %v47 = vmul.f32 %v19, %v34
  %v48 = vmul.f32 %v20, %v39
  %v49 = vmul.f32 %v21, %v44
  %v50 = vld [vmem:[%s3] sm:$0xff]
  %v51 = vld [vmem:[%s3 + $0x8] sm:$0xff]
  %v52 = vld [vmem:[%s3 + $0x10] sm:$0xff]
  %v53 = vld [vmem:[%s3 + $0x18] sm:$0xff]
  %55 = vset.pattern.permute.xlu0 0
  %56 = vperm.xlu0 %55, %v50
  %v57 = vpop.permute.xlu0 %56
  %60 = vset.pattern.permute.xlu0 0
  %61 = vperm.xlu0 %60, %v51
  %v62 = vpop.permute.xlu0 %61
  %65 = vset.pattern.permute.xlu0 0
  %66 = vperm.xlu0 %65, %v52
  %v67 = vpop.permute.xlu0 %66
  %70 = vset.pattern.permute.xlu0 0
  %71 = vperm.xlu0 %70, %v53
  %v72 = vpop.permute.xlu0 %71
  %v74 = vadd.f32 %v46, %v57
  %v75 = vadd.f32 %v47, %v62
  %v76 = vadd.f32 %v48, %v67
  %v77 = vadd.f32 %v49, %v72
  %v78 = vmax.f32 %v74, 0.0
  %v79 = vmax.f32 %v75, 0.0
  %v80 = vmax.f32 %v76, 0.0
  %v81 = vmax.f32 %v77, 0.0
  %v82 = vld [vmem:[%s0] sm:$0xff]
  %v83 = vld [vmem:[%s0 + $0x8] sm:$0xff]
  %v84 = vpack.c.bf16 %v83, %v82
  %v85 = vpack.c.bf16 %v79, %v78
  %v86 = vpack.c.bf16 %v81, %v80
  %vm87 = vcmask 261120
  %v89 = vsel %vm87, %v84, 0
  %91 = vmatprep.subr.bf16.mxu0 0
  %92 = vmatpush1.bf16.msra.mxu0 %v85
  %93 = vmatprep.subr.bf16.mxu0 0
  %94 = vmatpush1.bf16.msra.mxu0 %v86
  %95 = vmatprep.subr.bf16.mxu0 0
  %96 = vmatpush1.bf16.msra.mxu0 0
  %97 = vmatprep.subr.bf16.mxu0 0
  %98 = vmatpush1.bf16.msra.mxu0 0
  %99 = vmatprep.subr.bf16.mxu0 0
  %100 = vmatpush1.bf16.msra.mxu0 0
  %101 = vmatprep.subr.bf16.mxu0 0
  %102 = vmatpush1.bf16.msra.mxu0 0
  %103 = vmatprep.subr.bf16.mxu0 0
  %104 = vmatpush1.bf16.msra.mxu0 0
  %105 = vmatprep.subr.bf16.mxu0 0
  %106 = vmatpush1.bf16.msra.mxu0 0
  %107 = vmatprep.subr.bf16.mxu0 0
  %108 = vmatpush1.bf16.msra.mxu0 0
  %109 = vmatprep.subr.bf16.mxu0 0
  %110 = vmatpush1.bf16.msra.mxu0 0
  %111 = vmatprep.subr.bf16.mxu0 0
  %112 = vmatpush1.bf16.msra.mxu0 0
  %113 = vmatprep.subr.bf16.mxu0 0
  %114 = vmatpush1.bf16.msra.mxu0 0
  %115 = vmatprep.subr.bf16.mxu0 0
  %116 = vmatpush1.bf16.msra.mxu0 0
  %117 = vmatprep.subr.bf16.mxu0 0
  %118 = vmatpush1.bf16.msra.mxu0 0
  %119 = vmatprep.subr.bf16.mxu0 0
  %120 = vmatpush1.bf16.msra.mxu0 0
  %121 = vmatprep.subr.bf16.mxu0 0
  %122 = vmatpush1.bf16.msra.mxu0 0
  %123 = vmatprep.mubr.bf16.mxu0 0
  %124 = vmatmul.mubr.bf16.gmra.mrb[0].mxu0 %v89
  %v125 = vpop.f32.mrb[0].mxu0
  %v126 = vadd.f32 0.0, %v125
  %v127 = vpop.f32.mrb[0].mxu0
  %v128 = vpop.f32.mrb[0].mxu0
  %v129 = vadd.f32 0.0, %v128
  %v130 = vpop.f32.mrb[0].mxu0
  %131 = vdwg.mxu0
  %132 = vst [vmem:[%s4] sm:$0xff] %v126
  %133 = vst [vmem:[%s4 + $0x8] sm:$0xff] %v129
  // Predicated region
  $region18: #{_lambda_.19} parent=0 // pred_check
    _
  $region19: #{_lambda_.19} parent=0 // pred_check_branch
    %135 = sbr.rel (0) target = $region21
  $region20: #{_lambda_.19} parent=0 // pred_region
    _
  $region21: #{_lambda_.19} parent=0 // pred_fallthru
    _
  // Predicated region
  $region22: #{_lambda_.19} parent=0 // pred_check
    _
  $region23: #{_lambda_.19} parent=0 // pred_check_branch
    %137 = sbr.rel (0) target = $region25
  $region24: #{_lambda_.19} parent=0 // pred_region
    _
  $region25: #{_lambda_.19} parent=0 // pred_fallthru
    _

// kernel: _lambda_.20
$region0: #{_lambda_.20}
  #allocation0 [shape = 'u32[]', space=smem, size = 0x4, offset = 0x4, fixed_abs, tag = 'smem constant byte address 0x4 - core index']
  #allocation1 [shape = 'u32[144,128]{1,0:T(1,128)}', space=vmem, size = 0x12000, scoped, tag = 'internal scratch']
  %s0 = inlined_call_operand.vmem [shape: f32[16,2,4,4], index: 0, kind: input, shape index: {}]
  %s1 = inlined_call_operand.vmem [shape: f32[16,2,4,4], index: 1, kind: input, shape index: {}]
  %s2 = inlined_call_operand.vmem [shape: f32[16,2,4,4], index: 2, kind: input, shape index: {}]
  %s3 = inlined_call_operand.vmem [shape: f32[16,2,4,4], index: 3, kind: input, shape index: {}]
  %s4 = inlined_call_operand.vmem [shape: f32[16,2,4,4], index: 4, kind: output, shape index: {}]
  %s5 = sld [smem:[#allocation0]]
  $region26: #{_lambda_.20} parent=0
    _
  %s7 = ssub.s32 1, %s5
  %s8 = scalar_select 0, %s7, %s5
  // Predicated region
  $region2: #{_lambda_.20} parent=0 // pred_check
    _
  $region3: #{_lambda_.20} parent=0 // pred_check_branch
    %10 = sbr.rel (0) target = $region5
  $region4: #{_lambda_.20} parent=0 // pred_region
    _
  $region5: #{_lambda_.20} parent=0 // pred_fallthru
    _
  // Predicated region
  $region6: #{_lambda_.20} parent=0 // pred_check
    _
  $region7: #{_lambda_.20} parent=0 // pred_check_branch
    %12 = sbr.rel (0) target = $region9
  $region8: #{_lambda_.20} parent=0 // pred_region
    _
  $region9: #{_lambda_.20} parent=0 // pred_fallthru
    _
  // Predicated region
  $region10: #{_lambda_.20} parent=0 // pred_check
    _
  $region11: #{_lambda_.20} parent=0 // pred_check_branch
    %14 = sbr.rel (0) target = $region13
  $region12: #{_lambda_.20} parent=0 // pred_region
    _
  $region13: #{_lambda_.20} parent=0 // pred_fallthru
    _
  // Predicated region
  $region14: #{_lambda_.20} parent=0 // pred_check
    _
  $region15: #{_lambda_.20} parent=0 // pred_check_branch
    %16 = sbr.rel (0) target = $region17
  $region16: #{_lambda_.20} parent=0 // pred_region
    _
  $region17: #{_lambda_.20} parent=0 // pred_fallthru
    _
  %v17 = vld [vmem:[%s0] sm:$0xf]
  %v18 = vld [vmem:[%s0 + $0x4] sm:$0xf]
  %v19 = vld [vmem:[%s0 + $0x8] sm:$0xf]
  %v20 = vld [vmem:[%s0 + $0xc] sm:$0xf]
  %v21 = vld [vmem:[%s0 + $0x10] sm:$0xf]
  %v22 = vld [vmem:[%s0 + $0x14] sm:$0xf]
  %v23 = vld [vmem:[%s0 + $0x18] sm:$0xf]
  %v24 = vld [vmem:[%s0 + $0x1c] sm:$0xf]
  %v25 = vld [vmem:[%s0 + $0x20] sm:$0xf]
  %v26 = vld [vmem:[%s0 + $0x24] sm:$0xf]
  %v27 = vld [vmem:[%s0 + $0x28] sm:$0xf]
  %v28 = vld [vmem:[%s0 + $0x2c] sm:$0xf]
  %v29 = vld [vmem:[%s0 + $0x30] sm:$0xf]
  %v30 = vld [vmem:[%s0 + $0x34] sm:$0xf]
  %v31 = vld [vmem:[%s0 + $0x38] sm:$0xf]
  %v32 = vld [vmem:[%s0 + $0x3c] sm:$0xf]
  %v33 = vld [vmem:[%s0 + $0x40] sm:$0xf]
  %v34 = vld [vmem:[%s0 + $0x44] sm:$0xf]
  %v35 = vld [vmem:[%s0 + $0x48] sm:$0xf]
  %v36 = vld [vmem:[%s0 + $0x4c] sm:$0xf]
  %v37 = vld [vmem:[%s0 + $0x50] sm:$0xf]
  %v38 = vld [vmem:[%s0 + $0x54] sm:$0xf]
  %v39 = vld [vmem:[%s0 + $0x58] sm:$0xf]
  %v40 = vld [vmem:[%s0 + $0x5c] sm:$0xf]
  %v41 = vld [vmem:[%s0 + $0x60] sm:$0xf]
  %v42 = vld [vmem:[%s0 + $0x64] sm:$0xf]
  %v43 = vld [vmem:[%s0 + $0x68] sm:$0xf]
  %v44 = vld [vmem:[%s0 + $0x6c] sm:$0xf]
  %v45 = vld [vmem:[%s0 + $0x70] sm:$0xf]
  %v46 = vld [vmem:[%s0 + $0x74] sm:$0xf]
  %v47 = vld [vmem:[%s0 + $0x78] sm:$0xf]
  %v48 = vld [vmem:[%s0 + $0x7c] sm:$0xf]
  %v49 = vld [vmem:[%s1] sm:$0xf]
  %v50 = vld [vmem:[%s1 + $0x4] sm:$0xf]
  %v51 = vld [vmem:[%s1 + $0x8] sm:$0xf]
  %v52 = vld [vmem:[%s1 + $0xc] sm:$0xf]
  %v53 = vld [vmem:[%s1 + $0x10] sm:$0xf]
  %v54 = vld [vmem:[%s1 + $0x14] sm:$0xf]
  %v55 = vld [vmem:[%s1 + $0x18] sm:$0xf]
  %v56 = vld [vmem:[%s1 + $0x1c] sm:$0xf]
  %v57 = vld [vmem:[%s1 + $0x20] sm:$0xf]
  %v58 = vld [vmem:[%s1 + $0x24] sm:$0xf]
  %v59 = vld [vmem:[%s1 + $0x28] sm:$0xf]
  %v60 = vld [vmem:[%s1 + $0x2c] sm:$0xf]
  %v61 = vld [vmem:[%s1 + $0x30] sm:$0xf]
  %v62 = vld [vmem:[%s1 + $0x34] sm:$0xf]
  %v63 = vld [vmem:[%s1 + $0x38] sm:$0xf]
  %v64 = vld [vmem:[%s1 + $0x3c] sm:$0xf]
  %v65 = vld [vmem:[%s1 + $0x40] sm:$0xf]
  %v66 = vld [vmem:[%s1 + $0x44] sm:$0xf]
  %v67 = vld [vmem:[%s1 + $0x48] sm:$0xf]
  %v68 = vld [vmem:[%s1 + $0x4c] sm:$0xf]
  %v69 = vld [vmem:[%s1 + $0x50] sm:$0xf]
  %v70 = vld [vmem:[%s1 + $0x54] sm:$0xf]
  %v71 = vld [vmem:[%s1 + $0x58] sm:$0xf]
  %v72 = vld [vmem:[%s1 + $0x5c] sm:$0xf]
  %v73 = vld [vmem:[%s1 + $0x60] sm:$0xf]
  %v74 = vld [vmem:[%s1 + $0x64] sm:$0xf]
  %v75 = vld [vmem:[%s1 + $0x68] sm:$0xf]
  %v76 = vld [vmem:[%s1 + $0x6c] sm:$0xf]
  %v77 = vld [vmem:[%s1 + $0x70] sm:$0xf]
  %v78 = vld [vmem:[%s1 + $0x74] sm:$0xf]
  %v79 = vld [vmem:[%s1 + $0x78] sm:$0xf]
  %v80 = vld [vmem:[%s1 + $0x7c] sm:$0xf]
  %v81 = vadd.f32 %v17, %v49
  %v82 = vadd.f32 %v18, %v50
  %v83 = vadd.f32 %v19, %v51
  %v84 = vadd.f32 %v20, %v52
  %v85 = vadd.f32 %v21, %v53
  %v86 = vadd.f32 %v22, %v54
  %v87 = vadd.f32 %v23, %v55
  %v88 = vadd.f32 %v24, %v56
  %v89 = vadd.f32 %v25, %v57
  %v90 = vadd.f32 %v26, %v58
  %v91 = vadd.f32 %v27, %v59
  %v92 = vadd.f32 %v28, %v60
  %v93 = vadd.f32 %v29, %v61
  %v94 = vadd.f32 %v30, %v62
  %v95 = vadd.f32 %v31, %v63
  %v96 = vadd.f32 %v32, %v64
  %v97 = vadd.f32 %v33, %v65
  %v98 = vadd.f32 %v34, %v66
  %v99 = vadd.f32 %v35, %v67
  %v100 = vadd.f32 %v36, %v68
  %v101 = vadd.f32 %v37, %v69
  %v102 = vadd.f32 %v38, %v70
  %v103 = vadd.f32 %v39, %v71
  %v104 = vadd.f32 %v40, %v72
  %v105 = vadd.f32 %v41, %v73
  %v106 = vadd.f32 %v42, %v74
  %v107 = vadd.f32 %v43, %v75
  %v108 = vadd.f32 %v44, %v76
  %v109 = vadd.f32 %v45, %v77
  %v110 = vadd.f32 %v46, %v78
  %v111 = vadd.f32 %v47, %v79
  %v112 = vadd.f32 %v48, %v80
  %v113 = vld [vmem:[%s2] sm:$0xf]
  %v114 = vld [vmem:[%s2 + $0x4] sm:$0xf]
  %v115 = vld [vmem:[%s2 + $0x8] sm:$0xf]
  %v116 = vld [vmem:[%s2 + $0xc] sm:$0xf]
  %v117 = vld [vmem:[%s2 + $0x10] sm:$0xf]
  %v118 = vld [vmem:[%s2 + $0x14] sm:$0xf]
  %v119 = vld [vmem:[%s2 + $0x18] sm:$0xf]
  %v120 = vld [vmem:[%s2 + $0x1c] sm:$0xf]
  %v121 = vld [vmem:[%s2 + $0x20] sm:$0xf]
  %v122 = vld [vmem:[%s2 + $0x24] sm:$0xf]
  %v123 = vld [vmem:[%s2 + $0x28] sm:$0xf]
  %v124 = vld [vmem:[%s2 + $0x2c] sm:$0xf]
  %v125 = vld [vmem:[%s2 + $0x30] sm:$0xf]
  %v126 = vld [vmem:[%s2 + $0x34] sm:$0xf]
  %v127 = vld [vmem:[%s2 + $0x38] sm:$0xf]
  %v128 = vld [vmem:[%s2 + $0x3c] sm:$0xf]
  %v129 = vld [vmem:[%s2 + $0x40] sm:$0xf]
  %v130 = vld [vmem:[%s2 + $0x44] sm:$0xf]
  %v131 = vld [vmem:[%s2 + $0x48] sm:$0xf]
  %v132 = vld [vmem:[%s2 + $0x4c] sm:$0xf]
  %v133 = vld [vmem:[%s2 + $0x50] sm:$0xf]
  %v134 = vld [vmem:[%s2 + $0x54] sm:$0xf]
  %v135 = vld [vmem:[%s2 + $0x58] sm:$0xf]
  %v136 = vld [vmem:[%s2 + $0x5c] sm:$0xf]
  %v137 = vld [vmem:[%s2 + $0x60] sm:$0xf]
  %v138 = vld [vmem:[%s2 + $0x64] sm:$0xf]
  %v139 = vld [vmem:[%s2 + $0x68] sm:$0xf]
  %v140 = vld [vmem:[%s2 + $0x6c] sm:$0xf]
  %v141 = vld [vmem:[%s2 + $0x70] sm:$0xf]
  %v142 = vld [vmem:[%s2 + $0x74] sm:$0xf]
  %v143 = vld [vmem:[%s2 + $0x78] sm:$0xf]
  %v144 = vld [vmem:[%s2 + $0x7c] sm:$0xf]
  %v145 = vadd.f32 %v81, %v113
  %v146 = vadd.f32 %v82, %v114
  %v147 = vadd.f32 %v83, %v115
  %v148 = vadd.f32 %v84, %v116
  %v149 = vadd.f32 %v85, %v117
  %v150 = vadd.f32 %v86, %v118
  %v151 = vadd.f32 %v87, %v119
  %v152 = vadd.f32 %v88, %v120
  %v153 = vadd.f32 %v89, %v121
  %v154 = vadd.f32 %v90, %v122
  %v155 = vadd.f32 %v91, %v123
  %v156 = vadd.f32 %v92, %v124
  %v157 = vadd.f32 %v93, %v125
  %v158 = vadd.f32 %v94, %v126
  %v159 = vadd.f32 %v95, %v127
  %v160 = vadd.f32 %v96, %v128
  %v161 = vadd.f32 %v97, %v129
  %v162 = vadd.f32 %v98, %v130
  %v163 = vadd.f32 %v99, %v131
  %v164 = vadd.f32 %v100, %v132
  %v165 = vadd.f32 %v101, %v133
  %v166 = vadd.f32 %v102, %v134
  %v167 = vadd.f32 %v103, %v135
  %v168 = vadd.f32 %v104, %v136
  %v169 = vadd.f32 %v105, %v137
  %v170 = vadd.f32 %v106, %v138
  %v171 = vadd.f32 %v107, %v139
  %v172 = vadd.f32 %v108, %v140
  %v173 = vadd.f32 %v109, %v141
  %v174 = vadd.f32 %v110, %v142
  %v175 = vadd.f32 %v111, %v143
  %v176 = vadd.f32 %v112, %v144
  %v177 = vld [vmem:[%s3] sm:$0xf]
  %v178 = vld [vmem:[%s3 + $0x4] sm:$0xf]
  %v179 = vld [vmem:[%s3 + $0x8] sm:$0xf]
  %v180 = vld [vmem:[%s3 + $0xc] sm:$0xf]
  %v181 = vld [vmem:[%s3 + $0x10] sm:$0xf]
  %v182 = vld [vmem:[%s3 + $0x14] sm:$0xf]
  %v183 = vld [vmem:[%s3 + $0x18] sm:$0xf]
  %v184 = vld [vmem:[%s3 + $0x1c] sm:$0xf]
  %v185 = vld [vmem:[%s3 + $0x20] sm:$0xf]
  %v186 = vld [vmem:[%s3 + $0x24] sm:$0xf]
  %v187 = vld [vmem:[%s3 + $0x28] sm:$0xf]
  %v188 = vld [vmem:[%s3 + $0x2c] sm:$0xf]
  %v189 = vld [vmem:[%s3 + $0x30] sm:$0xf]
  %v190 = vld [vmem:[%s3 + $0x34] sm:$0xf]
  %v191 = vld [vmem:[%s3 + $0x38] sm:$0xf]
  %v192 = vld [vmem:[%s3 + $0x3c] sm:$0xf]
  %v193 = vld [vmem:[%s3 + $0x40] sm:$0xf]
  %v194 = vld [vmem:[%s3 + $0x44] sm:$0xf]
  %v195 = vld [vmem:[%s3 + $0x48] sm:$0xf]
  %v196 = vld [vmem:[%s3 + $0x4c] sm:$0xf]
  %v197 = vld [vmem:[%s3 + $0x50] sm:$0xf]
  %v198 = vld [vmem:[%s3 + $0x54] sm:$0xf]
  %v199 = vld [vmem:[%s3 + $0x58] sm:$0xf]
  %v200 = vld [vmem:[%s3 + $0x5c] sm:$0xf]
  %v201 = vld [vmem:[%s3 + $0x60] sm:$0xf]
  %v202 = vld [vmem:[%s3 + $0x64] sm:$0xf]
  %v203 = vld [vmem:[%s3 + $0x68] sm:$0xf]
  %v204 = vld [vmem:[%s3 + $0x6c] sm:$0xf]
  %v205 = vld [vmem:[%s3 + $0x70] sm:$0xf]
  %v206 = vld [vmem:[%s3 + $0x74] sm:$0xf]
  %v207 = vld [vmem:[%s3 + $0x78] sm:$0xf]
  %v208 = vld [vmem:[%s3 + $0x7c] sm:$0xf]
  %v209 = vadd.f32 %v145, %v177
  %v210 = vadd.f32 %v146, %v178
  %v211 = vadd.f32 %v147, %v179
  %v212 = vadd.f32 %v148, %v180
  %v213 = vadd.f32 %v149, %v181
  %v214 = vadd.f32 %v150, %v182
  %v215 = vadd.f32 %v151, %v183
  %v216 = vadd.f32 %v152, %v184
  %v217 = vadd.f32 %v153, %v185
  %v218 = vadd.f32 %v154, %v186
  %v219 = vadd.f32 %v155, %v187
  %v220 = vadd.f32 %v156, %v188
  %v221 = vadd.f32 %v157, %v189
  %v222 = vadd.f32 %v158, %v190
  %v223 = vadd.f32 %v159, %v191
  %v224 = vadd.f32 %v160, %v192
  %v225 = vadd.f32 %v161, %v193
  %v226 = vadd.f32 %v162, %v194
  %v227 = vadd.f32 %v163, %v195
  %v228 = vadd.f32 %v164, %v196
  %v229 = vadd.f32 %v165, %v197
  %v230 = vadd.f32 %v166, %v198
  %v231 = vadd.f32 %v167, %v199
  %v232 = vadd.f32 %v168, %v200
  %v233 = vadd.f32 %v169, %v201
  %v234 = vadd.f32 %v170, %v202
  %v235 = vadd.f32 %v171, %v203
  %v236 = vadd.f32 %v172, %v204
  %v237 = vadd.f32 %v173, %v205
  %v238 = vadd.f32 %v174, %v206
  %v239 = vadd.f32 %v175, %v207
  %v240 = vadd.f32 %v176, %v208
  %v241 = vmul.f32 %v209, 0.25
  %v242 = vmul.f32 %v210, 0.25
  %v243 = vmul.f32 %v211, 0.25
  %v244 = vmul.f32 %v212, 0.25
  %v245 = vmul.f32 %v213, 0.25
  %v246 = vmul.f32 %v214, 0.25
  %v247 = vmul.f32 %v215, 0.25
  %v248 = vmul.f32 %v216, 0.25
  %v249 = vmul.f32 %v217, 0.25
  %v250 = vmul.f32 %v218, 0.25
  %v251 = vmul.f32 %v219, 0.25
  %v252 = vmul.f32 %v220, 0.25
  %v253 = vmul.f32 %v221, 0.25
  %v254 = vmul.f32 %v222, 0.25
  %v255 = vmul.f32 %v223, 0.25
  %v256 = vmul.f32 %v224, 0.25
  %v257 = vmul.f32 %v225, 0.25
  %v258 = vmul.f32 %v226, 0.25
  %v259 = vmul.f32 %v227, 0.25
  %v260 = vmul.f32 %v228, 0.25
  %v261 = vmul.f32 %v229, 0.25
  %v262 = vmul.f32 %v230, 0.25
  %v263 = vmul.f32 %v231, 0.25
  %v264 = vmul.f32 %v232, 0.25
  %v265 = vmul.f32 %v233, 0.25
  %v266 = vmul.f32 %v234, 0.25
  %v267 = vmul.f32 %v235, 0.25
  %v268 = vmul.f32 %v236, 0.25
  %v269 = vmul.f32 %v237, 0.25
  %v270 = vmul.f32 %v238, 0.25
  %v271 = vmul.f32 %v239, 0.25
  %v272 = vmul.f32 %v240, 0.25
  %vm273 = vcmask 27648
  %274 = vst.msk [vmem:[%s4] sm:$0xf] %vm273, %v241
  %275 = vst.msk [vmem:[%s4 + $0x4] sm:$0xf] %vm273, %v242
  %276 = vst.msk [vmem:[%s4 + $0x8] sm:$0xf] %vm273, %v243
  %277 = vst.msk [vmem:[%s4 + $0xc] sm:$0xf] %vm273, %v244
  %278 = vst.msk [vmem:[%s4 + $0x10] sm:$0xf] %vm273, %v245
  %279 = vst.msk [vmem:[%s4 + $0x14] sm:$0xf] %vm273, %v246
  %280 = vst.msk [vmem:[%s4 + $0x18] sm:$0xf] %vm273, %v247
  %281 = vst.msk [vmem:[%s4 + $0x1c] sm:$0xf] %vm273, %v248
  %282 = vst.msk [vmem:[%s4 + $0x20] sm:$0xf] %vm273, %v249
  %283 = vst.msk [vmem:[%s4 + $0x24] sm:$0xf] %vm273, %v250
  %284 = vst.msk [vmem:[%s4 + $0x28] sm:$0xf] %vm273, %v251
  %285 = vst.msk [vmem:[%s4 + $0x2c] sm:$0xf] %vm273, %v252
  %286 = vst.msk [vmem:[%s4 + $0x30] sm:$0xf] %vm273, %v253
  %287 = vst.msk [vmem:[%s4 + $0x34] sm:$0xf] %vm273, %v254
  %288 = vst.msk [vmem:[%s4 + $0x38] sm:$0xf] %vm273, %v255
  %289 = vst.msk [vmem:[%s4 + $0x3c] sm:$0xf] %vm273, %v256
  %290 = vst.msk [vmem:[%s4 + $0x40] sm:$0xf] %vm273, %v257
  %291 = vst.msk [vmem:[%s4 + $0x44] sm:$0xf] %vm273, %v258
  %292 = vst.msk [vmem:[%s4 + $0x48] sm:$0xf] %vm273, %v259
  %293 = vst.msk [vmem:[%s4 + $0x4c] sm:$0xf] %vm273, %v260
  %294 = vst.msk [vmem:[%s4 + $0x50] sm:$0xf] %vm273, %v261
  %295 = vst.msk [vmem:[%s4 + $0x54] sm:$0xf] %vm273, %v262
  %296 = vst.msk [vmem:[%s4 + $0x58] sm:$0xf] %vm273, %v263
  %297 = vst.msk [vmem:[%s4 + $0x5c] sm:$0xf] %vm273, %v264
  %298 = vst.msk [vmem:[%s4 + $0x60] sm:$0xf] %vm273, %v265
  %299 = vst.msk [vmem:[%s4 + $0x64] sm:$0xf] %vm273, %v266
  %300 = vst.msk [vmem:[%s4 + $0x68] sm:$0xf] %vm273, %v267
  %301 = vst.msk [vmem:[%s4 + $0x6c] sm:$0xf] %vm273, %v268
  %302 = vst.msk [vmem:[%s4 + $0x70] sm:$0xf] %vm273, %v269
  %303 = vst.msk [vmem:[%s4 + $0x74] sm:$0xf] %vm273, %v270
  %304 = vst.msk [vmem:[%s4 + $0x78] sm:$0xf] %vm273, %v271
  %305 = vst.msk [vmem:[%s4 + $0x7c] sm:$0xf] %vm273, %v272
  // Predicated region
  $region18: #{_lambda_.20} parent=0 // pred_check
    _
  $region19: #{_lambda_.20} parent=0 // pred_check_branch
    %307 = sbr.rel (0) target = $region21
  $region20: #{_lambda_.20} parent=0 // pred_region
    _
  $region21: #{_lambda_.20} parent=0 // pred_fallthru
    _
  // Predicated region
  $region22: #{_lambda_.20} parent=0 // pred_check
    _
  $region23: #{_lambda_.20} parent=0 // pred_check_branch
    %309 = sbr.rel (0) target = $region25
  $region24: #{_lambda_.20} parent=0 // pred_region
    _
  $region25: #{_lambda_.20} parent=0 // pred_fallthru
    _

// kernel: _lambda_.21
$region0: #{_lambda_.21}
  #allocation0 [shape = 'u32[]', space=smem, size = 0x4, offset = 0x4, fixed_abs, tag = 'smem constant byte address 0x4 - core index']
  #allocation1 [shape = 'u32[144,128]{1,0:T(1,128)}', space=vmem, size = 0x12000, scoped, tag = 'internal scratch']
  %s0 = inlined_call_operand.vmem [shape: f32[16,16], index: 0, kind: input, shape index: {}]
  %s1 = inlined_call_operand.vmem [shape: f32[32,32], index: 1, kind: input, shape index: {}]
  %s2 = inlined_call_operand.vmem [shape: f32[16,1], index: 2, kind: input, shape index: {}]
  %s3 = inlined_call_operand.vmem [shape: f32[16,1], index: 3, kind: input, shape index: {}]
  %s4 = inlined_call_operand.vmem [shape: f32[16,1], index: 4, kind: input, shape index: {}]
  %s5 = inlined_call_operand.vmem [shape: f32[16,1], index: 5, kind: input, shape index: {}]
  %s6 = inlined_call_operand.vmem [shape: f32[16,32], index: 6, kind: output, shape index: {}]
  %s7 = sld [smem:[#allocation0]]
  $region34: #{_lambda_.21} parent=0
    _
  %s9 = ssub.s32 1, %s7
  %s10 = scalar_select 0, %s9, %s7
  // Predicated region
  $region2: #{_lambda_.21} parent=0 // pred_check
    _
  $region3: #{_lambda_.21} parent=0 // pred_check_branch
    %12 = sbr.rel (0) target = $region5
  $region4: #{_lambda_.21} parent=0 // pred_region
    _
  $region5: #{_lambda_.21} parent=0 // pred_fallthru
    _
  // Predicated region
  $region6: #{_lambda_.21} parent=0 // pred_check
    _
  $region7: #{_lambda_.21} parent=0 // pred_check_branch
    %14 = sbr.rel (0) target = $region9
  $region8: #{_lambda_.21} parent=0 // pred_region
    _
  $region9: #{_lambda_.21} parent=0 // pred_fallthru
    _
  // Predicated region
  $region10: #{_lambda_.21} parent=0 // pred_check
    _
  $region11: #{_lambda_.21} parent=0 // pred_check_branch
    %16 = sbr.rel (0) target = $region13
  $region12: #{_lambda_.21} parent=0 // pred_region
    _
  $region13: #{_lambda_.21} parent=0 // pred_fallthru
    _
  // Predicated region
  $region14: #{_lambda_.21} parent=0 // pred_check
    _
  $region15: #{_lambda_.21} parent=0 // pred_check_branch
    %18 = sbr.rel (0) target = $region17
  $region16: #{_lambda_.21} parent=0 // pred_region
    _
  $region17: #{_lambda_.21} parent=0 // pred_fallthru
    _
  // Predicated region
  $region18: #{_lambda_.21} parent=0 // pred_check
    _
  $region19: #{_lambda_.21} parent=0 // pred_check_branch
    %20 = sbr.rel (0) target = $region21
  $region20: #{_lambda_.21} parent=0 // pred_region
    _
  $region21: #{_lambda_.21} parent=0 // pred_fallthru
    _
  // Predicated region
  $region22: #{_lambda_.21} parent=0 // pred_check
    _
  $region23: #{_lambda_.21} parent=0 // pred_check_branch
    %22 = sbr.rel (0) target = $region25
  $region24: #{_lambda_.21} parent=0 // pred_region
    _
  $region25: #{_lambda_.21} parent=0 // pred_fallthru
    _
  %v24 = vld [vmem:[%s1] sm:$0xff]
  %v25 = vld [vmem:[%s1 + $0x8] sm:$0xff]
  %v26 = vld [vmem:[%s2] sm:$0xff]
  %v27 = vld [vmem:[%s2 + $0x8] sm:$0xff]
  %29 = vset.pattern.permute.xlu0 0
  %30 = vperm.xlu0 %29, %v26
  %v31 = vpop.permute.xlu0 %30
  %34 = vset.pattern.permute.xlu0 0
  %35 = vperm.xlu0 %34, %v27
  %v36 = vpop.permute.xlu0 %35
  %v38 = vmul.f32 %v24, %v31
  %v39 = vmul.f32 %v25, %v36
  %v40 = vld [vmem:[%s3] sm:$0xff]
  %v41 = vld [vmem:[%s3 + $0x8] sm:$0xff]
  %43 = vset.pattern.permute.xlu0 0
  %44 = vperm.xlu0 %43, %v40
  %v45 = vpop.permute.xlu0 %44
  %48 = vset.pattern.permute.xlu0 0
  %49 = vperm.xlu0 %48, %v41
  %v50 = vpop.permute.xlu0 %49
  %v52 = vadd.f32 %v38, %v45
  %v53 = vadd.f32 %v39, %v50
  %v54 = vmax.f32 %v52, 0.0
  %v55 = vmax.f32 %v53, 0.0
  %v56 = vld [vmem:[%s0] sm:$0xff]
  %v57 = vld [vmem:[%s0 + $0x8] sm:$0xff]
  %v58 = vpack.c.bf16 %v57, %v56
  %v59 = vpack.c.bf16 %v55, %v54
  %vm60 = vcmask 130048
  %v62 = vsel %vm60, %v58, 0
  %64 = vmatprep.subr.bf16.mxu0 0
  %65 = vmatpush1.bf16.msra.mxu0 %v59
  %66 = vmatprep.subr.bf16.mxu0 0
  %67 = vmatpush1.bf16.msra.mxu0 0
  %68 = vmatprep.subr.bf16.mxu0 0
  %69 = vmatpush1.bf16.msra.mxu0 0
  %70 = vmatprep.subr.bf16.mxu0 0
  %71 = vmatpush1.bf16.msra.mxu0 0
  %72 = vmatprep.subr.bf16.mxu0 0
  %73 = vmatpush1.bf16.msra.mxu0 0
  %74 = vmatprep.subr.bf16.mxu0 0
  %75 = vmatpush1.bf16.msra.mxu0 0
  %76 = vmatprep.subr.bf16.mxu0 0
  %77 = vmatpush1.bf16.msra.mxu0 0
  %78 = vmatprep.subr.bf16.mxu0 0
  %79 = vmatpush1.bf16.msra.mxu0 0
  %80 = vmatprep.subr.bf16.mxu0 0
  %81 = vmatpush1.bf16.msra.mxu0 0
  %82 = vmatprep.subr.bf16.mxu0 0
  %83 = vmatpush1.bf16.msra.mxu0 0
  %84 = vmatprep.subr.bf16.mxu0 0
  %85 = vmatpush1.bf16.msra.mxu0 0
  %86 = vmatprep.subr.bf16.mxu0 0
  %87 = vmatpush1.bf16.msra.mxu0 0
  %88 = vmatprep.subr.bf16.mxu0 0
  %89 = vmatpush1.bf16.msra.mxu0 0
  %90 = vmatprep.subr.bf16.mxu0 0
  %91 = vmatpush1.bf16.msra.mxu0 0
  %92 = vmatprep.subr.bf16.mxu0 0
  %93 = vmatpush1.bf16.msra.mxu0 0
  %94 = vmatprep.subr.bf16.mxu0 0
  %95 = vmatpush1.bf16.msra.mxu0 0
  %96 = vmatprep.mubr.bf16.mxu0 0
  %97 = vmatmul.mubr.bf16.gmra.mrb[0].mxu0 %v62
  %v98 = vpop.f32.mrb[0].mxu0
  %v99 = vadd.f32 0.0, %v98
  %v100 = vpop.f32.mrb[0].mxu0
  %v101 = vpop.f32.mrb[0].mxu0
  %v102 = vadd.f32 0.0, %v101
  %v103 = vpop.f32.mrb[0].mxu0
  %104 = vdwg.mxu0
  %v105 = vld [vmem:[%s4] sm:$0xff]
  %v106 = vld [vmem:[%s4 + $0x8] sm:$0xff]
  %108 = vset.pattern.permute.xlu0 0
  %109 = vperm.xlu0 %108, %v105
  %v110 = vpop.permute.xlu0 %109
  %113 = vset.pattern.permute.xlu0 0
  %114 = vperm.xlu0 %113, %v106
  %v115 = vpop.permute.xlu0 %114
  %v117 = vmul.f32 %v99, %v110
  %v118 = vmul.f32 %v102, %v115
  %v119 = vld [vmem:[%s5] sm:$0xff]
  %v120 = vld [vmem:[%s5 + $0x8] sm:$0xff]
  %122 = vset.pattern.permute.xlu0 0
  %123 = vperm.xlu0 %122, %v119
  %v124 = vpop.permute.xlu0 %123
  %127 = vset.pattern.permute.xlu0 0
  %128 = vperm.xlu0 %127, %v120
  %v129 = vpop.permute.xlu0 %128
  %v131 = vadd.f32 %v117, %v124
  %v132 = vadd.f32 %v118, %v129
  %v133 = vmax.f32 %v131, 0.0
  %v134 = vmax.f32 %v132, 0.0
  %vm135 = vcmask 261120
  %136 = vst.msk [vmem:[%s6] sm:$0xff] %vm135, %v133
  %137 = vst.msk [vmem:[%s6 + $0x8] sm:$0xff] %vm135, %v134
  // Predicated region
  $region26: #{_lambda_.21} parent=0 // pred_check
    _
  $region27: #{_lambda_.21} parent=0 // pred_check_branch
    %139 = sbr.rel (0) target = $region29
  $region28: #{_lambda_.21} parent=0 // pred_region
    _
  $region29: #{_lambda_.21} parent=0 // pred_fallthru
    _
  // Predicated region
  $region30: #{_lambda_.21} parent=0 // pred_check
    _
  $region31: #{_lambda_.21} parent=0 // pred_check_branch
    %141 = sbr.rel (0) target = $region33
  $region32: #{_lambda_.21} parent=0 // pred_region
    _
  $region33: #{_lambda_.21} parent=0 // pred_fallthru
    _

// kernel: _lambda_.22
$region0: #{_lambda_.22}
  #allocation0 [shape = 'u32[]', space=smem, size = 0x4, offset = 0x4, fixed_abs, tag = 'smem constant byte address 0x4 - core index']
  #allocation1 [shape = 'u32[144,128]{1,0:T(1,128)}', space=vmem, size = 0x12000, scoped, tag = 'internal scratch']
  %s0 = inlined_call_operand.vmem [shape: f32[8,144], index: 0, kind: input, shape index: {}]
  %s1 = inlined_call_operand.vmem [shape: f32[144,32], index: 1, kind: input, shape index: {}]
  %s2 = inlined_call_operand.vmem [shape: f32[32,32], index: 2, kind: input, shape index: {}, may-alias: {2,3}]
  %s3 = inlined_call_operand.vmem [shape: f32[32,32], index: 3, kind: output, shape index: {}, may-alias: {2,3}]
  %s4 = sld [smem:[#allocation0]]
  $region18: #{_lambda_.22} parent=0
    _
  %s6 = ssub.s32 1, %s4
  %s7 = scalar_select 0, %s6, %s4
  // Predicated region
  $region2: #{_lambda_.22} parent=0 // pred_check
    _
  $region3: #{_lambda_.22} parent=0 // pred_check_branch
    %9 = sbr.rel (0) target = $region5
  $region4: #{_lambda_.22} parent=0 // pred_region
    _
  $region5: #{_lambda_.22} parent=0 // pred_fallthru
    _
  // Predicated region
  $region6: #{_lambda_.22} parent=0 // pred_check
    _
  $region7: #{_lambda_.22} parent=0 // pred_check_branch
    %11 = sbr.rel (0) target = $region9
  $region8: #{_lambda_.22} parent=0 // pred_region
    _
  $region9: #{_lambda_.22} parent=0 // pred_fallthru
    _
  %s12 = scalar_lea.vmem %s3, 16
  %s13 = scalar_lea.vmem %s3, 16
  %v15 = vld [vmem:[%s1] sm:$0xff]
  %v16 = vld [vmem:[%s1 + $0x8] sm:$0xff]
  %v17 = vld [vmem:[%s1 + $0x10] sm:$0xff]
  %v18 = vld [vmem:[%s1 + $0x18] sm:$0xff]
  %v19 = vld [vmem:[%s1 + $0x20] sm:$0xff]
  %v20 = vld [vmem:[%s1 + $0x28] sm:$0xff]
  %v21 = vld [vmem:[%s1 + $0x30] sm:$0xff]
  %v22 = vld [vmem:[%s1 + $0x38] sm:$0xff]
  %v23 = vld [vmem:[%s1 + $0x40] sm:$0xff]
  %v24 = vld [vmem:[%s1 + $0x48] sm:$0xff]
  %v25 = vld [vmem:[%s1 + $0x50] sm:$0xff]
  %v26 = vld [vmem:[%s1 + $0x58] sm:$0xff]
  %v27 = vld [vmem:[%s1 + $0x60] sm:$0xff]
  %v28 = vld [vmem:[%s1 + $0x68] sm:$0xff]
  %v29 = vld [vmem:[%s1 + $0x70] sm:$0xff]
  %v30 = vld [vmem:[%s1 + $0x78] sm:$0xff]
  %v31 = vld [vmem:[%s1 + $0x80] sm:$0xff]
  %v32 = vld [vmem:[%s1 + $0x88] sm:$0xff]
  %v33 = vld [vmem:[%s0] sm:$0xff]
  %v34 = vld [vmem:[%s0 + $0x8] sm:$0xff]
  %v35 = vpack.c.bf16 %v33, %v33
  %v36 = vpack.c.bf16 %v34, %v34
  %v37 = vpack.c.bf16 %v16, %v15
  %v38 = vpack.c.bf16 %v18, %v17
  %v39 = vpack.c.bf16 %v20, %v19
  %v40 = vpack.c.bf16 %v22, %v21
  %v41 = vpack.c.bf16 %v24, %v23
  %v42 = vpack.c.bf16 %v26, %v25
  %v43 = vpack.c.bf16 %v28, %v27
  %v44 = vpack.c.bf16 %v30, %v29
  %v45 = vpack.c.bf16 %v32, %v31
  %vm46 = vcmask 130048
  %v48 = vsel %vm46, %v36, 0
  %50 = vmatprep.subr.bf16.mxu0 0
  %51 = vmatpush1.bf16.msra.mxu0 %v37
  %52 = vmatprep.subr.bf16.mxu0 0
  %53 = vmatpush1.bf16.msra.mxu0 %v38
  %54 = vmatprep.subr.bf16.mxu0 0
  %55 = vmatpush1.bf16.msra.mxu0 %v39
  %56 = vmatprep.subr.bf16.mxu0 0
  %57 = vmatpush1.bf16.msra.mxu0 %v40
  %58 = vmatprep.subr.bf16.mxu0 0
  %59 = vmatpush1.bf16.msra.mxu0 %v41
  %60 = vmatprep.subr.bf16.mxu0 0
  %61 = vmatpush1.bf16.msra.mxu0 %v42
  %62 = vmatprep.subr.bf16.mxu0 0
  %63 = vmatpush1.bf16.msra.mxu0 %v43
  %64 = vmatprep.subr.bf16.mxu0 0
  %65 = vmatpush1.bf16.msra.mxu0 %v44
  %66 = vmatprep.subr.bf16.mxu0 0
  %67 = vmatpush1.bf16.msra.mxu0 %v45
  %68 = vmatprep.subr.bf16.mxu0 0
  %69 = vmatpush1.bf16.msra.mxu0 0
  %70 = vmatprep.subr.bf16.mxu0 0
  %71 = vmatpush1.bf16.msra.mxu0 0
  %72 = vmatprep.subr.bf16.mxu0 0
  %73 = vmatpush1.bf16.msra.mxu0 0
  %74 = vmatprep.subr.bf16.mxu0 0
  %75 = vmatpush1.bf16.msra.mxu0 0
  %76 = vmatprep.subr.bf16.mxu0 0
  %77 = vmatpush1.bf16.msra.mxu0 0
  %78 = vmatprep.subr.bf16.mxu0 0
  %79 = vmatpush1.bf16.msra.mxu0 0
  %80 = vmatprep.subr.bf16.mxu0 0
  %81 = vmatpush1.bf16.msra.mxu0 0
  %82 = vmatprep.mubr.bf16.mxu0 %v48
  %83 = vmatmul.mubr.bf16.gmra.mrb[0].mxu0 %v35
  %v84 = vpop.f32.mrb[0].mxu0
  %v85 = vadd.f32 0.0, %v84
  %v86 = vpop.f32.mrb[0].mxu0
  %v87 = vpop.f32.mrb[0].mxu0
  %v88 = vpop.f32.mrb[0].mxu0
  %89 = vdwg.mxu0
  %vm90 = vcmask 261120
  %91 = vst.msk [vmem:[%s13] sm:$0xff] %vm90, %v85
  %s92 = scalar_lea.vmem %s3, 16
  // Predicated region
  $region10: #{_lambda_.22} parent=0 // pred_check
    _
  $region11: #{_lambda_.22} parent=0 // pred_check_branch
    %94 = sbr.rel (0) target = $region13
  $region12: #{_lambda_.22} parent=0 // pred_region
    _
  $region13: #{_lambda_.22} parent=0 // pred_fallthru
    _
  // Predicated region
  $region14: #{_lambda_.22} parent=0 // pred_check
    _
  $region15: #{_lambda_.22} parent=0 // pred_check_branch
    %96 = sbr.rel (0) target = $region17
  $region16: #{_lambda_.22} parent=0 // pred_region
    %s97 = scalar_lea.vmem %s3, 16
  $region17: #{_lambda_.22} parent=0 // pred_fallthru
    _

// kernel: _lambda_.23
$region0: #{_lambda_.23}
  #allocation0 [shape = 'u32[]', space=smem, size = 0x4, offset = 0x4, fixed_abs, tag = 'smem constant byte address 0x4 - core index']
  #allocation1 [shape = 'u32[144,128]{1,0:T(1,128)}', space=vmem, size = 0x12000, scoped, tag = 'internal scratch']
  %s0 = inlined_call_operand.vmem [shape: f32[16,24], index: 0, kind: input, shape index: {}]
  %s1 = inlined_call_operand.vmem [shape: f32[32,32], index: 1, kind: input, shape index: {}]
  %s2 = inlined_call_operand.vmem [shape: f32[24,1], index: 2, kind: input, shape index: {}]
  %s3 = inlined_call_operand.vmem [shape: f32[24,1], index: 3, kind: input, shape index: {}]
  %s4 = inlined_call_operand.vmem [shape: f32[16,1], index: 4, kind: input, shape index: {}]
  %s5 = inlined_call_operand.vmem [shape: f32[16,1], index: 5, kind: input, shape index: {}]
  %s6 = inlined_call_operand.vmem [shape: f32[16,32], index: 6, kind: output, shape index: {}]
  %s7 = sld [smem:[#allocation0]]
  $region34: #{_lambda_.23} parent=0
    _
  %s9 = ssub.s32 1, %s7
  %s10 = scalar_select 0, %s9, %s7
  // Predicated region
  $region2: #{_lambda_.23} parent=0 // pred_check
    _
  $region3: #{_lambda_.23} parent=0 // pred_check_branch
    %12 = sbr.rel (0) target = $region5
  $region4: #{_lambda_.23} parent=0 // pred_region
    _
  $region5: #{_lambda_.23} parent=0 // pred_fallthru
    _
  // Predicated region
  $region6: #{_lambda_.23} parent=0 // pred_check
    _
  $region7: #{_lambda_.23} parent=0 // pred_check_branch
    %14 = sbr.rel (0) target = $region9
  $region8: #{_lambda_.23} parent=0 // pred_region
    _
  $region9: #{_lambda_.23} parent=0 // pred_fallthru
    _
  // Predicated region
  $region10: #{_lambda_.23} parent=0 // pred_check
    _
  $region11: #{_lambda_.23} parent=0 // pred_check_branch
    %16 = sbr.rel (0) target = $region13
  $region12: #{_lambda_.23} parent=0 // pred_region
    _
  $region13: #{_lambda_.23} parent=0 // pred_fallthru
    _
  // Predicated region
  $region14: #{_lambda_.23} parent=0 // pred_check
    _
  $region15: #{_lambda_.23} parent=0 // pred_check_branch
    %18 = sbr.rel (0) target = $region17
  $region16: #{_lambda_.23} parent=0 // pred_region
    _
  $region17: #{_lambda_.23} parent=0 // pred_fallthru
    _
  // Predicated region
  $region18: #{_lambda_.23} parent=0 // pred_check
    _
  $region19: #{_lambda_.23} parent=0 // pred_check_branch
    %20 = sbr.rel (0) target = $region21
  $region20: #{_lambda_.23} parent=0 // pred_region
    _
  $region21: #{_lambda_.23} parent=0 // pred_fallthru
    _
  // Predicated region
  $region22: #{_lambda_.23} parent=0 // pred_check
    _
  $region23: #{_lambda_.23} parent=0 // pred_check_branch
    %22 = sbr.rel (0) target = $region25
  $region24: #{_lambda_.23} parent=0 // pred_region
    _
  $region25: #{_lambda_.23} parent=0 // pred_fallthru
    _
  %v24 = vld [vmem:[%s1] sm:$0xff]
  %v25 = vld [vmem:[%s1 + $0x8] sm:$0xff]
  %v26 = vld [vmem:[%s1 + $0x10] sm:$0xff]
  %v27 = vld [vmem:[%s2] sm:$0xff]
  %v28 = vld [vmem:[%s2 + $0x8] sm:$0xff]
  %v29 = vld [vmem:[%s2 + $0x10] sm:$0xff]
  %31 = vset.pattern.permute.xlu0 0
  %32 = vperm.xlu0 %31, %v27
  %v33 = vpop.permute.xlu0 %32
  %36 = vset.pattern.permute.xlu0 0
  %37 = vperm.xlu0 %36, %v28
  %v38 = vpop.permute.xlu0 %37
  %41 = vset.pattern.permute.xlu0 0
  %42 = vperm.xlu0 %41, %v29
  %v43 = vpop.permute.xlu0 %42
  %v45 = vmul.f32 %v24, %v33
  %v46 = vmul.f32 %v25, %v38
  %v47 = vmul.f32 %v26, %v43
  %v48 = vld [vmem:[%s3] sm:$0xff]
  %v49 = vld [vmem:[%s3 + $0x8] sm:$0xff]
  %v50 = vld [vmem:[%s3 + $0x10] sm:$0xff]
  %52 = vset.pattern.permute.xlu0 0
  %53 = vperm.xlu0 %52, %v48
  %v54 = vpop.permute.xlu0 %53
  %57 = vset.pattern.permute.xlu0 0
  %58 = vperm.xlu0 %57, %v49
  %v59 = vpop.permute.xlu0 %58
  %62 = vset.pattern.permute.xlu0 0
  %63 = vperm.xlu0 %62, %v50
  %v64 = vpop.permute.xlu0 %63
  %v66 = vadd.f32 %v45, %v54
  %v67 = vadd.f32 %v46, %v59
  %v68 = vadd.f32 %v47, %v64
  %v69 = vmax.f32 %v66, 0.0
  %v70 = vmax.f32 %v67, 0.0
  %v71 = vmax.f32 %v68, 0.0
  %v72 = vld [vmem:[%s0] sm:$0xff]
  %v73 = vld [vmem:[%s0 + $0x8] sm:$0xff]
  %v74 = vpack.c.bf16 %v73, %v72
  %v75 = vpack.c.bf16 %v70, %v69
  %v76 = vpack.c.bf16 %v71, %v71
  %vm77 = vcmask 195584
  %v79 = vsel %vm77, %v74, 0
  %vm81 = vcmask 1043456
  %v83 = vsel %vm81, %v76, 0
  %85 = vmatprep.subr.bf16.mxu0 0
  %86 = vmatpush1.bf16.msra.mxu0 %v75
  %87 = vmatprep.subr.bf16.mxu0 0
  %88 = vmatpush1.bf16.msra.mxu0 %v83
  %89 = vmatprep.subr.bf16.mxu0 0
  %90 = vmatpush1.bf16.msra.mxu0 0
  %91 = vmatprep.subr.bf16.mxu0 0
  %92 = vmatpush1.bf16.msra.mxu0 0
  %93 = vmatprep.subr.bf16.mxu0 0
  %94 = vmatpush1.bf16.msra.mxu0 0
  %95 = vmatprep.subr.bf16.mxu0 0
  %96 = vmatpush1.bf16.msra.mxu0 0
  %97 = vmatprep.subr.bf16.mxu0 0
  %98 = vmatpush1.bf16.msra.mxu0 0
  %99 = vmatprep.subr.bf16.mxu0 0
  %100 = vmatpush1.bf16.msra.mxu0 0
  %101 = vmatprep.subr.bf16.mxu0 0
  %102 = vmatpush1.bf16.msra.mxu0 0
  %103 = vmatprep.subr.bf16.mxu0 0
  %104 = vmatpush1.bf16.msra.mxu0 0
  %105 = vmatprep.subr.bf16.mxu0 0
  %106 = vmatpush1.bf16.msra.mxu0 0
  %107 = vmatprep.subr.bf16.mxu0 0
  %108 = vmatpush1.bf16.msra.mxu0 0
  %109 = vmatprep.subr.bf16.mxu0 0
  %110 = vmatpush1.bf16.msra.mxu0 0
  %111 = vmatprep.subr.bf16.mxu0 0
  %112 = vmatpush1.bf16.msra.mxu0 0
  %113 = vmatprep.subr.bf16.mxu0 0
  %114 = vmatpush1.bf16.msra.mxu0 0
  %115 = vmatprep.subr.bf16.mxu0 0
  %116 = vmatpush1.bf16.msra.mxu0 0
  %117 = vmatprep.mubr.bf16.mxu0 0
  %118 = vmatmul.mubr.bf16.gmra.mrb[0].mxu0 %v79
  %v119 = vpop.f32.mrb[0].mxu0
  %v120 = vadd.f32 0.0, %v119
  %v121 = vpop.f32.mrb[0].mxu0
  %v122 = vpop.f32.mrb[0].mxu0
  %v123 = vadd.f32 0.0, %v122
  %v124 = vpop.f32.mrb[0].mxu0
  %125 = vdwg.mxu0
  %v126 = vld [vmem:[%s4] sm:$0xff]
  %v127 = vld [vmem:[%s4 + $0x8] sm:$0xff]
  %129 = vset.pattern.permute.xlu0 0
  %130 = vperm.xlu0 %129, %v126
  %v131 = vpop.permute.xlu0 %130
  %134 = vset.pattern.permute.xlu0 0
  %135 = vperm.xlu0 %134, %v127
  %v136 = vpop.permute.xlu0 %135
  %v138 = vmul.f32 %v120, %v131
  %v139 = vmul.f32 %v123, %v136
  %v140 = vld [vmem:[%s5] sm:$0xff]
  %v141 = vld [vmem:[%s5 + $0x8] sm:$0xff]
  %143 = vset.pattern.permute.xlu0 0
  %144 = vperm.xlu0 %143, %v140
  %v145 = vpop.permute.xlu0 %144
  %148 = vset.pattern.permute.xlu0 0
  %149 = vperm.xlu0 %148, %v141
  %v150 = vpop.permute.xlu0 %149
  %v152 = vadd.f32 %v138, %v145
  %v153 = vadd.f32 %v139, %v150
  %v154 = vmax.f32 %v152, 0.0
  %v155 = vmax.f32 %v153, 0.0
  %vm156 = vcmask 261120
  %157 = vst.msk [vmem:[%s6] sm:$0xff] %vm156, %v154
  %158 = vst.msk [vmem:[%s6 + $0x8] sm:$0xff] %vm156, %v155
  // Predicated region
  $region26: #{_lambda_.23} parent=0 // pred_check
    _
  $region27: #{_lambda_.23} parent=0 // pred_check_branch
    %160 = sbr.rel (0) target = $region29
  $region28: #{_lambda_.23} parent=0 // pred_region
    _
  $region29: #{_lambda_.23} parent=0 // pred_fallthru
    _
  // Predicated region
  $region30: #{_lambda_.23} parent=0 // pred_check
    _
  $region31: #{_lambda_.23} parent=0 // pred_check_branch
    %162 = sbr.rel (0) target = $region33
  $region32: #{_lambda_.23} parent=0 // pred_region
    _
  $region33: #{_lambda_.23} parent=0 // pred_fallthru
    _

// kernel: _lambda_.24
$region0: #{_lambda_.24}
  #allocation0 [shape = 'u32[]', space=smem, size = 0x4, offset = 0x4, fixed_abs, tag = 'smem constant byte address 0x4 - core index']
  #allocation1 [shape = 'u32[144,128]{1,0:T(1,128)}', space=vmem, size = 0x12000, scoped, tag = 'internal scratch']
  %s0 = inlined_call_operand.vmem [shape: f32[8,144], index: 0, kind: input, shape index: {}]
  %s1 = inlined_call_operand.vmem [shape: f32[144,32], index: 1, kind: input, shape index: {}]
  %s2 = inlined_call_operand.vmem [shape: f32[32,32], index: 2, kind: input, shape index: {}, may-alias: {2,3}]
  %s3 = inlined_call_operand.vmem [shape: f32[32,32], index: 3, kind: output, shape index: {}, may-alias: {2,3}]
  %s4 = sld [smem:[#allocation0]]
  $region18: #{_lambda_.24} parent=0
    _
  %s6 = ssub.s32 1, %s4
  %s7 = scalar_select 0, %s6, %s4
  // Predicated region
  $region2: #{_lambda_.24} parent=0 // pred_check
    _
  $region3: #{_lambda_.24} parent=0 // pred_check_branch
    %9 = sbr.rel (0) target = $region5
  $region4: #{_lambda_.24} parent=0 // pred_region
    _
  $region5: #{_lambda_.24} parent=0 // pred_fallthru
    _
  // Predicated region
  $region6: #{_lambda_.24} parent=0 // pred_check
    _
  $region7: #{_lambda_.24} parent=0 // pred_check_branch
    %11 = sbr.rel (0) target = $region9
  $region8: #{_lambda_.24} parent=0 // pred_region
    _
  $region9: #{_lambda_.24} parent=0 // pred_fallthru
    _
  %s12 = scalar_lea.vmem %s3, 24
  %s13 = scalar_lea.vmem %s3, 24
  %v15 = vld [vmem:[%s1] sm:$0xff]
  %v16 = vld [vmem:[%s1 + $0x8] sm:$0xff]
  %v17 = vld [vmem:[%s1 + $0x10] sm:$0xff]
  %v18 = vld [vmem:[%s1 + $0x18] sm:$0xff]
  %v19 = vld [vmem:[%s1 + $0x20] sm:$0xff]
  %v20 = vld [vmem:[%s1 + $0x28] sm:$0xff]
  %v21 = vld [vmem:[%s1 + $0x30] sm:$0xff]
  %v22 = vld [vmem:[%s1 + $0x38] sm:$0xff]
  %v23 = vld [vmem:[%s1 + $0x40] sm:$0xff]
  %v24 = vld [vmem:[%s1 + $0x48] sm:$0xff]
  %v25 = vld [vmem:[%s1 + $0x50] sm:$0xff]
  %v26 = vld [vmem:[%s1 + $0x58] sm:$0xff]
  %v27 = vld [vmem:[%s1 + $0x60] sm:$0xff]
  %v28 = vld [vmem:[%s1 + $0x68] sm:$0xff]
  %v29 = vld [vmem:[%s1 + $0x70] sm:$0xff]
  %v30 = vld [vmem:[%s1 + $0x78] sm:$0xff]
  %v31 = vld [vmem:[%s1 + $0x80] sm:$0xff]
  %v32 = vld [vmem:[%s1 + $0x88] sm:$0xff]
  %v33 = vld [vmem:[%s0] sm:$0xff]
  %v34 = vld [vmem:[%s0 + $0x8] sm:$0xff]
  %v35 = vpack.c.bf16 %v33, %v33
  %v36 = vpack.c.bf16 %v34, %v34
  %v37 = vpack.c.bf16 %v16, %v15
  %v38 = vpack.c.bf16 %v18, %v17
  %v39 = vpack.c.bf16 %v20, %v19
  %v40 = vpack.c.bf16 %v22, %v21
  %v41 = vpack.c.bf16 %v24, %v23
  %v42 = vpack.c.bf16 %v26, %v25
  %v43 = vpack.c.bf16 %v28, %v27
  %v44 = vpack.c.bf16 %v30, %v29
  %v45 = vpack.c.bf16 %v32, %v31
  %vm46 = vcmask 130048
  %v48 = vsel %vm46, %v36, 0
  %50 = vmatprep.subr.bf16.mxu0 0
  %51 = vmatpush1.bf16.msra.mxu0 %v37
  %52 = vmatprep.subr.bf16.mxu0 0
  %53 = vmatpush1.bf16.msra.mxu0 %v38
  %54 = vmatprep.subr.bf16.mxu0 0
  %55 = vmatpush1.bf16.msra.mxu0 %v39
  %56 = vmatprep.subr.bf16.mxu0 0
  %57 = vmatpush1.bf16.msra.mxu0 %v40
  %58 = vmatprep.subr.bf16.mxu0 0
  %59 = vmatpush1.bf16.msra.mxu0 %v41
  %60 = vmatprep.subr.bf16.mxu0 0
  %61 = vmatpush1.bf16.msra.mxu0 %v42
  %62 = vmatprep.subr.bf16.mxu0 0
  %63 = vmatpush1.bf16.msra.mxu0 %v43
  %64 = vmatprep.subr.bf16.mxu0 0
  %65 = vmatpush1.bf16.msra.mxu0 %v44
  %66 = vmatprep.subr.bf16.mxu0 0
  %67 = vmatpush1.bf16.msra.mxu0 %v45
  %68 = vmatprep.subr.bf16.mxu0 0
  %69 = vmatpush1.bf16.msra.mxu0 0
  %70 = vmatprep.subr.bf16.mxu0 0
  %71 = vmatpush1.bf16.msra.mxu0 0
  %72 = vmatprep.subr.bf16.mxu0 0
  %73 = vmatpush1.bf16.msra.mxu0 0
  %74 = vmatprep.subr.bf16.mxu0 0
  %75 = vmatpush1.bf16.msra.mxu0 0
  %76 = vmatprep.subr.bf16.mxu0 0
  %77 = vmatpush1.bf16.msra.mxu0 0
  %78 = vmatprep.subr.bf16.mxu0 0
  %79 = vmatpush1.bf16.msra.mxu0 0
  %80 = vmatprep.subr.bf16.mxu0 0
  %81 = vmatpush1.bf16.msra.mxu0 0
  %82 = vmatprep.mubr.bf16.mxu0 %v48
  %83 = vmatmul.mubr.bf16.gmra.mrb[0].mxu0 %v35
  %v84 = vpop.f32.mrb[0].mxu0
  %v85 = vadd.f32 0.0, %v84
  %v86 = vpop.f32.mrb[0].mxu0
  %v87 = vpop.f32.mrb[0].mxu0
  %v88 = vpop.f32.mrb[0].mxu0
  %89 = vdwg.mxu0
  %vm90 = vcmask 261120
  %91 = vst.msk [vmem:[%s13] sm:$0xff] %vm90, %v85
  %s92 = scalar_lea.vmem %s3, 24
  // Predicated region
  $region10: #{_lambda_.24} parent=0 // pred_check
    _
  $region11: #{_lambda_.24} parent=0 // pred_check_branch
    %94 = sbr.rel (0) target = $region13
  $region12: #{_lambda_.24} parent=0 // pred_region
    _
  $region13: #{_lambda_.24} parent=0 // pred_fallthru
    _
  // Predicated region
  $region14: #{_lambda_.24} parent=0 // pred_check
    _
  $region15: #{_lambda_.24} parent=0 // pred_check_branch
    %96 = sbr.rel (0) target = $region17
  $region16: #{_lambda_.24} parent=0 // pred_region
    %s97 = scalar_lea.vmem %s3, 24
  $region17: #{_lambda_.24} parent=0 // pred_fallthru
    _

// kernel: _lambda_.25
$region0: #{_lambda_.25}
  #allocation0 [shape = 'u32[]', space=smem, size = 0x4, offset = 0x4, fixed_abs, tag = 'smem constant byte address 0x4 - core index']
  #allocation1 [shape = 'u32[144,128]{1,0:T(1,128)}', space=vmem, size = 0x12000, scoped, tag = 'internal scratch']
  %s0 = inlined_call_operand.vmem [shape: f32[32,2,16], index: 0, kind: input, shape index: {}]
  %s1 = inlined_call_operand.vmem [shape: f32[32,1,1], index: 1, kind: input, shape index: {}]
  %s2 = inlined_call_operand.vmem [shape: f32[32,1,1], index: 2, kind: input, shape index: {}]
  %s3 = inlined_call_operand.vmem [shape: f32[14,32], index: 3, kind: input, shape index: {}]
  %s4 = inlined_call_operand.vmem [shape: f32[14,1], index: 4, kind: input, shape index: {}]
  %s5 = inlined_call_operand.vmem [shape: f32[14,2], index: 5, kind: output, shape index: {}]
  %s6 = sld [smem:[#allocation0]]
  $region30: #{_lambda_.25} parent=0
    _
  %s8 = ssub.s32 1, %s6
  %s9 = scalar_select 0, %s8, %s6
  // Predicated region
  $region2: #{_lambda_.25} parent=0 // pred_check
    _
  $region3: #{_lambda_.25} parent=0 // pred_check_branch
    %11 = sbr.rel (0) target = $region5
  $region4: #{_lambda_.25} parent=0 // pred_region
    _
  $region5: #{_lambda_.25} parent=0 // pred_fallthru
    _
  // Predicated region
  $region6: #{_lambda_.25} parent=0 // pred_check
    _
  $region7: #{_lambda_.25} parent=0 // pred_check_branch
    %13 = sbr.rel (0) target = $region9
  $region8: #{_lambda_.25} parent=0 // pred_region
    _
  $region9: #{_lambda_.25} parent=0 // pred_fallthru
    _
  // Predicated region
  $region10: #{_lambda_.25} parent=0 // pred_check
    _
  $region11: #{_lambda_.25} parent=0 // pred_check_branch
    %15 = sbr.rel (0) target = $region13
  $region12: #{_lambda_.25} parent=0 // pred_region
    _
  $region13: #{_lambda_.25} parent=0 // pred_fallthru
    _
  // Predicated region
  $region14: #{_lambda_.25} parent=0 // pred_check
    _
  $region15: #{_lambda_.25} parent=0 // pred_check_branch
    %17 = sbr.rel (0) target = $region17
  $region16: #{_lambda_.25} parent=0 // pred_region
    _
  $region17: #{_lambda_.25} parent=0 // pred_fallthru
    _
  // Predicated region
  $region18: #{_lambda_.25} parent=0 // pred_check
    _
  $region19: #{_lambda_.25} parent=0 // pred_check_branch
    %19 = sbr.rel (0) target = $region21
  $region20: #{_lambda_.25} parent=0 // pred_region
    _
  $region21: #{_lambda_.25} parent=0 // pred_fallthru
    _
  %v20 = vld [vmem:[%s0] sm:$0x3]
  %v21 = vld [vmem:[%s0 + $0x2] sm:$0x3]
  %v22 = vld [vmem:[%s0 + $0x4] sm:$0x3]
  %v23 = vld [vmem:[%s0 + $0x6] sm:$0x3]
  %v24 = vld [vmem:[%s0 + $0x8] sm:$0x3]
  %v25 = vld [vmem:[%s0 + $0xa] sm:$0x3]
  %v26 = vld [vmem:[%s0 + $0xc] sm:$0x3]
  %v27 = vld [vmem:[%s0 + $0xe] sm:$0x3]
  %v28 = vld [vmem:[%s0 + $0x10] sm:$0x3]
  %v29 = vld [vmem:[%s0 + $0x12] sm:$0x3]
  %v30 = vld [vmem:[%s0 + $0x14] sm:$0x3]
  %v31 = vld [vmem:[%s0 + $0x16] sm:$0x3]
  %v32 = vld [vmem:[%s0 + $0x18] sm:$0x3]
  %v33 = vld [vmem:[%s0 + $0x1a] sm:$0x3]
  %v34 = vld [vmem:[%s0 + $0x1c] sm:$0x3]
  %v35 = vld [vmem:[%s0 + $0x1e] sm:$0x3]
  %v36 = vld [vmem:[%s0 + $0x20] sm:$0x3]
  %v37 = vld [vmem:[%s0 + $0x22] sm:$0x3]
  %v38 = vld [vmem:[%s0 + $0x24] sm:$0x3]
  %v39 = vld [vmem:[%s0 + $0x26] sm:$0x3]
  %v40 = vld [vmem:[%s0 + $0x28] sm:$0x3]
  %v41 = vld [vmem:[%s0 + $0x2a] sm:$0x3]
  %v42 = vld [vmem:[%s0 + $0x2c] sm:$0x3]
  %v43 = vld [vmem:[%s0 + $0x2e] sm:$0x3]
  %v44 = vld [vmem:[%s0 + $0x30] sm:$0x3]
  %v45 = vld [vmem:[%s0 + $0x32] sm:$0x3]
  %v46 = vld [vmem:[%s0 + $0x34] sm:$0x3]
  %v47 = vld [vmem:[%s0 + $0x36] sm:$0x3]
  %v48 = vld [vmem:[%s0 + $0x38] sm:$0x3]
  %v49 = vld [vmem:[%s0 + $0x3a] sm:$0x3]
  %v50 = vld [vmem:[%s0 + $0x3c] sm:$0x3]
  %v51 = vld [vmem:[%s0 + $0x3e] sm:$0x3]
  %v52 = vld [vmem:[%s1] sm:$0x1]
  %v53 = vld [vmem:[%s1 + $0x1] sm:$0x1]
  %v54 = vld [vmem:[%s1 + $0x2] sm:$0x1]
  %v55 = vld [vmem:[%s1 + $0x3] sm:$0x1]
  %v56 = vld [vmem:[%s1 + $0x4] sm:$0x1]
  %v57 = vld [vmem:[%s1 + $0x5] sm:$0x1]
  %v58 = vld [vmem:[%s1 + $0x6] sm:$0x1]
  %v59 = vld [vmem:[%s1 + $0x7] sm:$0x1]
  %v60 = vld [vmem:[%s1 + $0x8] sm:$0x1]
  %v61 = vld [vmem:[%s1 + $0x9] sm:$0x1]
  %v62 = vld [vmem:[%s1 + $0xa] sm:$0x1]
  %v63 = vld [vmem:[%s1 + $0xb] sm:$0x1]
  %v64 = vld [vmem:[%s1 + $0xc] sm:$0x1]
  %v65 = vld [vmem:[%s1 + $0xd] sm:$0x1]
  %v66 = vld [vmem:[%s1 + $0xe] sm:$0x1]
  %v67 = vld [vmem:[%s1 + $0xf] sm:$0x1]
  %v68 = vld [vmem:[%s1 + $0x10] sm:$0x1]
  %v69 = vld [vmem:[%s1 + $0x11] sm:$0x1]
  %v70 = vld [vmem:[%s1 + $0x12] sm:$0x1]
  %v71 = vld [vmem:[%s1 + $0x13] sm:$0x1]
  %v72 = vld [vmem:[%s1 + $0x14] sm:$0x1]
  %v73 = vld [vmem:[%s1 + $0x15] sm:$0x1]
  %v74 = vld [vmem:[%s1 + $0x16] sm:$0x1]
  %v75 = vld [vmem:[%s1 + $0x17] sm:$0x1]
  %v76 = vld [vmem:[%s1 + $0x18] sm:$0x1]
  %v77 = vld [vmem:[%s1 + $0x19] sm:$0x1]
  %v78 = vld [vmem:[%s1 + $0x1a] sm:$0x1]
  %v79 = vld [vmem:[%s1 + $0x1b] sm:$0x1]
  %v80 = vld [vmem:[%s1 + $0x1c] sm:$0x1]
  %v81 = vld [vmem:[%s1 + $0x1d] sm:$0x1]
  %v82 = vld [vmem:[%s1 + $0x1e] sm:$0x1]
  %v83 = vld [vmem:[%s1 + $0x1f] sm:$0x1]
  %v116 = vlaneseq
  %v117 = vshrl.u32 %v116, 7
  %v118 = vsub.s32 0, %v117
  %v119 = vrot.slane %v52, %v118
  %v120 = vlaneseq
  %v121 = vshrl.u32 %v120, 7
  %v122 = vsub.s32 0, %v121
  %v123 = vrot.slane %v53, %v122
  %v124 = vlaneseq
  %v125 = vshrl.u32 %v124, 7
  %v126 = vsub.s32 0, %v125
  %v127 = vrot.slane %v54, %v126
  %v128 = vlaneseq
  %v129 = vshrl.u32 %v128, 7
  %v130 = vsub.s32 0, %v129
  %v131 = vrot.slane %v55, %v130
  %v132 = vlaneseq
  %v133 = vshrl.u32 %v132, 7
  %v134 = vsub.s32 0, %v133
  %v135 = vrot.slane %v56, %v134
  %v136 = vlaneseq
  %v137 = vshrl.u32 %v136, 7
  %v138 = vsub.s32 0, %v137
  %v139 = vrot.slane %v57, %v138
  %v140 = vlaneseq
  %v141 = vshrl.u32 %v140, 7
  %v142 = vsub.s32 0, %v141
  %v143 = vrot.slane %v58, %v142
  %v144 = vlaneseq
  %v145 = vshrl.u32 %v144, 7
  %v146 = vsub.s32 0, %v145
  %v147 = vrot.slane %v59, %v146
  %v148 = vlaneseq
  %v149 = vshrl.u32 %v148, 7
  %v150 = vsub.s32 0, %v149
  %v151 = vrot.slane %v60, %v150
  %v152 = vlaneseq
  %v153 = vshrl.u32 %v152, 7
  %v154 = vsub.s32 0, %v153
  %v155 = vrot.slane %v61, %v154
  %v156 = vlaneseq
  %v157 = vshrl.u32 %v156, 7
  %v158 = vsub.s32 0, %v157
  %v159 = vrot.slane %v62, %v158
  %v160 = vlaneseq
  %v161 = vshrl.u32 %v160, 7
  %v162 = vsub.s32 0, %v161
  %v163 = vrot.slane %v63, %v162
  %v164 = vlaneseq
  %v165 = vshrl.u32 %v164, 7
  %v166 = vsub.s32 0, %v165
  %v167 = vrot.slane %v64, %v166
  %v168 = vlaneseq
  %v169 = vshrl.u32 %v168, 7
  %v170 = vsub.s32 0, %v169
  %v171 = vrot.slane %v65, %v170
  %v172 = vlaneseq
  %v173 = vshrl.u32 %v172, 7
  %v174 = vsub.s32 0, %v173
  %v175 = vrot.slane %v66, %v174
  %v176 = vlaneseq
  %v177 = vshrl.u32 %v176, 7
  %v178 = vsub.s32 0, %v177
  %v179 = vrot.slane %v67, %v178
  %v180 = vlaneseq
  %v181 = vshrl.u32 %v180, 7
  %v182 = vsub.s32 0, %v181
  %v183 = vrot.slane %v68, %v182
  %v184 = vlaneseq
  %v185 = vshrl.u32 %v184, 7
  %v186 = vsub.s32 0, %v185
  %v187 = vrot.slane %v69, %v186
  %v188 = vlaneseq
  %v189 = vshrl.u32 %v188, 7
  %v190 = vsub.s32 0, %v189
  %v191 = vrot.slane %v70, %v190
  %v192 = vlaneseq
  %v193 = vshrl.u32 %v192, 7
  %v194 = vsub.s32 0, %v193
  %v195 = vrot.slane %v71, %v194
  %v196 = vlaneseq
  %v197 = vshrl.u32 %v196, 7
  %v198 = vsub.s32 0, %v197
  %v199 = vrot.slane %v72, %v198
  %v200 = vlaneseq
  %v201 = vshrl.u32 %v200, 7
  %v202 = vsub.s32 0, %v201
  %v203 = vrot.slane %v73, %v202
  %v204 = vlaneseq
  %v205 = vshrl.u32 %v204, 7
  %v206 = vsub.s32 0, %v205
  %v207 = vrot.slane %v74, %v206
  %v208 = vlaneseq
  %v209 = vshrl.u32 %v208, 7
  %v210 = vsub.s32 0, %v209
  %v211 = vrot.slane %v75, %v210
  %v212 = vlaneseq
  %v213 = vshrl.u32 %v212, 7
  %v214 = vsub.s32 0, %v213
  %v215 = vrot.slane %v76, %v214
  %v216 = vlaneseq
  %v217 = vshrl.u32 %v216, 7
  %v218 = vsub.s32 0, %v217
  %v219 = vrot.slane %v77, %v218
  %v220 = vlaneseq
  %v221 = vshrl.u32 %v220, 7
  %v222 = vsub.s32 0, %v221
  %v223 = vrot.slane %v78, %v222
  %v224 = vlaneseq
  %v225 = vshrl.u32 %v224, 7
  %v226 = vsub.s32 0, %v225
  %v227 = vrot.slane %v79, %v226
  %v228 = vlaneseq
  %v229 = vshrl.u32 %v228, 7
  %v230 = vsub.s32 0, %v229
  %v231 = vrot.slane %v80, %v230
  %v232 = vlaneseq
  %v233 = vshrl.u32 %v232, 7
  %v234 = vsub.s32 0, %v233
  %v235 = vrot.slane %v81, %v234
  %v236 = vlaneseq
  %v237 = vshrl.u32 %v236, 7
  %v238 = vsub.s32 0, %v237
  %v239 = vrot.slane %v82, %v238
  %v240 = vlaneseq
  %v241 = vshrl.u32 %v240, 7
  %v242 = vsub.s32 0, %v241
  %v243 = vrot.slane %v83, %v242
  %244 = vset.pattern.permute.xlu0 0
  %245 = vperm.xlu0 %244, %v119
  %v246 = vpop.permute.xlu0 %245
  %248 = vset.pattern.permute.xlu0 0
  %249 = vperm.xlu0 %248, %v123
  %v250 = vpop.permute.xlu0 %249
  %252 = vset.pattern.permute.xlu0 0
  %253 = vperm.xlu0 %252, %v127
  %v254 = vpop.permute.xlu0 %253
  %256 = vset.pattern.permute.xlu0 0
  %257 = vperm.xlu0 %256, %v131
  %v258 = vpop.permute.xlu0 %257
  %260 = vset.pattern.permute.xlu0 0
  %261 = vperm.xlu0 %260, %v135
  %v262 = vpop.permute.xlu0 %261
  %264 = vset.pattern.permute.xlu0 0
  %265 = vperm.xlu0 %264, %v139
  %v266 = vpop.permute.xlu0 %265
  %268 = vset.pattern.permute.xlu0 0
  %269 = vperm.xlu0 %268, %v143
  %v270 = vpop.permute.xlu0 %269
  %272 = vset.pattern.permute.xlu0 0
  %273 = vperm.xlu0 %272, %v147
  %v274 = vpop.permute.xlu0 %273
  %276 = vset.pattern.permute.xlu0 0
  %277 = vperm.xlu0 %276, %v151
  %v278 = vpop.permute.xlu0 %277
  %280 = vset.pattern.permute.xlu0 0
  %281 = vperm.xlu0 %280, %v155
  %v282 = vpop.permute.xlu0 %281
  %284 = vset.pattern.permute.xlu0 0
  %285 = vperm.xlu0 %284, %v159
  %v286 = vpop.permute.xlu0 %285
  %288 = vset.pattern.permute.xlu0 0
  %289 = vperm.xlu0 %288, %v163
  %v290 = vpop.permute.xlu0 %289
  %292 = vset.pattern.permute.xlu0 0
  %293 = vperm.xlu0 %292, %v167
  %v294 = vpop.permute.xlu0 %293
  %296 = vset.pattern.permute.xlu0 0
  %297 = vperm.xlu0 %296, %v171
  %v298 = vpop.permute.xlu0 %297
  %300 = vset.pattern.permute.xlu0 0
  %301 = vperm.xlu0 %300, %v175
  %v302 = vpop.permute.xlu0 %301
  %304 = vset.pattern.permute.xlu0 0
  %305 = vperm.xlu0 %304, %v179
  %v306 = vpop.permute.xlu0 %305
  %308 = vset.pattern.permute.xlu0 0
  %309 = vperm.xlu0 %308, %v183
  %v310 = vpop.permute.xlu0 %309
  %312 = vset.pattern.permute.xlu0 0
  %313 = vperm.xlu0 %312, %v187
  %v314 = vpop.permute.xlu0 %313
  %316 = vset.pattern.permute.xlu0 0
  %317 = vperm.xlu0 %316, %v191
  %v318 = vpop.permute.xlu0 %317
  %320 = vset.pattern.permute.xlu0 0
  %321 = vperm.xlu0 %320, %v195
  %v322 = vpop.permute.xlu0 %321
  %324 = vset.pattern.permute.xlu0 0
  %325 = vperm.xlu0 %324, %v199
  %v326 = vpop.permute.xlu0 %325
  %328 = vset.pattern.permute.xlu0 0
  %329 = vperm.xlu0 %328, %v203
  %v330 = vpop.permute.xlu0 %329
  %332 = vset.pattern.permute.xlu0 0
  %333 = vperm.xlu0 %332, %v207
  %v334 = vpop.permute.xlu0 %333
  %336 = vset.pattern.permute.xlu0 0
  %337 = vperm.xlu0 %336, %v211
  %v338 = vpop.permute.xlu0 %337
  %340 = vset.pattern.permute.xlu0 0
  %341 = vperm.xlu0 %340, %v215
  %v342 = vpop.permute.xlu0 %341
  %344 = vset.pattern.permute.xlu0 0
  %345 = vperm.xlu0 %344, %v219
  %v346 = vpop.permute.xlu0 %345
  %348 = vset.pattern.permute.xlu0 0
  %349 = vperm.xlu0 %348, %v223
  %v350 = vpop.permute.xlu0 %349
  %352 = vset.pattern.permute.xlu0 0
  %353 = vperm.xlu0 %352, %v227
  %v354 = vpop.permute.xlu0 %353
  %356 = vset.pattern.permute.xlu0 0
  %357 = vperm.xlu0 %356, %v231
  %v358 = vpop.permute.xlu0 %357
  %360 = vset.pattern.permute.xlu0 0
  %361 = vperm.xlu0 %360, %v235
  %v362 = vpop.permute.xlu0 %361
  %364 = vset.pattern.permute.xlu0 0
  %365 = vperm.xlu0 %364, %v239
  %v366 = vpop.permute.xlu0 %365
  %368 = vset.pattern.permute.xlu0 0
  %369 = vperm.xlu0 %368, %v243
  %v370 = vpop.permute.xlu0 %369
  %v372 = vmul.f32 %v20, %v246
  %v373 = vmul.f32 %v21, %v250
  %v374 = vmul.f32 %v22, %v254
  %v375 = vmul.f32 %v23, %v258
  %v376 = vmul.f32 %v24, %v262
  %v377 = vmul.f32 %v25, %v266
  %v378 = vmul.f32 %v26, %v270
  %v379 = vmul.f32 %v27, %v274
  %v380 = vmul.f32 %v28, %v278
  %v381 = vmul.f32 %v29, %v282
  %v382 = vmul.f32 %v30, %v286
  %v383 = vmul.f32 %v31, %v290
  %v384 = vmul.f32 %v32, %v294
  %v385 = vmul.f32 %v33, %v298
  %v386 = vmul.f32 %v34, %v302
  %v387 = vmul.f32 %v35, %v306
  %v388 = vmul.f32 %v36, %v310
  %v389 = vmul.f32 %v37, %v314
  %v390 = vmul.f32 %v38, %v318
  %v391 = vmul.f32 %v39, %v322
  %v392 = vmul.f32 %v40, %v326
  %v393 = vmul.f32 %v41, %v330
  %v394 = vmul.f32 %v42, %v334
  %v395 = vmul.f32 %v43, %v338
  %v396 = vmul.f32 %v44, %v342
  %v397 = vmul.f32 %v45, %v346
  %v398 = vmul.f32 %v46, %v350
  %v399 = vmul.f32 %v47, %v354
  %v400 = vmul.f32 %v48, %v358
  %v401 = vmul.f32 %v49, %v362
  %v402 = vmul.f32 %v50, %v366
  %v403 = vmul.f32 %v51, %v370
  %v404 = vld [vmem:[%s2] sm:$0x1]
  %v405 = vld [vmem:[%s2 + $0x1] sm:$0x1]
  %v406 = vld [vmem:[%s2 + $0x2] sm:$0x1]
  %v407 = vld [vmem:[%s2 + $0x3] sm:$0x1]
  %v408 = vld [vmem:[%s2 + $0x4] sm:$0x1]
  %v409 = vld [vmem:[%s2 + $0x5] sm:$0x1]
  %v410 = vld [vmem:[%s2 + $0x6] sm:$0x1]
  %v411 = vld [vmem:[%s2 + $0x7] sm:$0x1]
  %v412 = vld [vmem:[%s2 + $0x8] sm:$0x1]
  %v413 = vld [vmem:[%s2 + $0x9] sm:$0x1]
  %v414 = vld [vmem:[%s2 + $0xa] sm:$0x1]
  %v415 = vld [vmem:[%s2 + $0xb] sm:$0x1]
  %v416 = vld [vmem:[%s2 + $0xc] sm:$0x1]
  %v417 = vld [vmem:[%s2 + $0xd] sm:$0x1]
  %v418 = vld [vmem:[%s2 + $0xe] sm:$0x1]
  %v419 = vld [vmem:[%s2 + $0xf] sm:$0x1]
  %v420 = vld [vmem:[%s2 + $0x10] sm:$0x1]
  %v421 = vld [vmem:[%s2 + $0x11] sm:$0x1]
  %v422 = vld [vmem:[%s2 + $0x12] sm:$0x1]
  %v423 = vld [vmem:[%s2 + $0x13] sm:$0x1]
  %v424 = vld [vmem:[%s2 + $0x14] sm:$0x1]
  %v425 = vld [vmem:[%s2 + $0x15] sm:$0x1]
  %v426 = vld [vmem:[%s2 + $0x16] sm:$0x1]
  %v427 = vld [vmem:[%s2 + $0x17] sm:$0x1]
  %v428 = vld [vmem:[%s2 + $0x18] sm:$0x1]
  %v429 = vld [vmem:[%s2 + $0x19] sm:$0x1]
  %v430 = vld [vmem:[%s2 + $0x1a] sm:$0x1]
  %v431 = vld [vmem:[%s2 + $0x1b] sm:$0x1]
  %v432 = vld [vmem:[%s2 + $0x1c] sm:$0x1]
  %v433 = vld [vmem:[%s2 + $0x1d] sm:$0x1]
  %v434 = vld [vmem:[%s2 + $0x1e] sm:$0x1]
  %v435 = vld [vmem:[%s2 + $0x1f] sm:$0x1]
  %v468 = vlaneseq
  %v469 = vshrl.u32 %v468, 7
  %v470 = vsub.s32 0, %v469
  %v471 = vrot.slane %v404, %v470
  %v472 = vlaneseq
  %v473 = vshrl.u32 %v472, 7
  %v474 = vsub.s32 0, %v473
  %v475 = vrot.slane %v405, %v474
  %v476 = vlaneseq
  %v477 = vshrl.u32 %v476, 7
  %v478 = vsub.s32 0, %v477
  %v479 = vrot.slane %v406, %v478
  %v480 = vlaneseq
  %v481 = vshrl.u32 %v480, 7
  %v482 = vsub.s32 0, %v481
  %v483 = vrot.slane %v407, %v482
  %v484 = vlaneseq
  %v485 = vshrl.u32 %v484, 7
  %v486 = vsub.s32 0, %v485
  %v487 = vrot.slane %v408, %v486
  %v488 = vlaneseq
  %v489 = vshrl.u32 %v488, 7
  %v490 = vsub.s32 0, %v489
  %v491 = vrot.slane %v409, %v490
  %v492 = vlaneseq
  %v493 = vshrl.u32 %v492, 7
  %v494 = vsub.s32 0, %v493
  %v495 = vrot.slane %v410, %v494
  %v496 = vlaneseq
  %v497 = vshrl.u32 %v496, 7
  %v498 = vsub.s32 0, %v497
  %v499 = vrot.slane %v411, %v498
  %v500 = vlaneseq
  %v501 = vshrl.u32 %v500, 7
  %v502 = vsub.s32 0, %v501
  %v503 = vrot.slane %v412, %v502
  %v504 = vlaneseq
  %v505 = vshrl.u32 %v504, 7
  %v506 = vsub.s32 0, %v505
  %v507 = vrot.slane %v413, %v506
  %v508 = vlaneseq
  %v509 = vshrl.u32 %v508, 7
  %v510 = vsub.s32 0, %v509
  %v511 = vrot.slane %v414, %v510
  %v512 = vlaneseq
  %v513 = vshrl.u32 %v512, 7
  %v514 = vsub.s32 0, %v513
  %v515 = vrot.slane %v415, %v514
  %v516 = vlaneseq
  %v517 = vshrl.u32 %v516, 7
  %v518 = vsub.s32 0, %v517
  %v519 = vrot.slane %v416, %v518
  %v520 = vlaneseq
  %v521 = vshrl.u32 %v520, 7
  %v522 = vsub.s32 0, %v521
  %v523 = vrot.slane %v417, %v522
  %v524 = vlaneseq
  %v525 = vshrl.u32 %v524, 7
  %v526 = vsub.s32 0, %v525
  %v527 = vrot.slane %v418, %v526
  %v528 = vlaneseq
  %v529 = vshrl.u32 %v528, 7
  %v530 = vsub.s32 0, %v529
  %v531 = vrot.slane %v419, %v530
  %v532 = vlaneseq
  %v533 = vshrl.u32 %v532, 7
  %v534 = vsub.s32 0, %v533
  %v535 = vrot.slane %v420, %v534
  %v536 = vlaneseq
  %v537 = vshrl.u32 %v536, 7
  %v538 = vsub.s32 0, %v537
  %v539 = vrot.slane %v421, %v538
  %v540 = vlaneseq
  %v541 = vshrl.u32 %v540, 7
  %v542 = vsub.s32 0, %v541
  %v543 = vrot.slane %v422, %v542
  %v544 = vlaneseq
  %v545 = vshrl.u32 %v544, 7
  %v546 = vsub.s32 0, %v545
  %v547 = vrot.slane %v423, %v546
  %v548 = vlaneseq
  %v549 = vshrl.u32 %v548, 7
  %v550 = vsub.s32 0, %v549
  %v551 = vrot.slane %v424, %v550
  %v552 = vlaneseq
  %v553 = vshrl.u32 %v552, 7
  %v554 = vsub.s32 0, %v553
  %v555 = vrot.slane %v425, %v554
  %v556 = vlaneseq
  %v557 = vshrl.u32 %v556, 7
  %v558 = vsub.s32 0, %v557
  %v559 = vrot.slane %v426, %v558
  %v560 = vlaneseq
  %v561 = vshrl.u32 %v560, 7
  %v562 = vsub.s32 0, %v561
  %v563 = vrot.slane %v427, %v562
  %v564 = vlaneseq
  %v565 = vshrl.u32 %v564, 7
  %v566 = vsub.s32 0, %v565
  %v567 = vrot.slane %v428, %v566
  %v568 = vlaneseq
  %v569 = vshrl.u32 %v568, 7
  %v570 = vsub.s32 0, %v569
  %v571 = vrot.slane %v429, %v570
  %v572 = vlaneseq
  %v573 = vshrl.u32 %v572, 7
  %v574 = vsub.s32 0, %v573
  %v575 = vrot.slane %v430, %v574
  %v576 = vlaneseq
  %v577 = vshrl.u32 %v576, 7
  %v578 = vsub.s32 0, %v577
  %v579 = vrot.slane %v431, %v578
  %v580 = vlaneseq
  %v581 = vshrl.u32 %v580, 7
  %v582 = vsub.s32 0, %v581
  %v583 = vrot.slane %v432, %v582
  %v584 = vlaneseq
  %v585 = vshrl.u32 %v584, 7
  %v586 = vsub.s32 0, %v585
  %v587 = vrot.slane %v433, %v586
  %v588 = vlaneseq
  %v589 = vshrl.u32 %v588, 7
  %v590 = vsub.s32 0, %v589
  %v591 = vrot.slane %v434, %v590
  %v592 = vlaneseq
  %v593 = vshrl.u32 %v592, 7
  %v594 = vsub.s32 0, %v593
  %v595 = vrot.slane %v435, %v594
  %596 = vset.pattern.permute.xlu0 0
  %597 = vperm.xlu0 %596, %v471
  %v598 = vpop.permute.xlu0 %597
  %600 = vset.pattern.permute.xlu0 0
  %601 = vperm.xlu0 %600, %v475
  %v602 = vpop.permute.xlu0 %601
  %604 = vset.pattern.permute.xlu0 0
  %605 = vperm.xlu0 %604, %v479
  %v606 = vpop.permute.xlu0 %605
  %608 = vset.pattern.permute.xlu0 0
  %609 = vperm.xlu0 %608, %v483
  %v610 = vpop.permute.xlu0 %609
  %612 = vset.pattern.permute.xlu0 0
  %613 = vperm.xlu0 %612, %v487
  %v614 = vpop.permute.xlu0 %613
  %616 = vset.pattern.permute.xlu0 0
  %617 = vperm.xlu0 %616, %v491
  %v618 = vpop.permute.xlu0 %617
  %620 = vset.pattern.permute.xlu0 0
  %621 = vperm.xlu0 %620, %v495
  %v622 = vpop.permute.xlu0 %621
  %624 = vset.pattern.permute.xlu0 0
  %625 = vperm.xlu0 %624, %v499
  %v626 = vpop.permute.xlu0 %625
  %628 = vset.pattern.permute.xlu0 0
  %629 = vperm.xlu0 %628, %v503
  %v630 = vpop.permute.xlu0 %629
  %632 = vset.pattern.permute.xlu0 0
  %633 = vperm.xlu0 %632, %v507
  %v634 = vpop.permute.xlu0 %633
  %636 = vset.pattern.permute.xlu0 0
  %637 = vperm.xlu0 %636, %v511
  %v638 = vpop.permute.xlu0 %637
  %640 = vset.pattern.permute.xlu0 0
  %641 = vperm.xlu0 %640, %v515
  %v642 = vpop.permute.xlu0 %641
  %644 = vset.pattern.permute.xlu0 0
  %645 = vperm.xlu0 %644, %v519
  %v646 = vpop.permute.xlu0 %645
  %648 = vset.pattern.permute.xlu0 0
  %649 = vperm.xlu0 %648, %v523
  %v650 = vpop.permute.xlu0 %649
  %652 = vset.pattern.permute.xlu0 0
  %653 = vperm.xlu0 %652, %v527
  %v654 = vpop.permute.xlu0 %653
  %656 = vset.pattern.permute.xlu0 0
  %657 = vperm.xlu0 %656, %v531
  %v658 = vpop.permute.xlu0 %657
  %660 = vset.pattern.permute.xlu0 0
  %661 = vperm.xlu0 %660, %v535
  %v662 = vpop.permute.xlu0 %661
  %664 = vset.pattern.permute.xlu0 0
  %665 = vperm.xlu0 %664, %v539
  %v666 = vpop.permute.xlu0 %665
  %668 = vset.pattern.permute.xlu0 0
  %669 = vperm.xlu0 %668, %v543
  %v670 = vpop.permute.xlu0 %669
  %672 = vset.pattern.permute.xlu0 0
  %673 = vperm.xlu0 %672, %v547
  %v674 = vpop.permute.xlu0 %673
  %676 = vset.pattern.permute.xlu0 0
  %677 = vperm.xlu0 %676, %v551
  %v678 = vpop.permute.xlu0 %677
  %680 = vset.pattern.permute.xlu0 0
  %681 = vperm.xlu0 %680, %v555
  %v682 = vpop.permute.xlu0 %681
  %684 = vset.pattern.permute.xlu0 0
  %685 = vperm.xlu0 %684, %v559
  %v686 = vpop.permute.xlu0 %685
  %688 = vset.pattern.permute.xlu0 0
  %689 = vperm.xlu0 %688, %v563
  %v690 = vpop.permute.xlu0 %689
  %692 = vset.pattern.permute.xlu0 0
  %693 = vperm.xlu0 %692, %v567
  %v694 = vpop.permute.xlu0 %693
  %696 = vset.pattern.permute.xlu0 0
  %697 = vperm.xlu0 %696, %v571
  %v698 = vpop.permute.xlu0 %697
  %700 = vset.pattern.permute.xlu0 0
  %701 = vperm.xlu0 %700, %v575
  %v702 = vpop.permute.xlu0 %701
  %704 = vset.pattern.permute.xlu0 0
  %705 = vperm.xlu0 %704, %v579
  %v706 = vpop.permute.xlu0 %705
  %708 = vset.pattern.permute.xlu0 0
  %709 = vperm.xlu0 %708, %v583
  %v710 = vpop.permute.xlu0 %709
  %712 = vset.pattern.permute.xlu0 0
  %713 = vperm.xlu0 %712, %v587
  %v714 = vpop.permute.xlu0 %713
  %716 = vset.pattern.permute.xlu0 0
  %717 = vperm.xlu0 %716, %v591
  %v718 = vpop.permute.xlu0 %717
  %720 = vset.pattern.permute.xlu0 0
  %721 = vperm.xlu0 %720, %v595
  %v722 = vpop.permute.xlu0 %721
  %v724 = vadd.f32 %v372, %v598
  %v725 = vadd.f32 %v373, %v602
  %v726 = vadd.f32 %v374, %v606
  %v727 = vadd.f32 %v375, %v610
  %v728 = vadd.f32 %v376, %v614
  %v729 = vadd.f32 %v377, %v618
  %v730 = vadd.f32 %v378, %v622
  %v731 = vadd.f32 %v379, %v626
  %v732 = vadd.f32 %v380, %v630
  %v733 = vadd.f32 %v381, %v634
  %v734 = vadd.f32 %v382, %v638
  %v735 = vadd.f32 %v383, %v642
  %v736 = vadd.f32 %v384, %v646
  %v737 = vadd.f32 %v385, %v650
  %v738 = vadd.f32 %v386, %v654
  %v739 = vadd.f32 %v387, %v658
  %v740 = vadd.f32 %v388, %v662
  %v741 = vadd.f32 %v389, %v666
  %v742 = vadd.f32 %v390, %v670
  %v743 = vadd.f32 %v391, %v674
  %v744 = vadd.f32 %v392, %v678
  %v745 = vadd.f32 %v393, %v682
  %v746 = vadd.f32 %v394, %v686
  %v747 = vadd.f32 %v395, %v690
  %v748 = vadd.f32 %v396, %v694
  %v749 = vadd.f32 %v397, %v698
  %v750 = vadd.f32 %v398, %v702
  %v751 = vadd.f32 %v399, %v706
  %v752 = vadd.f32 %v400, %v710
  %v753 = vadd.f32 %v401, %v714
  %v754 = vadd.f32 %v402, %v718
  %v755 = vadd.f32 %v403, %v722
  %v756 = vmax.f32 %v724, 0.0
  %v757 = vmax.f32 %v725, 0.0
  %v758 = vmax.f32 %v726, 0.0
  %v759 = vmax.f32 %v727, 0.0
  %v760 = vmax.f32 %v728, 0.0
  %v761 = vmax.f32 %v729, 0.0
  %v762 = vmax.f32 %v730, 0.0
  %v763 = vmax.f32 %v731, 0.0
  %v764 = vmax.f32 %v732, 0.0
  %v765 = vmax.f32 %v733, 0.0
  %v766 = vmax.f32 %v734, 0.0
  %v767 = vmax.f32 %v735, 0.0
  %v768 = vmax.f32 %v736, 0.0
  %v769 = vmax.f32 %v737, 0.0
  %v770 = vmax.f32 %v738, 0.0
  %v771 = vmax.f32 %v739, 0.0
  %v772 = vmax.f32 %v740, 0.0
  %v773 = vmax.f32 %v741, 0.0
  %v774 = vmax.f32 %v742, 0.0
  %v775 = vmax.f32 %v743, 0.0
  %v776 = vmax.f32 %v744, 0.0
  %v777 = vmax.f32 %v745, 0.0
  %v778 = vmax.f32 %v746, 0.0
  %v779 = vmax.f32 %v747, 0.0
  %v780 = vmax.f32 %v748, 0.0
  %v781 = vmax.f32 %v749, 0.0
  %v782 = vmax.f32 %v750, 0.0
  %v783 = vmax.f32 %v751, 0.0
  %v784 = vmax.f32 %v752, 0.0
  %v785 = vmax.f32 %v753, 0.0
  %v786 = vmax.f32 %v754, 0.0
  %v787 = vmax.f32 %v755, 0.0
  %vm788 = vcmask 123904
  %v789 = vsel %vm788, %v756, 0.0
  %790 = vadd.xlane.f32.xlu0 %v789
  %v791 = vpop.xlane.xlu0 %790
  %v792 = vsel %vm788, %v757, 0.0
  %793 = vadd.xlane.f32.xlu0 %v792
  %v794 = vpop.xlane.xlu0 %793
  %v795 = vsel %vm788, %v758, 0.0
  %796 = vadd.xlane.f32.xlu0 %v795
  %v797 = vpop.xlane.xlu0 %796
  %v798 = vsel %vm788, %v759, 0.0
  %799 = vadd.xlane.f32.xlu0 %v798
  %v800 = vpop.xlane.xlu0 %799
  %v801 = vsel %vm788, %v760, 0.0
  %802 = vadd.xlane.f32.xlu0 %v801
  %v803 = vpop.xlane.xlu0 %802
  %v804 = vsel %vm788, %v761, 0.0
  %805 = vadd.xlane.f32.xlu0 %v804
  %v806 = vpop.xlane.xlu0 %805
  %v807 = vsel %vm788, %v762, 0.0
  %808 = vadd.xlane.f32.xlu0 %v807
  %v809 = vpop.xlane.xlu0 %808
  %v810 = vsel %vm788, %v763, 0.0
  %811 = vadd.xlane.f32.xlu0 %v810
  %v812 = vpop.xlane.xlu0 %811
  %v813 = vsel %vm788, %v764, 0.0
  %814 = vadd.xlane.f32.xlu0 %v813
  %v815 = vpop.xlane.xlu0 %814
  %v816 = vsel %vm788, %v765, 0.0
  %817 = vadd.xlane.f32.xlu0 %v816
  %v818 = vpop.xlane.xlu0 %817
  %v819 = vsel %vm788, %v766, 0.0
  %820 = vadd.xlane.f32.xlu0 %v819
  %v821 = vpop.xlane.xlu0 %820
  %v822 = vsel %vm788, %v767, 0.0
  %823 = vadd.xlane.f32.xlu0 %v822
  %v824 = vpop.xlane.xlu0 %823
  %v825 = vsel %vm788, %v768, 0.0
  %826 = vadd.xlane.f32.xlu0 %v825
  %v827 = vpop.xlane.xlu0 %826
  %v828 = vsel %vm788, %v769, 0.0
  %829 = vadd.xlane.f32.xlu0 %v828
  %v830 = vpop.xlane.xlu0 %829
  %v831 = vsel %vm788, %v770, 0.0
  %832 = vadd.xlane.f32.xlu0 %v831
  %v833 = vpop.xlane.xlu0 %832
  %v834 = vsel %vm788, %v771, 0.0
  %835 = vadd.xlane.f32.xlu0 %v834
  %v836 = vpop.xlane.xlu0 %835
  %v837 = vsel %vm788, %v772, 0.0
  %838 = vadd.xlane.f32.xlu0 %v837
  %v839 = vpop.xlane.xlu0 %838
  %v840 = vsel %vm788, %v773, 0.0
  %841 = vadd.xlane.f32.xlu0 %v840
  %v842 = vpop.xlane.xlu0 %841
  %v843 = vsel %vm788, %v774, 0.0
  %844 = vadd.xlane.f32.xlu0 %v843
  %v845 = vpop.xlane.xlu0 %844
  %v846 = vsel %vm788, %v775, 0.0
  %847 = vadd.xlane.f32.xlu0 %v846
  %v848 = vpop.xlane.xlu0 %847
  %v849 = vsel %vm788, %v776, 0.0
  %850 = vadd.xlane.f32.xlu0 %v849
  %v851 = vpop.xlane.xlu0 %850
  %v852 = vsel %vm788, %v777, 0.0
  %853 = vadd.xlane.f32.xlu0 %v852
  %v854 = vpop.xlane.xlu0 %853
  %v855 = vsel %vm788, %v778, 0.0
  %856 = vadd.xlane.f32.xlu0 %v855
  %v857 = vpop.xlane.xlu0 %856
  %v858 = vsel %vm788, %v779, 0.0
  %859 = vadd.xlane.f32.xlu0 %v858
  %v860 = vpop.xlane.xlu0 %859
  %v861 = vsel %vm788, %v780, 0.0
  %862 = vadd.xlane.f32.xlu0 %v861
  %v863 = vpop.xlane.xlu0 %862
  %v864 = vsel %vm788, %v781, 0.0
  %865 = vadd.xlane.f32.xlu0 %v864
  %v866 = vpop.xlane.xlu0 %865
  %v867 = vsel %vm788, %v782, 0.0
  %868 = vadd.xlane.f32.xlu0 %v867
  %v869 = vpop.xlane.xlu0 %868
  %v870 = vsel %vm788, %v783, 0.0
  %871 = vadd.xlane.f32.xlu0 %v870
  %v872 = vpop.xlane.xlu0 %871
  %v873 = vsel %vm788, %v784, 0.0
  %874 = vadd.xlane.f32.xlu0 %v873
  %v875 = vpop.xlane.xlu0 %874
  %v876 = vsel %vm788, %v785, 0.0
  %877 = vadd.xlane.f32.xlu0 %v876
  %v878 = vpop.xlane.xlu0 %877
  %v879 = vsel %vm788, %v786, 0.0
  %880 = vadd.xlane.f32.xlu0 %v879
  %v881 = vpop.xlane.xlu0 %880
  %v882 = vsel %vm788, %v787, 0.0
  %883 = vadd.xlane.f32.xlu0 %v882
  %v884 = vpop.xlane.xlu0 %883
  %v885 = vrcp.pop 16.0
  %v886 = vmul.f32 %v791, %v885
  %v887 = vmul.f32 %v794, %v885
  %v888 = vmul.f32 %v797, %v885
  %v889 = vmul.f32 %v800, %v885
  %v890 = vmul.f32 %v803, %v885
  %v891 = vmul.f32 %v806, %v885
  %v892 = vmul.f32 %v809, %v885
  %v893 = vmul.f32 %v812, %v885
  %v894 = vmul.f32 %v815, %v885
  %v895 = vmul.f32 %v818, %v885
  %v896 = vmul.f32 %v821, %v885
  %v897 = vmul.f32 %v824, %v885
  %v898 = vmul.f32 %v827, %v885
  %v899 = vmul.f32 %v830, %v885
  %v900 = vmul.f32 %v833, %v885
  %v901 = vmul.f32 %v836, %v885
  %v902 = vmul.f32 %v839, %v885
  %v903 = vmul.f32 %v842, %v885
  %v904 = vmul.f32 %v845, %v885
  %v905 = vmul.f32 %v848, %v885
  %v906 = vmul.f32 %v851, %v885
  %v907 = vmul.f32 %v854, %v885
  %v908 = vmul.f32 %v857, %v885
  %v909 = vmul.f32 %v860, %v885
  %v910 = vmul.f32 %v863, %v885
  %v911 = vmul.f32 %v866, %v885
  %v912 = vmul.f32 %v869, %v885
  %v913 = vmul.f32 %v872, %v885
  %v914 = vmul.f32 %v875, %v885
  %v915 = vmul.f32 %v878, %v885
  %v916 = vmul.f32 %v881, %v885
  %v917 = vmul.f32 %v884, %v885
  %v918 = vld [vmem:[%s3] sm:$0xff]
  %v919 = vld [vmem:[%s3 + $0x8] sm:$0x3f]
  %v920 = vld [vmem:[%s4] sm:$0xff]
  %v921 = vld [vmem:[%s4 + $0x8] sm:$0x3f]
  %923 = vset.pattern.permute.xlu0 0
  %924 = vperm.xlu0 %923, %v920
  %v925 = vpop.permute.xlu0 %924
  %928 = vset.pattern.permute.xlu0 0
  %929 = vperm.xlu0 %928, %v921
  %v930 = vpop.permute.xlu0 %929
  %v964 = vlaneseq
  %v965 = vand.u32 %v964, 127
  %v966 = vlaneseq
  %v967 = vshrl.u32 %v966, 7
  %v968 = vsub.s32 %v965, %v967
  %v969 = vrot.slane %v886, %v968
  %v970 = vlaneseq
  %v971 = vshrl.u32 %v970, 7
  %v972 = vsub.s32 %v965, %v971
  %v973 = vrot.slane %v887, %v972
  %v974 = vlaneseq
  %v975 = vshrl.u32 %v974, 7
  %v976 = vsub.s32 %v965, %v975
  %v977 = vrot.slane %v888, %v976
  %v978 = vlaneseq
  %v979 = vshrl.u32 %v978, 7
  %v980 = vsub.s32 %v965, %v979
  %v981 = vrot.slane %v889, %v980
  %v982 = vlaneseq
  %v983 = vshrl.u32 %v982, 7
  %v984 = vsub.s32 %v965, %v983
  %v985 = vrot.slane %v890, %v984
  %v986 = vlaneseq
  %v987 = vshrl.u32 %v986, 7
  %v988 = vsub.s32 %v965, %v987
  %v989 = vrot.slane %v891, %v988
  %v990 = vlaneseq
  %v991 = vshrl.u32 %v990, 7
  %v992 = vsub.s32 %v965, %v991
  %v993 = vrot.slane %v892, %v992
  %v994 = vlaneseq
  %v995 = vshrl.u32 %v994, 7
  %v996 = vsub.s32 %v965, %v995
  %v997 = vrot.slane %v893, %v996
  %v998 = vlaneseq
  %v999 = vshrl.u32 %v998, 7
  %v1000 = vsub.s32 %v965, %v999
  %v1001 = vrot.slane %v894, %v1000
  %v1002 = vlaneseq
  %v1003 = vshrl.u32 %v1002, 7
  %v1004 = vsub.s32 %v965, %v1003
  %v1005 = vrot.slane %v895, %v1004
  %v1006 = vlaneseq
  %v1007 = vshrl.u32 %v1006, 7
  %v1008 = vsub.s32 %v965, %v1007
  %v1009 = vrot.slane %v896, %v1008
  %v1010 = vlaneseq
  %v1011 = vshrl.u32 %v1010, 7
  %v1012 = vsub.s32 %v965, %v1011
  %v1013 = vrot.slane %v897, %v1012
  %v1014 = vlaneseq
  %v1015 = vshrl.u32 %v1014, 7
  %v1016 = vsub.s32 %v965, %v1015
  %v1017 = vrot.slane %v898, %v1016
  %v1018 = vlaneseq
  %v1019 = vshrl.u32 %v1018, 7
  %v1020 = vsub.s32 %v965, %v1019
  %v1021 = vrot.slane %v899, %v1020
  %v1022 = vlaneseq
  %v1023 = vshrl.u32 %v1022, 7
  %v1024 = vsub.s32 %v965, %v1023
  %v1025 = vrot.slane %v900, %v1024
  %v1026 = vlaneseq
  %v1027 = vshrl.u32 %v1026, 7
  %v1028 = vsub.s32 %v965, %v1027
  %v1029 = vrot.slane %v901, %v1028
  %v1030 = vlaneseq
  %v1031 = vshrl.u32 %v1030, 7
  %v1032 = vsub.s32 %v965, %v1031
  %v1033 = vrot.slane %v902, %v1032
  %v1034 = vlaneseq
  %v1035 = vshrl.u32 %v1034, 7
  %v1036 = vsub.s32 %v965, %v1035
  %v1037 = vrot.slane %v903, %v1036
  %v1038 = vlaneseq
  %v1039 = vshrl.u32 %v1038, 7
  %v1040 = vsub.s32 %v965, %v1039
  %v1041 = vrot.slane %v904, %v1040
  %v1042 = vlaneseq
  %v1043 = vshrl.u32 %v1042, 7
  %v1044 = vsub.s32 %v965, %v1043
  %v1045 = vrot.slane %v905, %v1044
  %v1046 = vlaneseq
  %v1047 = vshrl.u32 %v1046, 7
  %v1048 = vsub.s32 %v965, %v1047
  %v1049 = vrot.slane %v906, %v1048
  %v1050 = vlaneseq
  %v1051 = vshrl.u32 %v1050, 7
  %v1052 = vsub.s32 %v965, %v1051
  %v1053 = vrot.slane %v907, %v1052
  %v1054 = vlaneseq
  %v1055 = vshrl.u32 %v1054, 7
  %v1056 = vsub.s32 %v965, %v1055
  %v1057 = vrot.slane %v908, %v1056
  %v1058 = vlaneseq
  %v1059 = vshrl.u32 %v1058, 7
  %v1060 = vsub.s32 %v965, %v1059
  %v1061 = vrot.slane %v909, %v1060
  %v1062 = vlaneseq
  %v1063 = vshrl.u32 %v1062, 7
  %v1064 = vsub.s32 %v965, %v1063
  %v1065 = vrot.slane %v910, %v1064
  %v1066 = vlaneseq
  %v1067 = vshrl.u32 %v1066, 7
  %v1068 = vsub.s32 %v965, %v1067
  %v1069 = vrot.slane %v911, %v1068
  %v1070 = vlaneseq
  %v1071 = vshrl.u32 %v1070, 7
  %v1072 = vsub.s32 %v965, %v1071
  %v1073 = vrot.slane %v912, %v1072
  %v1074 = vlaneseq
  %v1075 = vshrl.u32 %v1074, 7
  %v1076 = vsub.s32 %v965, %v1075
  %v1077 = vrot.slane %v913, %v1076
  %v1078 = vlaneseq
  %v1079 = vshrl.u32 %v1078, 7
  %v1080 = vsub.s32 %v965, %v1079
  %v1081 = vrot.slane %v914, %v1080
  %v1082 = vlaneseq
  %v1083 = vshrl.u32 %v1082, 7
  %v1084 = vsub.s32 %v965, %v1083
  %v1085 = vrot.slane %v915, %v1084
  %v1086 = vlaneseq
  %v1087 = vshrl.u32 %v1086, 7
  %v1088 = vsub.s32 %v965, %v1087
  %v1089 = vrot.slane %v916, %v1088
  %v1090 = vlaneseq
  %v1091 = vshrl.u32 %v1090, 7
  %v1092 = vsub.s32 %v965, %v1091
  %v1093 = vrot.slane %v917, %v1092
  %vm1094 = vcmask 1041409
  %v1095 = vsel %vm1094, %v973, %v969
  %vm1096 = vcmask 1042434
  %v1097 = vsel %vm1096, %v977, %v1095
  %vm1098 = vcmask 1043459
  %v1099 = vsel %vm1098, %v981, %v1097
  %vm1100 = vcmask 1044484
  %v1101 = vsel %vm1100, %v985, %v1099
  %vm1102 = vcmask 1045509
  %v1103 = vsel %vm1102, %v989, %v1101
  %vm1104 = vcmask 1046534
  %v1105 = vsel %vm1104, %v993, %v1103
  %vm1106 = vcmask 1047559
  %v1107 = vsel %vm1106, %v997, %v1105
  %v1108 = vsel %vm1094, %v1005, %v1001
  %v1109 = vsel %vm1096, %v1009, %v1108
  %v1110 = vsel %vm1098, %v1013, %v1109
  %v1111 = vsel %vm1100, %v1017, %v1110
  %v1112 = vsel %vm1102, %v1021, %v1111
  %v1113 = vsel %vm1104, %v1025, %v1112
  %v1114 = vsel %vm1106, %v1029, %v1113
  %v1115 = vsel %vm1094, %v1037, %v1033
  %v1116 = vsel %vm1096, %v1041, %v1115
  %v1117 = vsel %vm1098, %v1045, %v1116
  %v1118 = vsel %vm1100, %v1049, %v1117
  %v1119 = vsel %vm1102, %v1053, %v1118
  %v1120 = vsel %vm1104, %v1057, %v1119
  %v1121 = vsel %vm1106, %v1061, %v1120
  %v1122 = vsel %vm1094, %v1069, %v1065
  %v1123 = vsel %vm1096, %v1073, %v1122
  %v1124 = vsel %vm1098, %v1077, %v1123
  %v1125 = vsel %vm1100, %v1081, %v1124
  %v1126 = vsel %vm1102, %v1085, %v1125
  %v1127 = vsel %vm1104, %v1089, %v1126
  %v1128 = vsel %vm1106, %v1093, %v1127
  %vm1133 = vcmask 261120
  %v1135 = vsel %vm1133, %v918, 0
  %v1138 = vsel %vm1133, %v919, 0
  %1140 = vmatprep.subr.mxu0 0.0
  %1141 = vmatpush1.msra.mxu0 %v1107
  %1142 = vmatprep.subr.mxu0 0.0
  %1143 = vmatpush1.msra.mxu0 %v1114
  %1144 = vmatprep.subr.mxu0 0.0
  %1145 = vmatpush1.msra.mxu0 %v1121
  %1146 = vmatprep.subr.mxu0 0.0
  %1147 = vmatpush1.msra.mxu0 %v1128
  %1148 = vmatprep.subr.mxu0 0.0
  %1149 = vmatpush1.msra.mxu0 0.0
  %1150 = vmatprep.subr.mxu0 0.0
  %1151 = vmatpush1.msra.mxu0 0.0
  %1152 = vmatprep.subr.mxu0 0.0
  %1153 = vmatpush1.msra.mxu0 0.0
  %1154 = vmatprep.subr.mxu0 0.0
  %1155 = vmatpush1.msra.mxu0 0.0
  %1156 = vmatprep.subr.mxu0 0.0
  %1157 = vmatpush1.msra.mxu0 0.0
  %1158 = vmatprep.subr.mxu0 0.0
  %1159 = vmatpush1.msra.mxu0 0.0
  %1160 = vmatprep.subr.mxu0 0.0
  %1161 = vmatpush1.msra.mxu0 0.0
  %1162 = vmatprep.subr.mxu0 0.0
  %1163 = vmatpush1.msra.mxu0 0.0
  %1164 = vmatprep.subr.mxu0 0.0
  %1165 = vmatpush1.msra.mxu0 0.0
  %1166 = vmatprep.subr.mxu0 0.0
  %1167 = vmatpush1.msra.mxu0 0.0
  %1168 = vmatprep.subr.mxu0 0.0
  %1169 = vmatpush1.msra.mxu0 0.0
  %1170 = vmatprep.subr.mxu0 0.0
  %1171 = vmatpush1.msra.mxu0 0.0
  %1172 = vmatprep.subr.mxu0 0.0
  %1173 = vmatpush1.msra.mxu0 0.0
  %1174 = vmatprep.subr.mxu0 0.0
  %1175 = vmatpush1.msra.mxu0 0.0
  %1176 = vmatprep.subr.mxu0 0.0
  %1177 = vmatpush1.msra.mxu0 0.0
  %1178 = vmatprep.subr.mxu0 0.0
  %1179 = vmatpush1.msra.mxu0 0.0
  %1180 = vmatprep.subr.mxu0 0.0
  %1181 = vmatpush1.msra.mxu0 0.0
  %1182 = vmatprep.subr.mxu0 0.0
  %1183 = vmatpush1.msra.mxu0 0.0
  %1184 = vmatprep.subr.mxu0 0.0
  %1185 = vmatpush1.msra.mxu0 0.0
  %1186 = vmatprep.subr.mxu0 0.0
  %1187 = vmatpush1.msra.mxu0 0.0
  %1188 = vmatprep.subr.mxu0 0.0
  %1189 = vmatpush1.msra.mxu0 0.0
  %1190 = vmatprep.subr.mxu0 0.0
  %1191 = vmatpush1.msra.mxu0 0.0
  %1192 = vmatprep.subr.mxu0 0.0
  %1193 = vmatpush1.msra.mxu0 0.0
  %1194 = vmatprep.subr.mxu0 0.0
  %1195 = vmatpush1.msra.mxu0 0.0
  %1196 = vmatprep.subr.mxu0 0.0
  %1197 = vmatpush1.msra.mxu0 0.0
  %1198 = vmatprep.subr.mxu0 0.0
  %1199 = vmatpush1.msra.mxu0 0.0
  %1200 = vmatprep.subr.mxu0 0.0
  %1201 = vmatpush1.msra.mxu0 0.0
  %1202 = vmatprep.subr.mxu0 0.0
  %1203 = vmatpush1.msra.mxu0 0.0
  %1204 = vmatprep.mubr.f32.mxu0 0.0
  %1205 = vmatmul.mubr.f32.gmra.mrb[0].mxu0 %v1135
  %v1206 = vpop.f32.mrb[0].mxu0
  %v1207 = vadd.f32 %v925, %v1206
  %v1208 = vpop.f32.mrb[0].mxu0
  %1209 = vmatprep.mubr.f32.mxu0 0.0
  %1210 = vmatmul.mubr.f32.gmra.mrb[0].mxu0 %v1138
  %v1211 = vpop.f32.mrb[0].mxu0
  %v1212 = vadd.f32 %v930, %v1211
  %v1213 = vpop.f32.mrb[0].mxu0
  %1214 = vdwg.mxu0
  %v1215 = vxor.u32 %v1207, 2147483648
  %v1216 = vxor.u32 %v1212, 2147483648
  %v1217 = vmul.f32 %v1215, 1.442695
  %v1218 = vpow.pop %v1217
  %v1219 = vmul.f32 %v1216, 1.442695
  %v1220 = vpow.pop %v1219
  %v1221 = vadd.f32 %v1218, 1.0
  %v1222 = vadd.f32 %v1220, 1.0
  %v1223 = vrcp.pop %v1221
  %v1224 = vmul.f32 1.0, %v1223
  %v1225 = vrcp.pop %v1222
  %v1226 = vmul.f32 1.0, %v1225
  %vm1227 = vcmask 15360
  %1228 = vst.msk [vmem:[%s5] sm:$0xff] %vm1227, %v1224
  %vm1229 = vcmask 13312
  %1230 = vst.msk [vmem:[%s5 + $0x8] sm:$0x3f] %vm1229, %v1226
  // Predicated region
  $region22: #{_lambda_.25} parent=0 // pred_check
    _
  $region23: #{_lambda_.25} parent=0 // pred_check_branch
    %1232 = sbr.rel (0) target = $region25
  $region24: #{_lambda_.25} parent=0 // pred_region
    _
  $region25: #{_lambda_.25} parent=0 // pred_fallthru
    _
  // Predicated region
  $region26: #{_lambda_.25} parent=0 // pred_check
    _
  $region27: #{_lambda_.25} parent=0 // pred_check_branch
    %1234 = sbr.rel (0) target = $region29
  $region28: #{_lambda_.25} parent=0 // pred_region
    _
  $region29: #{_lambda_.25} parent=0 // pred_fallthru
    _

</llo_original>
